<compile_context>
chip_gen: v7x
topology: tpu7x:2x2x1
jax: 0.10.0
libtpu: 0.0.40
codegen_flags: <defaults>
</compile_context>

<pallas_src>
import functools

import jax
import jax.numpy as jnp
from jax import lax
from jax.experimental import pallas as pl
from jax.experimental.pallas import tpu as pltpu


def _round_up(v, m):
    return (v + m - 1) // m * m


# --------------------------------------------------------------------------- kernel --

def _cl_dice_kernel(x_ref, y_ref, dc_ref, *, c_tile, h_true, w_true, eps, n_outer, unroll):
    """One grid step = one batch element x `c_tile` channels.

    x_ref  : (1, c_tile, Hp, Wp) f32 prediction block (spatially zero-padded).
    y_ref  : (1, Hp, Wp) int32 class-label map for this batch element.
    dc_ref : (8, 1) f32; rows [0, c_tile) receive the per-channel clDice coefficient.
    """
    x_blk = x_ref[0]                                    # (c_tile, Hp, Wp) f32
    y_lab = y_ref[...]                                  # (1, Hp, Wp) int32
    _, Hp, Wp = y_lab.shape

    # ---- broadcastable edge / validity masks, built once as (1, Hp, Wp) planes -------
    row = lax.broadcasted_iota(jnp.int32, (Hp, Wp), 0).reshape(1, Hp, Wp)
    col = lax.broadcasted_iota(jnp.int32, (Hp, Wp), 1).reshape(1, Hp, Wp)
    at_top, at_bot = row == 0, row == (h_true - 1)
    at_left, at_right = col == 0, col == (w_true - 1)
    valid = ((row < h_true) & (col < w_true)).astype(jnp.float32)

    # 3-tap neighbours via XLU rolls; out-of-range neighbours are replaced by the centre
    # value, which min/max then ignore (== PyTorch max_pool padding with +/-inf).  The
    # edge fix also guarantees the valid region never reads the spatial pad, so no
    # per-iteration masking is needed inside the erosion loop.
    def nb_up(v):    return jnp.where(at_top, v, pltpu.roll(v, 1, axis=1))
    def nb_down(v):  return jnp.where(at_bot, v, pltpu.roll(v, Hp - 1, axis=1))
    def nb_left(v):  return jnp.where(at_left, v, pltpu.roll(v, 1, axis=2))
    def nb_right(v): return jnp.where(at_right, v, pltpu.roll(v, Wp - 1, axis=2))

    def minpool(v):       # _cl_minpool_2d(v, 3): min of the two 1-D 3-tap min pools
        p1 = jnp.minimum(jnp.minimum(nb_up(v), v), nb_down(v))
        p2 = jnp.minimum(jnp.minimum(nb_left(v), v), nb_right(v))
        return jnp.minimum(p1, p2)

    def maxpool(v):       # max_pool2d(v, 3, stride=1, padding=1), separable
        m = jnp.maximum(jnp.maximum(nb_up(v), v), nb_down(v))
        return jnp.maximum(jnp.maximum(nb_left(m), m), nb_right(m))

    # ---- in-kernel one-hot + stack: one erosion loop covers prediction AND label -----
    base = pl.program_id(1) * c_tile
    planes = [x_blk] + [(y_lab == (base + i)).astype(jnp.float32) for i in range(c_tile)]
    a = jnp.concatenate(planes, axis=0)                 # (2*c_tile, Hp, Wp)

    mp = minpool(a)                                     # CSE: reused for lp and lab0
    cl = jnp.maximum(a - maxpool(mp), 0.0)
    lab = mp

    def erode(lab_c, c):
        nxt = minpool(lab_c)
        lp_i = maxpool(nxt)
        # Keep both relus of the reference (x may be signed with apply_nonlin=None).
        return nxt, c + jnp.maximum((1.0 - c) * jnp.maximum(lab_c - lp_i, 0.0), 0.0)

    # Reference: `while torch.sum(label) != 0`.  We early-exit on the masked-abs version
    # (exact "any nonzero in the valid region" check: no signed cancellation, no pad
    # contribution), evaluate it only once per `unroll` erosion steps, and cap at
    # n_outer groups.  Extra steps past the all-zero fixed point are exact no-ops.
    def cond(carry):
        _, _, it, nz = carry
        return jnp.logical_and(nz != 0.0, it < n_outer)

    def body(carry):
        lab_c, c, it, _ = carry
        for _ in range(unroll):                         # unrolled erosion steps
            lab_c, c = erode(lab_c, c)
        return lab_c, c, it + 1, jnp.sum(jnp.abs(lab_c) * valid)

    nz0 = jnp.sum(jnp.abs(lab) * valid)
    _, cl, _, _ = lax.while_loop(cond, body, (lab, cl, jnp.array(0, jnp.int32), nz0))
    cl = minpool(maxpool(cl)) * valid                   # mask spatial pad before sums

    # ---- clDice per channel -----------------------------------------------------------
    cl_pred, cl_lab = cl[:c_tile], cl[c_tile:]
    y_oh = a[c_tile:]

    def hw_sum(v):                                      # (c_tile, Hp, Wp) -> (c_tile, 1)
        return jnp.sum(jnp.sum(v, axis=2), axis=1, keepdims=True)

    cl_p2vol_l = (hw_sum(cl_pred * y_oh) + eps) / (hw_sum(cl_pred) + eps)
    cl_l2vol_p = (hw_sum(cl_lab * x_blk) + eps) / (hw_sum(cl_lab) + eps)
    dc = 2.0 * cl_p2vol_l * cl_l2vol_p / (cl_p2vol_l + cl_l2vol_p)    # (c_tile, 1)

    if c_tile < 8:                                      # output block is (8, 1)
        dc = jnp.concatenate([dc, jnp.zeros((8 - c_tile, 1), jnp.float32)], axis=0)
    dc_ref[...] = dc


# -------------------------------------------------------------------------- wrapper --

def _vmem_budget():
    """Generation-aware (vmem_limit_bytes, tile-picking budget) in bytes."""
    try:
        cap = int(pltpu.get_tpu_info().vmem_capacity_bytes)
    except Exception:                       # conservative fallback: v7x-sized VMEM
        cap = 64 * 1024 * 1024
    vmem_limit = max(32 * 1024 * 1024, int(cap * 0.85))   # ~54 MiB v7x, ~108 MiB v5e/v6e
    budget = int(cap * 0.72)                              # ~46 MiB v7x, ~92  MiB v5e/v6e
    return vmem_limit, budget


def soft_cl_dice_loss(x, y, eps=1e-8, c_tile=None, unroll=4):
    """SoftCLDiceLoss forward with module defaults (apply_nonlin=None, batch_dice=False,
    do_bg=True, simplify_diff=False, loss_mask=None).

    x : (B, C, H, W) float prediction (NCHW);  y : (B, H, W) integer class labels.
    """
    B, C, H, W = x.shape
    # Lane/sublane-dense layout: W -> lanes (multiple of 128), H -> sublanes (8).
    Hp, Wp = _round_up(H, 8), _round_up(W, 128)

    x_f = x.astype(jnp.float32)
    y_i = y.astype(jnp.int32)
    if (Hp, Wp) != (H, W):
        x_f = jnp.pad(x_f, ((0, 0), (0, 0), (0, Hp - H), (0, Wp - W)))
        # Pad the label with -1 (matches no class) so the pad region's one-hot is zero.
        y_i = jnp.pad(y_i, ((0, 0), (0, Hp - H), (0, Wp - W)), constant_values=-1)

    vmem_limit, budget = _vmem_budget()
    plane = Hp * Wp * 4
    if c_tile is None:
        # Working set per channel (~18 planes: double-buffered x input block, stacked
        # x/label erosion carries and pool temporaries) + fixed cost (label input block,
        # broadcast masks, slack).  Capped at 8 so the dc output block is a clean (8,1).
        c_tile = int(max(1, min(C, 8, (budget - 10 * plane) // (18 * plane))))
    c_tile = int(max(1, min(c_tile, C, 8)))
    if B == 1 and C >= 2:
        # v7x megacore: keep the grid >= 2 steps so "parallel" can shard across both TCs.
        c_tile = min(c_tile, -(-C // 2))

    n_cb = -(-C // c_tile)
    C_pad = n_cb * c_tile
    if C_pad != C:
        x_f = jnp.pad(x_f, ((0, 0), (0, C_pad - C), (0, 0), (0, 0)))

    # torch: zeros_like(x).scatter_(1, y.view(B,1,H,W).long(), 1) == one-hot over C.
    # The one-hot is built in-kernel as (y == channel); out-of-range labels silently
    # become all-zero rows here whereas torch scatter_ would raise.
    kernel = functools.partial(
        _cl_dice_kernel, c_tile=c_tile, h_true=H, w_true=W, eps=float(eps),
        n_outer=-(-(H + W + 2) // unroll), unroll=unroll)

    dc = pl.pallas_call(
        kernel,
        out_shape=jax.ShapeDtypeStruct((B * n_cb * 8, 1), jnp.float32),
        grid=(B, n_cb),
        in_specs=[pl.BlockSpec((1, c_tile, Hp, Wp), lambda b, cb: (b, cb, 0, 0)),
                  pl.BlockSpec((1, Hp, Wp), lambda b, cb: (b, 0, 0))],
        out_specs=pl.BlockSpec((8, 1), lambda b, cb: (b * n_cb + cb, 0)),
        compiler_params=pltpu.CompilerParams(
            dimension_semantics=("parallel", "parallel"),
            vmem_limit_bytes=vmem_limit),
        # TODO(synk): pipeline_mode=pl.Buffered(1) on the x input would free the second
        #             pipeline buffer (the kernel makes O(H+W) passes per block so even a
        #             single-buffered DMA hides); the budget above conservatively counts
        #             the double buffer instead.
    )(x_f, y_i)

    dc = dc.reshape(B, n_cb, 8)[:, :, :c_tile].reshape(B, C_pad)[:, :C]
    # batch_dice=False, do_bg=True  =>  loss = -dc.mean() over all (B, C) channels.
    return -jnp.mean(dc)


# ----------------------------------------------------- pure-JAX reference (for check) --

_BIG = 1e30


def _ref_shift(a, axis, delta, fill):
    bc, h, w = a.shape
    if axis == 1:
        pad = jnp.full((bc, 1, w), fill, a.dtype)
        if delta == 1:
            return jnp.concatenate([pad, a[:, : h - 1, :]], axis=1)
        return jnp.concatenate([a[:, 1:, :], pad], axis=1)
    pad = jnp.full((bc, h, 1), fill, a.dtype)
    if delta == 1:
        return jnp.concatenate([pad, a[:, :, : w - 1]], axis=2)
    return jnp.concatenate([a[:, :, 1:], pad], axis=2)


def _ref_minpool(a):
    p1 = jnp.minimum(jnp.minimum(_ref_shift(a, 1, 1, _BIG), a), _ref_shift(a, 1, -1, _BIG))
    p2 = jnp.minimum(jnp.minimum(_ref_shift(a, 2, 1, _BIG), a), _ref_shift(a, 2, -1, _BIG))
    return jnp.minimum(p1, p2)


def _ref_maxpool(a):
    m = jnp.maximum(jnp.maximum(_ref_shift(a, 1, 1, -_BIG), a), _ref_shift(a, 1, -1, -_BIG))
    return jnp.maximum(jnp.maximum(_ref_shift(m, 2, 1, -_BIG), m), _ref_shift(m, 2, -1, -_BIG))


def _ref_centerline(label, n_iters):
    lp = _ref_maxpool(_ref_minpool(label))
    cl = jnp.maximum(label - lp, 0.0)
    lab = _ref_minpool(label)

    def body(_, carry):
        lab_c, c = carry
        nxt = _ref_minpool(lab_c)
        lp_i = _ref_maxpool(nxt)
        c = c + jnp.maximum((1.0 - c) * jnp.maximum(lab_c - lp_i, 0.0), 0.0)
        return nxt, c

    _, cl = lax.fori_loop(0, n_iters, body, (lab, cl))
    return _ref_minpool(_ref_maxpool(cl))


def _reference_loss(x, y, eps=1e-8, n_iters=None):
    B, C, H, W = x.shape
    if n_iters is None:
        n_iters = H + W + 2
    y1h = jax.nn.one_hot(y, C, axis=1, dtype=jnp.float32)
    xf = x.astype(jnp.float32).reshape(B * C, H, W)
    yf = y1h.reshape(B * C, H, W)
    cl_pred = _ref_centerline(xf, n_iters)
    cl_lab = _ref_centerline(yf, n_iters)

    def s(v):
        return jnp.sum(v, axis=(1, 2))

    a = (s(cl_pred * yf) + eps) / (s(cl_pred) + eps)
    b = (s(cl_lab * xf) + eps) / (s(cl_lab) + eps)
    dc = 2.0 * a * b / (a + b)
    return -jnp.mean(dc)


if __name__ == "__main__":
    key = jax.random.PRNGKey(0)
    k1, k2 = jax.random.split(key)
    B, C, H, W = 2, 4, 16, 16
    # Soft, non-negative prediction map with exact zeros (so the reference while-loop
    # terminates; apply_nonlin=None path) + integer class labels.
    x = jnp.clip(jax.random.normal(k1, (B, C, H, W), dtype=jnp.float32), 0.0, 1.0)
    y = jax.random.randint(k2, (B, H, W), 0, C)

    unroll = 4
    loss = jax.block_until_ready(soft_cl_dice_loss(x, y, unroll=unroll))
    n_iters = -(-(H + W + 2) // unroll) * unroll   # match the kernel's worst-case cap
    ref = jax.block_until_ready(_reference_loss(x, y, n_iters=n_iters))

    if not bool(jnp.isfinite(loss)):
        raise RuntimeError("non-finite loss")
    if not bool(jnp.allclose(loss, ref, rtol=2e-5, atol=2e-5)):
        raise RuntimeError(f"mismatch: kernel={float(loss)} reference={float(ref)}")
    print("KERNEL_OK")
</pallas_src>

<mosaic_0001>
module attributes {stable_mosaic.version = 11 : i64} {
  func.func @_cl_dice_kernel(%arg0: i32, %arg1: i32, %arg2: memref<1x4x16x128xf32, #tpu.memory_space<vmem>>, %arg3: memref<1x16x128xi32, #tpu.memory_space<vmem>>, %arg4: memref<8x1xf32, #tpu.memory_space<vmem>>) attributes {dimension_semantics = [#tpu.dimension_semantics<parallel>, #tpu.dimension_semantics<parallel>], iteration_bounds = array<i64: 2, 1>, scalar_prefetch = 0 : i64, scratch_operands = 0 : i64, tpu.core_type = #tpu.core_type<tc>, window_params = [{transform_indices = @transform_0, window_bounds = array<i64: 1, 4, 16, 128>}, {transform_indices = @transform_1, window_bounds = array<i64: 1, 16, 128>}, {transform_indices = @transform_2, window_bounds = array<i64: 8, 1>}]} {
    %c0 = arith.constant 0 : index
    %c0_0 = arith.constant 0 : index
    %c0_1 = arith.constant 0 : index
    %c0_2 = arith.constant 0 : index
    %0 = vector.load %arg2[%c0, %c0_0, %c0_1, %c0_2] : memref<1x4x16x128xf32, #tpu.memory_space<vmem>>, vector<1x4x16x128xf32>
    %1 = vector.shape_cast %0 : vector<1x4x16x128xf32> to vector<4x16x128xf32>
    %c0_3 = arith.constant 0 : index
    %c0_4 = arith.constant 0 : index
    %c0_5 = arith.constant 0 : index
    %2 = vector.load %arg3[%c0_3, %c0_4, %c0_5] : memref<1x16x128xi32, #tpu.memory_space<vmem>>, vector<1x16x128xi32>
    %3 = tpu.iota {dimensions = array<i32: 0>} : vector<16x128xi32>
    %4 = vector.shape_cast %3 : vector<16x128xi32> to vector<1x16x128xi32>
    %5 = tpu.iota {dimensions = array<i32: 1>} : vector<16x128xi32>
    %6 = vector.shape_cast %5 : vector<16x128xi32> to vector<1x16x128xi32>
    %c0_i32 = arith.constant 0 : i32
    %7 = vector.broadcast %c0_i32 : i32 to vector<1x16x128xi32>
    %8 = arith.cmpi eq, %4, %7 : vector<1x16x128xi32>
    %c15_i32 = arith.constant 15 : i32
    %9 = vector.broadcast %c15_i32 : i32 to vector<1x16x128xi32>
    %10 = arith.cmpi eq, %4, %9 : vector<1x16x128xi32>
    %c0_i32_6 = arith.constant 0 : i32
    %11 = vector.broadcast %c0_i32_6 : i32 to vector<1x16x128xi32>
    %12 = arith.cmpi eq, %6, %11 : vector<1x16x128xi32>
    %c15_i32_7 = arith.constant 15 : i32
    %13 = vector.broadcast %c15_i32_7 : i32 to vector<1x16x128xi32>
    %14 = arith.cmpi eq, %6, %13 : vector<1x16x128xi32>
    %c16_i32 = arith.constant 16 : i32
    %15 = vector.broadcast %c16_i32 : i32 to vector<1x16x128xi32>
    %16 = arith.cmpi slt, %4, %15 : vector<1x16x128xi32>
    %c16_i32_8 = arith.constant 16 : i32
    %17 = vector.broadcast %c16_i32_8 : i32 to vector<1x16x128xi32>
    %18 = arith.cmpi slt, %6, %17 : vector<1x16x128xi32>
    %19 = arith.andi %16, %18 : vector<1x16x128xi1>
    %20 = arith.extui %19 : vector<1x16x128xi1> to vector<1x16x128xi32>
    %21 = arith.sitofp %20 : vector<1x16x128xi32> to vector<1x16x128xf32>
    %c4_i32 = arith.constant 4 : i32
    %22 = arith.muli %arg1, %c4_i32 : i32
    %c0_i32_9 = arith.constant 0 : i32
    %23 = arith.addi %22, %c0_i32_9 : i32
    %24 = vector.broadcast %23 : i32 to vector<1x16x128xi32>
    %25 = arith.cmpi eq, %2, %24 : vector<1x16x128xi32>
    %26 = arith.extui %25 : vector<1x16x128xi1> to vector<1x16x128xi32>
    %27 = arith.sitofp %26 : vector<1x16x128xi32> to vector<1x16x128xf32>
    %c1_i32 = arith.constant 1 : i32
    %28 = arith.addi %22, %c1_i32 : i32
    %29 = vector.broadcast %28 : i32 to vector<1x16x128xi32>
    %30 = arith.cmpi eq, %2, %29 : vector<1x16x128xi32>
    %31 = arith.extui %30 : vector<1x16x128xi1> to vector<1x16x128xi32>
    %32 = arith.sitofp %31 : vector<1x16x128xi32> to vector<1x16x128xf32>
    %c2_i32 = arith.constant 2 : i32
    %33 = arith.addi %22, %c2_i32 : i32
    %34 = vector.broadcast %33 : i32 to vector<1x16x128xi32>
    %35 = arith.cmpi eq, %2, %34 : vector<1x16x128xi32>
    %36 = arith.extui %35 : vector<1x16x128xi1> to vector<1x16x128xi32>
    %37 = arith.sitofp %36 : vector<1x16x128xi32> to vector<1x16x128xf32>
    %c3_i32 = arith.constant 3 : i32
    %38 = arith.addi %22, %c3_i32 : i32
    %39 = vector.broadcast %38 : i32 to vector<1x16x128xi32>
    %40 = arith.cmpi eq, %2, %39 : vector<1x16x128xi32>
    %41 = arith.extui %40 : vector<1x16x128xi1> to vector<1x16x128xi32>
    %42 = arith.sitofp %41 : vector<1x16x128xi32> to vector<1x16x128xf32>
    %43 = tpu.concatenate %1, %27, %32, %37, %42 in 0 : vector<4x16x128xf32>, vector<1x16x128xf32>, vector<1x16x128xf32>, vector<1x16x128xf32>, vector<1x16x128xf32> -> vector<8x16x128xf32>
    %c1_i32_10 = arith.constant 1 : i32
    %44 = tpu.dynamic_rotate %43 by %c1_i32_10 dim 1 : vector<8x16x128xf32>, i32 -> vector<8x16x128xf32>
    %45 = vector.shape_cast %8 : vector<1x16x128xi1> to vector<1x16x128xi1>
    %46 = vector.broadcast %45 : vector<1x16x128xi1> to vector<8x16x128xi1>
    %47 = arith.select %46, %43, %44 : vector<8x16x128xi1>, vector<8x16x128xf32>
    %48 = arith.minimumf %47, %43 : vector<8x16x128xf32>
    %c15_i32_11 = arith.constant 15 : i32
    %49 = tpu.dynamic_rotate %43 by %c15_i32_11 dim 1 : vector<8x16x128xf32>, i32 -> vector<8x16x128xf32>
    %50 = vector.shape_cast %10 : vector<1x16x128xi1> to vector<1x16x128xi1>
    %51 = vector.broadcast %50 : vector<1x16x128xi1> to vector<8x16x128xi1>
    %52 = arith.select %51, %43, %49 : vector<8x16x128xi1>, vector<8x16x128xf32>
    %53 = arith.minimumf %48, %52 : vector<8x16x128xf32>
    %c1_i32_12 = arith.constant 1 : i32
    %54 = tpu.dynamic_rotate %43 by %c1_i32_12 dim 2 : vector<8x16x128xf32>, i32 -> vector<8x16x128xf32>
    %55 = vector.shape_cast %12 : vector<1x16x128xi1> to vector<1x16x128xi1>
    %56 = vector.broadcast %55 : vector<1x16x128xi1> to vector<8x16x128xi1>
    %57 = arith.select %56, %43, %54 : vector<8x16x128xi1>, vector<8x16x128xf32>
    %58 = arith.minimumf %57, %43 : vector<8x16x128xf32>
    %c127_i32 = arith.constant 127 : i32
    %59 = tpu.dynamic_rotate %43 by %c127_i32 dim 2 : vector<8x16x128xf32>, i32 -> vector<8x16x128xf32>
    %60 = vector.shape_cast %14 : vector<1x16x128xi1> to vector<1x16x128xi1>
    %61 = vector.broadcast %60 : vector<1x16x128xi1> to vector<8x16x128xi1>
    %62 = arith.select %61, %43, %59 : vector<8x16x128xi1>, vector<8x16x128xf32>
    %63 = arith.minimumf %58, %62 : vector<8x16x128xf32>
    %64 = arith.minimumf %53, %63 : vector<8x16x128xf32>
    %c1_i32_13 = arith.constant 1 : i32
    %65 = tpu.dynamic_rotate %64 by %c1_i32_13 dim 1 : vector<8x16x128xf32>, i32 -> vector<8x16x128xf32>
    %66 = vector.shape_cast %8 : vector<1x16x128xi1> to vector<1x16x128xi1>
    %67 = vector.broadcast %66 : vector<1x16x128xi1> to vector<8x16x128xi1>
    %68 = arith.select %67, %64, %65 : vector<8x16x128xi1>, vector<8x16x128xf32>
    %69 = arith.maximumf %68, %64 : vector<8x16x128xf32>
    %c15_i32_14 = arith.constant 15 : i32
    %70 = tpu.dynamic_rotate %64 by %c15_i32_14 dim 1 : vector<8x16x128xf32>, i32 -> vector<8x16x128xf32>
    %71 = vector.shape_cast %10 : vector<1x16x128xi1> to vector<1x16x128xi1>
    %72 = vector.broadcast %71 : vector<1x16x128xi1> to vector<8x16x128xi1>
    %73 = arith.select %72, %64, %70 : vector<8x16x128xi1>, vector<8x16x128xf32>
    %74 = arith.maximumf %69, %73 : vector<8x16x128xf32>
    %c1_i32_15 = arith.constant 1 : i32
    %75 = tpu.dynamic_rotate %74 by %c1_i32_15 dim 2 : vector<8x16x128xf32>, i32 -> vector<8x16x128xf32>
    %76 = vector.shape_cast %12 : vector<1x16x128xi1> to vector<1x16x128xi1>
    %77 = vector.broadcast %76 : vector<1x16x128xi1> to vector<8x16x128xi1>
    %78 = arith.select %77, %74, %75 : vector<8x16x128xi1>, vector<8x16x128xf32>
    %79 = arith.maximumf %78, %74 : vector<8x16x128xf32>
    %c127_i32_16 = arith.constant 127 : i32
    %80 = tpu.dynamic_rotate %74 by %c127_i32_16 dim 2 : vector<8x16x128xf32>, i32 -> vector<8x16x128xf32>
    %81 = vector.shape_cast %14 : vector<1x16x128xi1> to vector<1x16x128xi1>
    %82 = vector.broadcast %81 : vector<1x16x128xi1> to vector<8x16x128xi1>
    %83 = arith.select %82, %74, %80 : vector<8x16x128xi1>, vector<8x16x128xf32>
    %84 = arith.maximumf %79, %83 : vector<8x16x128xf32>
    %85 = arith.subf %43, %84 : vector<8x16x128xf32>
    %cst = arith.constant 0.000000e+00 : f32
    %86 = vector.broadcast %cst : f32 to vector<8x16x128xf32>
    %87 = arith.maximumf %85, %86 : vector<8x16x128xf32>
    %88 = math.absf %64 : vector<8x16x128xf32>
    %89 = vector.broadcast %21 : vector<1x16x128xf32> to vector<8x16x128xf32>
    %90 = arith.mulf %88, %89 : vector<8x16x128xf32>
    %91 = vector.shape_cast %90 : vector<8x16x128xf32> to vector<1x8x16x128xf32>
    %cst_17 = arith.constant dense<0.000000e+00> : vector<1xf32>
    %92 = vector.multi_reduction <add>, %91, %cst_17 [1, 2, 3] : vector<1x8x16x128xf32> to vector<1xf32>
    %93 = vector.shape_cast %92 : vector<1xf32> to vector<1x1x1x1xf32>
    %94 = vector.extract %93[0, 0, 0, 0] : f32 from vector<1x1x1x1xf32>
    %c0_i32_18 = arith.constant 0 : i32
    %95:4 = scf.while (%arg5 = %64, %arg6 = %87, %arg7 = %c0_i32_18, %arg8 = %94) : (vector<8x16x128xf32>, vector<8x16x128xf32>, i32, f32) -> (vector<8x16x128xf32>, vector<8x16x128xf32>, i32, f32) {
      %cst_43 = arith.constant 0.000000e+00 : f32
      %174 = arith.cmpf one, %arg8, %cst_43 : f32
      %c9_i32 = arith.constant 9 : i32
      %175 = arith.cmpi slt, %arg7, %c9_i32 : i32
      %176 = arith.andi %174, %175 : i1
      scf.condition(%176) %arg5, %arg6, %arg7, %arg8 : vector<8x16x128xf32>, vector<8x16x128xf32>, i32, f32
    } do {
    ^bb0(%arg5: vector<8x16x128xf32>, %arg6: vector<8x16x128xf32>, %arg7: i32, %arg8: f32):
      %c1_i32_43 = arith.constant 1 : i32
      %174 = tpu.dynamic_rotate %arg5 by %c1_i32_43 dim 1 : vector<8x16x128xf32>, i32 -> vector<8x16x128xf32>
      %175 = vector.shape_cast %8 : vector<1x16x128xi1> to vector<1x16x128xi1>
      %176 = vector.broadcast %175 : vector<1x16x128xi1> to vector<8x16x128xi1>
      %177 = arith.select %176, %arg5, %174 : vector<8x16x128xi1>, vector<8x16x128xf32>
      %178 = arith.minimumf %177, %arg5 : vector<8x16x128xf32>
      %c15_i32_44 = arith.constant 15 : i32
      %179 = tpu.dynamic_rotate %arg5 by %c15_i32_44 dim 1 : vector<8x16x128xf32>, i32 -> vector<8x16x128xf32>
      %180 = vector.shape_cast %10 : vector<1x16x128xi1> to vector<1x16x128xi1>
      %181 = vector.broadcast %180 : vector<1x16x128xi1> to vector<8x16x128xi1>
      %182 = arith.select %181, %arg5, %179 : vector<8x16x128xi1>, vector<8x16x128xf32>
      %183 = arith.minimumf %178, %182 : vector<8x16x128xf32>
      %c1_i32_45 = arith.constant 1 : i32
      %184 = tpu.dynamic_rotate %arg5 by %c1_i32_45 dim 2 : vector<8x16x128xf32>, i32 -> vector<8x16x128xf32>
      %185 = vector.shape_cast %12 : vector<1x16x128xi1> to vector<1x16x128xi1>
      %186 = vector.broadcast %185 : vector<1x16x128xi1> to vector<8x16x128xi1>
      %187 = arith.select %186, %arg5, %184 : vector<8x16x128xi1>, vector<8x16x128xf32>
      %188 = arith.minimumf %187, %arg5 : vector<8x16x128xf32>
      %c127_i32_46 = arith.constant 127 : i32
      %189 = tpu.dynamic_rotate %arg5 by %c127_i32_46 dim 2 : vector<8x16x128xf32>, i32 -> vector<8x16x128xf32>
      %190 = vector.shape_cast %14 : vector<1x16x128xi1> to vector<1x16x128xi1>
      %191 = vector.broadcast %190 : vector<1x16x128xi1> to vector<8x16x128xi1>
      %192 = arith.select %191, %arg5, %189 : vector<8x16x128xi1>, vector<8x16x128xf32>
      %193 = arith.minimumf %188, %192 : vector<8x16x128xf32>
      %194 = arith.minimumf %183, %193 : vector<8x16x128xf32>
      %c1_i32_47 = arith.constant 1 : i32
      %195 = tpu.dynamic_rotate %194 by %c1_i32_47 dim 1 : vector<8x16x128xf32>, i32 -> vector<8x16x128xf32>
      %196 = vector.shape_cast %8 : vector<1x16x128xi1> to vector<1x16x128xi1>
      %197 = vector.broadcast %196 : vector<1x16x128xi1> to vector<8x16x128xi1>
      %198 = arith.select %197, %194, %195 : vector<8x16x128xi1>, vector<8x16x128xf32>
      %199 = arith.maximumf %198, %194 : vector<8x16x128xf32>
      %c15_i32_48 = arith.constant 15 : i32
      %200 = tpu.dynamic_rotate %194 by %c15_i32_48 dim 1 : vector<8x16x128xf32>, i32 -> vector<8x16x128xf32>
      %201 = vector.shape_cast %10 : vector<1x16x128xi1> to vector<1x16x128xi1>
      %202 = vector.broadcast %201 : vector<1x16x128xi1> to vector<8x16x128xi1>
      %203 = arith.select %202, %194, %200 : vector<8x16x128xi1>, vector<8x16x128xf32>
      %204 = arith.maximumf %199, %203 : vector<8x16x128xf32>
      %c1_i32_49 = arith.constant 1 : i32
      %205 = tpu.dynamic_rotate %204 by %c1_i32_49 dim 2 : vector<8x16x128xf32>, i32 -> vector<8x16x128xf32>
      %206 = vector.shape_cast %12 : vector<1x16x128xi1> to vector<1x16x128xi1>
      %207 = vector.broadcast %206 : vector<1x16x128xi1> to vector<8x16x128xi1>
      %208 = arith.select %207, %204, %205 : vector<8x16x128xi1>, vector<8x16x128xf32>
      %209 = arith.maximumf %208, %204 : vector<8x16x128xf32>
      %c127_i32_50 = arith.constant 127 : i32
      %210 = tpu.dynamic_rotate %204 by %c127_i32_50 dim 2 : vector<8x16x128xf32>, i32 -> vector<8x16x128xf32>
      %211 = vector.shape_cast %14 : vector<1x16x128xi1> to vector<1x16x128xi1>
      %212 = vector.broadcast %211 : vector<1x16x128xi1> to vector<8x16x128xi1>
      %213 = arith.select %212, %204, %210 : vector<8x16x128xi1>, vector<8x16x128xf32>
      %214 = arith.maximumf %209, %213 : vector<8x16x128xf32>
      %cst_51 = arith.constant 1.000000e+00 : f32
      %215 = vector.broadcast %cst_51 : f32 to vector<8x16x128xf32>
      %216 = arith.subf %215, %arg6 : vector<8x16x128xf32>
      %217 = arith.subf %arg5, %214 : vector<8x16x128xf32>
      %cst_52 = arith.constant 0.000000e+00 : f32
      %218 = vector.broadcast %cst_52 : f32 to vector<8x16x128xf32>
      %219 = arith.maximumf %217, %218 : vector<8x16x128xf32>
      %220 = arith.mulf %216, %219 : vector<8x16x128xf32>
      %cst_53 = arith.constant 0.000000e+00 : f32
      %221 = vector.broadcast %cst_53 : f32 to vector<8x16x128xf32>
      %222 = arith.maximumf %220, %221 : vector<8x16x128xf32>
      %223 = arith.addf %arg6, %222 : vector<8x16x128xf32>
      %c1_i32_54 = arith.constant 1 : i32
      %224 = tpu.dynamic_rotate %194 by %c1_i32_54 dim 1 : vector<8x16x128xf32>, i32 -> vector<8x16x128xf32>
      %225 = vector.shape_cast %8 : vector<1x16x128xi1> to vector<1x16x128xi1>
      %226 = vector.broadcast %225 : vector<1x16x128xi1> to vector<8x16x128xi1>
      %227 = arith.select %226, %194, %224 : vector<8x16x128xi1>, vector<8x16x128xf32>
      %228 = arith.minimumf %227, %194 : vector<8x16x128xf32>
      %c15_i32_55 = arith.constant 15 : i32
      %229 = tpu.dynamic_rotate %194 by %c15_i32_55 dim 1 : vector<8x16x128xf32>, i32 -> vector<8x16x128xf32>
      %230 = vector.shape_cast %10 : vector<1x16x128xi1> to vector<1x16x128xi1>
      %231 = vector.broadcast %230 : vector<1x16x128xi1> to vector<8x16x128xi1>
      %232 = arith.select %231, %194, %229 : vector<8x16x128xi1>, vector<8x16x128xf32>
      %233 = arith.minimumf %228, %232 : vector<8x16x128xf32>
      %c1_i32_56 = arith.constant 1 : i32
      %234 = tpu.dynamic_rotate %194 by %c1_i32_56 dim 2 : vector<8x16x128xf32>, i32 -> vector<8x16x128xf32>
      %235 = vector.shape_cast %12 : vector<1x16x128xi1> to vector<1x16x128xi1>
      %236 = vector.broadcast %235 : vector<1x16x128xi1> to vector<8x16x128xi1>
      %237 = arith.select %236, %194, %234 : vector<8x16x128xi1>, vector<8x16x128xf32>
      %238 = arith.minimumf %237, %194 : vector<8x16x128xf32>
      %c127_i32_57 = arith.constant 127 : i32
      %239 = tpu.dynamic_rotate %194 by %c127_i32_57 dim 2 : vector<8x16x128xf32>, i32 -> vector<8x16x128xf32>
      %240 = vector.shape_cast %14 : vector<1x16x128xi1> to vector<1x16x128xi1>
      %241 = vector.broadcast %240 : vector<1x16x128xi1> to vector<8x16x128xi1>
      %242 = arith.select %241, %194, %239 : vector<8x16x128xi1>, vector<8x16x128xf32>
      %243 = arith.minimumf %238, %242 : vector<8x16x128xf32>
      %244 = arith.minimumf %233, %243 : vector<8x16x128xf32>
      %c1_i32_58 = arith.constant 1 : i32
      %245 = tpu.dynamic_rotate %244 by %c1_i32_58 dim 1 : vector<8x16x128xf32>, i32 -> vector<8x16x128xf32>
      %246 = vector.shape_cast %8 : vector<1x16x128xi1> to vector<1x16x128xi1>
      %247 = vector.broadcast %246 : vector<1x16x128xi1> to vector<8x16x128xi1>
      %248 = arith.select %247, %244, %245 : vector<8x16x128xi1>, vector<8x16x128xf32>
      %249 = arith.maximumf %248, %244 : vector<8x16x128xf32>
      %c15_i32_59 = arith.constant 15 : i32
      %250 = tpu.dynamic_rotate %244 by %c15_i32_59 dim 1 : vector<8x16x128xf32>, i32 -> vector<8x16x128xf32>
      %251 = vector.shape_cast %10 : vector<1x16x128xi1> to vector<1x16x128xi1>
      %252 = vector.broadcast %251 : vector<1x16x128xi1> to vector<8x16x128xi1>
      %253 = arith.select %252, %244, %250 : vector<8x16x128xi1>, vector<8x16x128xf32>
      %254 = arith.maximumf %249, %253 : vector<8x16x128xf32>
      %c1_i32_60 = arith.constant 1 : i32
      %255 = tpu.dynamic_rotate %254 by %c1_i32_60 dim 2 : vector<8x16x128xf32>, i32 -> vector<8x16x128xf32>
      %256 = vector.shape_cast %12 : vector<1x16x128xi1> to vector<1x16x128xi1>
      %257 = vector.broadcast %256 : vector<1x16x128xi1> to vector<8x16x128xi1>
      %258 = arith.select %257, %254, %255 : vector<8x16x128xi1>, vector<8x16x128xf32>
      %259 = arith.maximumf %258, %254 : vector<8x16x128xf32>
      %c127_i32_61 = arith.constant 127 : i32
      %260 = tpu.dynamic_rotate %254 by %c127_i32_61 dim 2 : vector<8x16x128xf32>, i32 -> vector<8x16x128xf32>
      %261 = vector.shape_cast %14 : vector<1x16x128xi1> to vector<1x16x128xi1>
      %262 = vector.broadcast %261 : vector<1x16x128xi1> to vector<8x16x128xi1>
      %263 = arith.select %262, %254, %260 : vector<8x16x128xi1>, vector<8x16x128xf32>
      %264 = arith.maximumf %259, %263 : vector<8x16x128xf32>
      %cst_62 = arith.constant 1.000000e+00 : f32
      %265 = vector.broadcast %cst_62 : f32 to vector<8x16x128xf32>
      %266 = arith.subf %265, %223 : vector<8x16x128xf32>
      %267 = arith.subf %194, %264 : vector<8x16x128xf32>
      %cst_63 = arith.constant 0.000000e+00 : f32
      %268 = vector.broadcast %cst_63 : f32 to vector<8x16x128xf32>
      %269 = arith.maximumf %267, %268 : vector<8x16x128xf32>
      %270 = arith.mulf %266, %269 : vector<8x16x128xf32>
      %cst_64 = arith.constant 0.000000e+00 : f32
      %271 = vector.broadcast %cst_64 : f32 to vector<8x16x128xf32>
      %272 = arith.maximumf %270, %271 : vector<8x16x128xf32>
      %273 = arith.addf %223, %272 : vector<8x16x128xf32>
      %c1_i32_65 = arith.constant 1 : i32
      %274 = tpu.dynamic_rotate %244 by %c1_i32_65 dim 1 : vector<8x16x128xf32>, i32 -> vector<8x16x128xf32>
      %275 = vector.shape_cast %8 : vector<1x16x128xi1> to vector<1x16x128xi1>
      %276 = vector.broadcast %275 : vector<1x16x128xi1> to vector<8x16x128xi1>
      %277 = arith.select %276, %244, %274 : vector<8x16x128xi1>, vector<8x16x128xf32>
      %278 = arith.minimumf %277, %244 : vector<8x16x128xf32>
      %c15_i32_66 = arith.constant 15 : i32
      %279 = tpu.dynamic_rotate %244 by %c15_i32_66 dim 1 : vector<8x16x128xf32>, i32 -> vector<8x16x128xf32>
      %280 = vector.shape_cast %10 : vector<1x16x128xi1> to vector<1x16x128xi1>
      %281 = vector.broadcast %280 : vector<1x16x128xi1> to vector<8x16x128xi1>
      %282 = arith.select %281, %244, %279 : vector<8x16x128xi1>, vector<8x16x128xf32>
      %283 = arith.minimumf %278, %282 : vector<8x16x128xf32>
      %c1_i32_67 = arith.constant 1 : i32
      %284 = tpu.dynamic_rotate %244 by %c1_i32_67 dim 2 : vector<8x16x128xf32>, i32 -> vector<8x16x128xf32>
      %285 = vector.shape_cast %12 : vector<1x16x128xi1> to vector<1x16x128xi1>
      %286 = vector.broadcast %285 : vector<1x16x128xi1> to vector<8x16x128xi1>
      %287 = arith.select %286, %244, %284 : vector<8x16x128xi1>, vector<8x16x128xf32>
      %288 = arith.minimumf %287, %244 : vector<8x16x128xf32>
      %c127_i32_68 = arith.constant 127 : i32
      %289 = tpu.dynamic_rotate %244 by %c127_i32_68 dim 2 : vector<8x16x128xf32>, i32 -> vector<8x16x128xf32>
      %290 = vector.shape_cast %14 : vector<1x16x128xi1> to vector<1x16x128xi1>
      %291 = vector.broadcast %290 : vector<1x16x128xi1> to vector<8x16x128xi1>
      %292 = arith.select %291, %244, %289 : vector<8x16x128xi1>, vector<8x16x128xf32>
      %293 = arith.minimumf %288, %292 : vector<8x16x128xf32>
      %294 = arith.minimumf %283, %293 : vector<8x16x128xf32>
      %c1_i32_69 = arith.constant 1 : i32
      %295 = tpu.dynamic_rotate %294 by %c1_i32_69 dim 1 : vector<8x16x128xf32>, i32 -> vector<8x16x128xf32>
      %296 = vector.shape_cast %8 : vector<1x16x128xi1> to vector<1x16x128xi1>
      %297 = vector.broadcast %296 : vector<1x16x128xi1> to vector<8x16x128xi1>
      %298 = arith.select %297, %294, %295 : vector<8x16x128xi1>, vector<8x16x128xf32>
      %299 = arith.maximumf %298, %294 : vector<8x16x128xf32>
      %c15_i32_70 = arith.constant 15 : i32
      %300 = tpu.dynamic_rotate %294 by %c15_i32_70 dim 1 : vector<8x16x128xf32>, i32 -> vector<8x16x128xf32>
      %301 = vector.shape_cast %10 : vector<1x16x128xi1> to vector<1x16x128xi1>
      %302 = vector.broadcast %301 : vector<1x16x128xi1> to vector<8x16x128xi1>
      %303 = arith.select %302, %294, %300 : vector<8x16x128xi1>, vector<8x16x128xf32>
      %304 = arith.maximumf %299, %303 : vector<8x16x128xf32>
      %c1_i32_71 = arith.constant 1 : i32
      %305 = tpu.dynamic_rotate %304 by %c1_i32_71 dim 2 : vector<8x16x128xf32>, i32 -> vector<8x16x128xf32>
      %306 = vector.shape_cast %12 : vector<1x16x128xi1> to vector<1x16x128xi1>
      %307 = vector.broadcast %306 : vector<1x16x128xi1> to vector<8x16x128xi1>
      %308 = arith.select %307, %304, %305 : vector<8x16x128xi1>, vector<8x16x128xf32>
      %309 = arith.maximumf %308, %304 : vector<8x16x128xf32>
      %c127_i32_72 = arith.constant 127 : i32
      %310 = tpu.dynamic_rotate %304 by %c127_i32_72 dim 2 : vector<8x16x128xf32>, i32 -> vector<8x16x128xf32>
      %311 = vector.shape_cast %14 : vector<1x16x128xi1> to vector<1x16x128xi1>
      %312 = vector.broadcast %311 : vector<1x16x128xi1> to vector<8x16x128xi1>
      %313 = arith.select %312, %304, %310 : vector<8x16x128xi1>, vector<8x16x128xf32>
      %314 = arith.maximumf %309, %313 : vector<8x16x128xf32>
      %cst_73 = arith.constant 1.000000e+00 : f32
      %315 = vector.broadcast %cst_73 : f32 to vector<8x16x128xf32>
      %316 = arith.subf %315, %273 : vector<8x16x128xf32>
      %317 = arith.subf %244, %314 : vector<8x16x128xf32>
      %cst_74 = arith.constant 0.000000e+00 : f32
      %318 = vector.broadcast %cst_74 : f32 to vector<8x16x128xf32>
      %319 = arith.maximumf %317, %318 : vector<8x16x128xf32>
      %320 = arith.mulf %316, %319 : vector<8x16x128xf32>
      %cst_75 = arith.constant 0.000000e+00 : f32
      %321 = vector.broadcast %cst_75 : f32 to vector<8x16x128xf32>
      %322 = arith.maximumf %320, %321 : vector<8x16x128xf32>
      %323 = arith.addf %273, %322 : vector<8x16x128xf32>
      %c1_i32_76 = arith.constant 1 : i32
      %324 = tpu.dynamic_rotate %294 by %c1_i32_76 dim 1 : vector<8x16x128xf32>, i32 -> vector<8x16x128xf32>
      %325 = vector.shape_cast %8 : vector<1x16x128xi1> to vector<1x16x128xi1>
      %326 = vector.broadcast %325 : vector<1x16x128xi1> to vector<8x16x128xi1>
      %327 = arith.select %326, %294, %324 : vector<8x16x128xi1>, vector<8x16x128xf32>
      %328 = arith.minimumf %327, %294 : vector<8x16x128xf32>
      %c15_i32_77 = arith.constant 15 : i32
      %329 = tpu.dynamic_rotate %294 by %c15_i32_77 dim 1 : vector<8x16x128xf32>, i32 -> vector<8x16x128xf32>
      %330 = vector.shape_cast %10 : vector<1x16x128xi1> to vector<1x16x128xi1>
      %331 = vector.broadcast %330 : vector<1x16x128xi1> to vector<8x16x128xi1>
      %332 = arith.select %331, %294, %329 : vector<8x16x128xi1>, vector<8x16x128xf32>
      %333 = arith.minimumf %328, %332 : vector<8x16x128xf32>
      %c1_i32_78 = arith.constant 1 : i32
      %334 = tpu.dynamic_rotate %294 by %c1_i32_78 dim 2 : vector<8x16x128xf32>, i32 -> vector<8x16x128xf32>
      %335 = vector.shape_cast %12 : vector<1x16x128xi1> to vector<1x16x128xi1>
      %336 = vector.broadcast %335 : vector<1x16x128xi1> to vector<8x16x128xi1>
      %337 = arith.select %336, %294, %334 : vector<8x16x128xi1>, vector<8x16x128xf32>
      %338 = arith.minimumf %337, %294 : vector<8x16x128xf32>
      %c127_i32_79 = arith.constant 127 : i32
      %339 = tpu.dynamic_rotate %294 by %c127_i32_79 dim 2 : vector<8x16x128xf32>, i32 -> vector<8x16x128xf32>
      %340 = vector.shape_cast %14 : vector<1x16x128xi1> to vector<1x16x128xi1>
      %341 = vector.broadcast %340 : vector<1x16x128xi1> to vector<8x16x128xi1>
      %342 = arith.select %341, %294, %339 : vector<8x16x128xi1>, vector<8x16x128xf32>
      %343 = arith.minimumf %338, %342 : vector<8x16x128xf32>
      %344 = arith.minimumf %333, %343 : vector<8x16x128xf32>
      %c1_i32_80 = arith.constant 1 : i32
      %345 = tpu.dynamic_rotate %344 by %c1_i32_80 dim 1 : vector<8x16x128xf32>, i32 -> vector<8x16x128xf32>
      %346 = vector.shape_cast %8 : vector<1x16x128xi1> to vector<1x16x128xi1>
      %347 = vector.broadcast %346 : vector<1x16x128xi1> to vector<8x16x128xi1>
      %348 = arith.select %347, %344, %345 : vector<8x16x128xi1>, vector<8x16x128xf32>
      %349 = arith.maximumf %348, %344 : vector<8x16x128xf32>
      %c15_i32_81 = arith.constant 15 : i32
      %350 = tpu.dynamic_rotate %344 by %c15_i32_81 dim 1 : vector<8x16x128xf32>, i32 -> vector<8x16x128xf32>
      %351 = vector.shape_cast %10 : vector<1x16x128xi1> to vector<1x16x128xi1>
      %352 = vector.broadcast %351 : vector<1x16x128xi1> to vector<8x16x128xi1>
      %353 = arith.select %352, %344, %350 : vector<8x16x128xi1>, vector<8x16x128xf32>
      %354 = arith.maximumf %349, %353 : vector<8x16x128xf32>
      %c1_i32_82 = arith.constant 1 : i32
      %355 = tpu.dynamic_rotate %354 by %c1_i32_82 dim 2 : vector<8x16x128xf32>, i32 -> vector<8x16x128xf32>
      %356 = vector.shape_cast %12 : vector<1x16x128xi1> to vector<1x16x128xi1>
      %357 = vector.broadcast %356 : vector<1x16x128xi1> to vector<8x16x128xi1>
      %358 = arith.select %357, %354, %355 : vector<8x16x128xi1>, vector<8x16x128xf32>
      %359 = arith.maximumf %358, %354 : vector<8x16x128xf32>
      %c127_i32_83 = arith.constant 127 : i32
      %360 = tpu.dynamic_rotate %354 by %c127_i32_83 dim 2 : vector<8x16x128xf32>, i32 -> vector<8x16x128xf32>
      %361 = vector.shape_cast %14 : vector<1x16x128xi1> to vector<1x16x128xi1>
      %362 = vector.broadcast %361 : vector<1x16x128xi1> to vector<8x16x128xi1>
      %363 = arith.select %362, %354, %360 : vector<8x16x128xi1>, vector<8x16x128xf32>
      %364 = arith.maximumf %359, %363 : vector<8x16x128xf32>
      %cst_84 = arith.constant 1.000000e+00 : f32
      %365 = vector.broadcast %cst_84 : f32 to vector<8x16x128xf32>
      %366 = arith.subf %365, %323 : vector<8x16x128xf32>
      %367 = arith.subf %294, %364 : vector<8x16x128xf32>
      %cst_85 = arith.constant 0.000000e+00 : f32
      %368 = vector.broadcast %cst_85 : f32 to vector<8x16x128xf32>
      %369 = arith.maximumf %367, %368 : vector<8x16x128xf32>
      %370 = arith.mulf %366, %369 : vector<8x16x128xf32>
      %cst_86 = arith.constant 0.000000e+00 : f32
      %371 = vector.broadcast %cst_86 : f32 to vector<8x16x128xf32>
      %372 = arith.maximumf %370, %371 : vector<8x16x128xf32>
      %373 = arith.addf %323, %372 : vector<8x16x128xf32>
      %c1_i32_87 = arith.constant 1 : i32
      %374 = arith.addi %arg7, %c1_i32_87 : i32
      %375 = math.absf %344 : vector<8x16x128xf32>
      %376 = vector.broadcast %21 : vector<1x16x128xf32> to vector<8x16x128xf32>
      %377 = arith.mulf %375, %376 : vector<8x16x128xf32>
      %378 = vector.shape_cast %377 : vector<8x16x128xf32> to vector<1x8x16x128xf32>
      %cst_88 = arith.constant dense<0.000000e+00> : vector<1xf32>
      %379 = vector.multi_reduction <add>, %378, %cst_88 [1, 2, 3] : vector<1x8x16x128xf32> to vector<1xf32>
      %380 = vector.shape_cast %379 : vector<1xf32> to vector<1x1x1x1xf32>
      %381 = vector.extract %380[0, 0, 0, 0] : f32 from vector<1x1x1x1xf32>
      scf.yield %344, %373, %374, %381 : vector<8x16x128xf32>, vector<8x16x128xf32>, i32, f32
    }
    %c1_i32_19 = arith.constant 1 : i32
    %96 = tpu.dynamic_rotate %95#1 by %c1_i32_19 dim 1 : vector<8x16x128xf32>, i32 -> vector<8x16x128xf32>
    %97 = vector.shape_cast %8 : vector<1x16x128xi1> to vector<1x16x128xi1>
    %98 = vector.broadcast %97 : vector<1x16x128xi1> to vector<8x16x128xi1>
    %99 = arith.select %98, %95#1, %96 : vector<8x16x128xi1>, vector<8x16x128xf32>
    %100 = arith.maximumf %99, %95#1 : vector<8x16x128xf32>
    %c15_i32_20 = arith.constant 15 : i32
    %101 = tpu.dynamic_rotate %95#1 by %c15_i32_20 dim 1 : vector<8x16x128xf32>, i32 -> vector<8x16x128xf32>
    %102 = vector.shape_cast %10 : vector<1x16x128xi1> to vector<1x16x128xi1>
    %103 = vector.broadcast %102 : vector<1x16x128xi1> to vector<8x16x128xi1>
    %104 = arith.select %103, %95#1, %101 : vector<8x16x128xi1>, vector<8x16x128xf32>
    %105 = arith.maximumf %100, %104 : vector<8x16x128xf32>
    %c1_i32_21 = arith.constant 1 : i32
    %106 = tpu.dynamic_rotate %105 by %c1_i32_21 dim 2 : vector<8x16x128xf32>, i32 -> vector<8x16x128xf32>
    %107 = vector.shape_cast %12 : vector<1x16x128xi1> to vector<1x16x128xi1>
    %108 = vector.broadcast %107 : vector<1x16x128xi1> to vector<8x16x128xi1>
    %109 = arith.select %108, %105, %106 : vector<8x16x128xi1>, vector<8x16x128xf32>
    %110 = arith.maximumf %109, %105 : vector<8x16x128xf32>
    %c127_i32_22 = arith.constant 127 : i32
    %111 = tpu.dynamic_rotate %105 by %c127_i32_22 dim 2 : vector<8x16x128xf32>, i32 -> vector<8x16x128xf32>
    %112 = vector.shape_cast %14 : vector<1x16x128xi1> to vector<1x16x128xi1>
    %113 = vector.broadcast %112 : vector<1x16x128xi1> to vector<8x16x128xi1>
    %114 = arith.select %113, %105, %111 : vector<8x16x128xi1>, vector<8x16x128xf32>
    %115 = arith.maximumf %110, %114 : vector<8x16x128xf32>
    %c1_i32_23 = arith.constant 1 : i32
    %116 = tpu.dynamic_rotate %115 by %c1_i32_23 dim 1 : vector<8x16x128xf32>, i32 -> vector<8x16x128xf32>
    %117 = vector.shape_cast %8 : vector<1x16x128xi1> to vector<1x16x128xi1>
    %118 = vector.broadcast %117 : vector<1x16x128xi1> to vector<8x16x128xi1>
    %119 = arith.select %118, %115, %116 : vector<8x16x128xi1>, vector<8x16x128xf32>
    %120 = arith.minimumf %119, %115 : vector<8x16x128xf32>
    %c15_i32_24 = arith.constant 15 : i32
    %121 = tpu.dynamic_rotate %115 by %c15_i32_24 dim 1 : vector<8x16x128xf32>, i32 -> vector<8x16x128xf32>
    %122 = vector.shape_cast %10 : vector<1x16x128xi1> to vector<1x16x128xi1>
    %123 = vector.broadcast %122 : vector<1x16x128xi1> to vector<8x16x128xi1>
    %124 = arith.select %123, %115, %121 : vector<8x16x128xi1>, vector<8x16x128xf32>
    %125 = arith.minimumf %120, %124 : vector<8x16x128xf32>
    %c1_i32_25 = arith.constant 1 : i32
    %126 = tpu.dynamic_rotate %115 by %c1_i32_25 dim 2 : vector<8x16x128xf32>, i32 -> vector<8x16x128xf32>
    %127 = vector.shape_cast %12 : vector<1x16x128xi1> to vector<1x16x128xi1>
    %128 = vector.broadcast %127 : vector<1x16x128xi1> to vector<8x16x128xi1>
    %129 = arith.select %128, %115, %126 : vector<8x16x128xi1>, vector<8x16x128xf32>
    %130 = arith.minimumf %129, %115 : vector<8x16x128xf32>
    %c127_i32_26 = arith.constant 127 : i32
    %131 = tpu.dynamic_rotate %115 by %c127_i32_26 dim 2 : vector<8x16x128xf32>, i32 -> vector<8x16x128xf32>
    %132 = vector.shape_cast %14 : vector<1x16x128xi1> to vector<1x16x128xi1>
    %133 = vector.broadcast %132 : vector<1x16x128xi1> to vector<8x16x128xi1>
    %134 = arith.select %133, %115, %131 : vector<8x16x128xi1>, vector<8x16x128xf32>
    %135 = arith.minimumf %130, %134 : vector<8x16x128xf32>
    %136 = arith.minimumf %125, %135 : vector<8x16x128xf32>
    %137 = vector.broadcast %21 : vector<1x16x128xf32> to vector<8x16x128xf32>
    %138 = arith.mulf %136, %137 : vector<8x16x128xf32>
    %139 = vector.extract_strided_slice %138 {offsets = [0, 0, 0], sizes = [4, 16, 128], strides = [1, 1, 1]} : vector<8x16x128xf32> to vector<4x16x128xf32>
    %140 = vector.extract_strided_slice %138 {offsets = [4, 0, 0], sizes = [4, 16, 128], strides = [1, 1, 1]} : vector<8x16x128xf32> to vector<4x16x128xf32>
    %141 = vector.extract_strided_slice %43 {offsets = [4, 0, 0], sizes = [4, 16, 128], strides = [1, 1, 1]} : vector<8x16x128xf32> to vector<4x16x128xf32>
    %142 = arith.mulf %139, %141 : vector<4x16x128xf32>
    %cst_27 = arith.constant dense<0.000000e+00> : vector<4x16xf32>
    %143 = vector.multi_reduction <add>, %142, %cst_27 [2] : vector<4x16x128xf32> to vector<4x16xf32>
    %cst_28 = arith.constant dense<0.000000e+00> : vector<4xf32>
    %144 = vector.multi_reduction <add>, %143, %cst_28 [1] : vector<4x16xf32> to vector<4xf32>
    %145 = vector.shape_cast %144 : vector<4xf32> to vector<4x1xf32>
    %cst_29 = arith.constant 9.99999993E-9 : f32
    %146 = vector.broadcast %cst_29 : f32 to vector<4x1xf32>
    %147 = arith.addf %145, %146 : vector<4x1xf32>
    %cst_30 = arith.constant dense<0.000000e+00> : vector<4x16xf32>
    %148 = vector.multi_reduction <add>, %139, %cst_30 [2] : vector<4x16x128xf32> to vector<4x16xf32>
    %cst_31 = arith.constant dense<0.000000e+00> : vector<4xf32>
    %149 = vector.multi_reduction <add>, %148, %cst_31 [1] : vector<4x16xf32> to vector<4xf32>
    %150 = vector.shape_cast %149 : vector<4xf32> to vector<4x1xf32>
    %cst_32 = arith.constant 9.99999993E-9 : f32
    %151 = vector.broadcast %cst_32 : f32 to vector<4x1xf32>
    %152 = arith.addf %150, %151 : vector<4x1xf32>
    %153 = arith.divf %147, %152 : vector<4x1xf32>
    %154 = arith.mulf %140, %1 : vector<4x16x128xf32>
    %cst_33 = arith.constant dense<0.000000e+00> : vector<4x16xf32>
    %155 = vector.multi_reduction <add>, %154, %cst_33 [2] : vector<4x16x128xf32> to vector<4x16xf32>
    %cst_34 = arith.constant dense<0.000000e+00> : vector<4xf32>
    %156 = vector.multi_reduction <add>, %155, %cst_34 [1] : vector<4x16xf32> to vector<4xf32>
    %157 = vector.shape_cast %156 : vector<4xf32> to vector<4x1xf32>
    %cst_35 = arith.constant 9.99999993E-9 : f32
    %158 = vector.broadcast %cst_35 : f32 to vector<4x1xf32>
    %159 = arith.addf %157, %158 : vector<4x1xf32>
    %cst_36 = arith.constant dense<0.000000e+00> : vector<4x16xf32>
    %160 = vector.multi_reduction <add>, %140, %cst_36 [2] : vector<4x16x128xf32> to vector<4x16xf32>
    %cst_37 = arith.constant dense<0.000000e+00> : vector<4xf32>
    %161 = vector.multi_reduction <add>, %160, %cst_37 [1] : vector<4x16xf32> to vector<4xf32>
    %162 = vector.shape_cast %161 : vector<4xf32> to vector<4x1xf32>
    %cst_38 = arith.constant 9.99999993E-9 : f32
    %163 = vector.broadcast %cst_38 : f32 to vector<4x1xf32>
    %164 = arith.addf %162, %163 : vector<4x1xf32>
    %165 = arith.divf %159, %164 : vector<4x1xf32>
    %cst_39 = arith.constant 2.000000e+00 : f32
    %166 = vector.broadcast %cst_39 : f32 to vector<4x1xf32>
    %167 = arith.mulf %166, %153 : vector<4x1xf32>
    %168 = arith.mulf %167, %165 : vector<4x1xf32>
    %169 = arith.addf %153, %165 : vector<4x1xf32>
    %170 = arith.divf %168, %169 : vector<4x1xf32>
    %cst_40 = arith.constant 0.000000e+00 : f32
    %171 = vector.broadcast %cst_40 : f32 to vector<4x1xf32>
    %172 = tpu.concatenate %170, %171 in 0 : vector<4x1xf32>, vector<4x1xf32> -> vector<8x1xf32>
    %c0_41 = arith.constant 0 : index
    %c0_42 = arith.constant 0 : index
    %173 = vector.load %arg4[%c0_41, %c0_42] : memref<8x1xf32, #tpu.memory_space<vmem>>, vector<8x1xf32>
    tpu.vector_store %arg4[%c0_41, %c0_42], %172 {strides = array<i32>} : memref<8x1xf32, #tpu.memory_space<vmem>>, vector<8x1xf32>,
    return
  }
  func.func @transform_0(%arg0: i32, %arg1: i32) -> (i32, i32, i32, i32) {
    %c0_i32 = arith.constant 0 : i32
    %c0_i32_0 = arith.constant 0 : i32
    %c0_i32_1 = arith.constant 0 : i32
    return %arg0, %arg1, %c0_i32, %c0_i32_0 : i32, i32, i32, i32
  }
  func.func @transform_1(%arg0: i32, %arg1: i32) -> (i32, i32, i32) {
    %c0_i32 = arith.constant 0 : i32
    %c0_i32_0 = arith.constant 0 : i32
    %c0_i32_1 = arith.constant 0 : i32
    return %arg0, %c0_i32, %c0_i32_0 : i32, i32, i32
  }
  func.func @transform_2(%arg0: i32, %arg1: i32) -> (i32, i32) {
    %c1_i32 = arith.constant 1 : i32
    %0 = arith.muli %arg0, %c1_i32 : i32
    %1 = arith.addi %0, %arg1 : i32
    %c0_i32 = arith.constant 0 : i32
    %c0_i32_0 = arith.constant 0 : i32
    return %1, %c0_i32 : i32, i32
  }
}

</mosaic_0001>

<llo_original>
// kernel: tpu_custom_call.1
$region0: #{tpu_custom_call.1}
  #allocation0 [shape = 'u32[]', space=smem, size = 0x4, offset = 0x4, fixed_abs, tag = 'smem constant byte address 0x4 - core index']
  #allocation1 [shape = 'u32[144,128]{1,0:T(1,128)}', space=vmem, size = 0x12000, scoped, tag = 'internal scratch']
  %s0 = inlined_call_operand.hbm [shape: f32[2,4,16,128], index: 0, kind: input, shape index: {}]
  %s1 = inlined_call_operand.hbm [shape: s32[2,16,128], index: 1, kind: input, shape index: {}]
  %s2 = inlined_call_operand.vmem [shape: f32[16,1], index: 2, kind: output, shape index: {}]
  %s3 = sld [smem:[#allocation0]]
  $region56: #{tpu_custom_call.1} parent=0
    _
  %s5 = ssub.s32 1, %s3
  %s6 = scalar_select 0, %s5, %s3
  $region1: #{tpu_custom_call.1} parent=0
    #allocation2 [shape = 'u8[65536]{0}', space=vmem, size = 0x10000, scoped, tag = 'input window, operand 0']
    #allocation3 [shape = 's32[2]{0}', space=sflag, size = 0x8, scoped, tag = 'scoped memory for tpu_custom_call.1']
    #allocation4 [shape = 'u8[16384]{0}', space=vmem, size = 0x4000, scoped, tag = 'input window, operand 1']
    #allocation5 [shape = 's32[2]{0}', space=sflag, size = 0x8, scoped, tag = 'scoped memory for tpu_custom_call.1']
    %7 = vsyncpa [#allocation3], 0
    %s8 = scalar_lea.sflag [#allocation3], 1
    %9 = vsyncpa %s8, 0
    %10 = vsyncpa [#allocation5], 0
    %s11 = scalar_lea.sflag [#allocation5], 1
    %12 = vsyncpa %s11, 0
    loop: start=0, step=1, limit=4
    $region2: #{tpu_custom_call.1} parent=1 // loop_pre_header
      _
    $region3: #{tpu_custom_call.1} parent=1 // loop_header
      %s14 = sphi 0, %s18
      %p15 = scmp.ge.s32.totalorder %s14, 4
      %s21 = sphi 0, %s33
      %s22 = sphi 0, %s29
      %s23 = sphi 0, %s21
      %s24 = sphi 0, %s22
      %s25 = sphi 0, %s23
      %s26 = sphi 0, %s24
      %s38 = sphi 0, %s40
      %s41 = sphi 0, %s38
      %s42 = sphi 0, %s41
      %s58 = sphi 0, %s42
      %s64 = sphi 0, %s66
      %s67 = sphi 0, %s64
      %s68 = sphi 0, %s67
      %s84 = sphi 0, %s68
      %s92 = sphi 0, %s94
      %s95 = sphi 0, %s92
      %s96 = sphi 0, %s95
      %s112 = sphi 0, %s96
    $region4: #{tpu_custom_call.1} parent=1 // loop_header_branch
      %17 = sbr.rel (%p15) target = $region8
    $region5: #{tpu_custom_call.1} parent=1 // loop_body
      %s19 = ssub.s32 %s14, 1
      %s20 = ssub.s32 %s14, 2
      %s27 = sadd.s32 1, %s22
      %p28 = scmp.ge.s32.totalorder %s27, 1
      %s29 = scalar_select %p28, 0, %s27
      %s30 = sadd.s32 1, %s21
      %s31 = scalar_select %p28, %s30, %s21
      %p32 = scmp.ge.s32.totalorder %s31, 2
      %s33 = scalar_select %p32, 0, %s31
      %s34 = ssub.s32 %s21, %s33
      %s35 = ssub.s32 %s22, %s29
      %s36 = sor.u32 %s34, %s35
      %p37 = scmp.eq.s32.totalorder %s36, 0
      %s39 = sadd.s32 %s38, 1
      %s40 = scalar_select %p37, %s38, %s39
      %p43 = pneg %p37
      %p44 = scmp.eq.s32.totalorder %s14, 1
      %p45 = por %p43, %p44
      %p46 = scmp.ne.s32.totalorder %s38, %s41
      %p47 = scmp.eq.s32.totalorder %s14, 0
      %p48 = por %p46, %p47
      %p49 = scmp.ne.s32.totalorder %s38, %s41
      %p50 = scmp.eq.s32.totalorder %s19, 1
      %p51 = por %p49, %p50
      %p52 = scmp.ne.s32.totalorder %s41, %s42
      %p53 = scmp.eq.s32.totalorder %s19, 0
      %p54 = por %p52, %p53
      %p55 = scmp.ne.s32.totalorder %s41, %s42
      %p56 = scmp.eq.s32.totalorder %s20, 1
      %p57 = por %p55, %p56
      %p59 = scmp.ne.s32.totalorder %s42, %s58
      %p60 = scmp.eq.s32.totalorder %s20, 0
      %p61 = por %p59, %p60
      %s62 = ssub.s32 %s21, %s33
      %p63 = scmp.eq.s32.totalorder %s62, 0
      %s65 = sadd.s32 %s64, 1
      %s66 = scalar_select %p63, %s64, %s65
      %p69 = pneg %p63
      %p70 = scmp.eq.s32.totalorder %s14, 1
      %p71 = por %p69, %p70
      %p72 = scmp.ne.s32.totalorder %s64, %s67
      %p73 = scmp.eq.s32.totalorder %s14, 0
      %p74 = por %p72, %p73
      %p75 = scmp.ne.s32.totalorder %s64, %s67
      %p76 = scmp.eq.s32.totalorder %s19, 1
      %p77 = por %p75, %p76
      %p78 = scmp.ne.s32.totalorder %s67, %s68
      %p79 = scmp.eq.s32.totalorder %s19, 0
      %p80 = por %p78, %p79
      %p81 = scmp.ne.s32.totalorder %s67, %s68
      %p82 = scmp.eq.s32.totalorder %s20, 1
      %p83 = por %p81, %p82
      %p85 = scmp.ne.s32.totalorder %s68, %s84
      %p86 = scmp.eq.s32.totalorder %s20, 0
      %p87 = por %p85, %p86
      %s88 = sadd.s32 %s21, %s22
      %s89 = sadd.s32 %s33, %s29
      %s90 = ssub.s32 %s88, %s89
      %p91 = scmp.eq.s32.totalorder %s90, 0
      %s93 = sadd.s32 %s92, 1
      %s94 = scalar_select %p91, %s92, %s93
      %p97 = pneg %p91
      %p98 = scmp.eq.s32.totalorder %s14, 1
      %p99 = por %p97, %p98
      %p100 = scmp.ne.s32.totalorder %s92, %s95
      %p101 = scmp.eq.s32.totalorder %s14, 0
      %p102 = por %p100, %p101
      %p103 = scmp.ne.s32.totalorder %s92, %s95
      %p104 = scmp.eq.s32.totalorder %s19, 1
      %p105 = por %p103, %p104
      %p106 = scmp.ne.s32.totalorder %s95, %s96
      %p107 = scmp.eq.s32.totalorder %s19, 0
      %p108 = por %p106, %p107
      %p109 = scmp.ne.s32.totalorder %s95, %s96
      %p110 = scmp.eq.s32.totalorder %s20, 1
      %p111 = por %p109, %p110
      %p113 = scmp.ne.s32.totalorder %s96, %s112
      %p114 = scmp.eq.s32.totalorder %s20, 0
      %p115 = por %p113, %p114
      %p116 = scmp.le.s32.totalorder 1, %s14
      %p117 = scmp.lt.s32.totalorder %s14, 3
      %p118 = pnand %p116, %p117
      %p119 = pneg %p118
      // Predicated region
      $region9: #{tpu_custom_call.1} parent=5 // pred_check
        _
      $region10: #{tpu_custom_call.1} parent=5 // pred_check_branch
        %121 = sbr.rel (%p118) target = $region12
      $region11: #{tpu_custom_call.1} parent=5 // pred_region
        %s122 = ssub.s32 %s14, 1
      $region12: #{tpu_custom_call.1} parent=5 // pred_fallthru
        _
      %p123 = scmp.lt.s32.totalorder %s14, 2
      // Predicated region
      $region13: #{tpu_custom_call.1} parent=5 // pred_check
        %p124 = pneg %p123
      $region14: #{tpu_custom_call.1} parent=5 // pred_check_branch
        %126 = sbr.rel (%p124) target = $region16
      $region15: #{tpu_custom_call.1} parent=5 // pred_region
        // Predicated region
        $region17: #{tpu_custom_call.1} parent=15 // pred_check
          %p127 = pneg %p48
        $region18: #{tpu_custom_call.1} parent=15 // pred_check_branch
          %129 = sbr.rel (%p127) target = $region20
        $region19: #{tpu_custom_call.1} parent=15 // pred_region
          %s130 = sand.u32 %s38, 1
          %s131 = scalar_lea.sflag [#allocation3], %s130
          %s132 = sand.u32 %s38, 1
          %s133 = smul.addr %s132, 64
          %s134 = scalar_lea.vmem [#allocation2], %s133
          %s135 = smul.u32 4, %s22
          %s137 = ssub.s32 1024, 1024
          %138 = vsyncadd %s131, %s137
          %s139 = smul.addr %s135, 2
          %s140 = smul.addr %s21, 8
          %s141 = sadd.s32 %s139, %s140
          %s142 = smul.addr %s141, 128
          %s143 = scalar_lea.hbm %s0, %s142
          %s144 = sshll.u32 %s134, 4
          %s145 = int_to_ptr.vmem [resolvable:$true] %s144
          %150 = dma.hbm_to_vmem [thread:$0]  %s143, 1024, %s145, %s131, 128, 128, 8
        $region20: #{tpu_custom_call.1} parent=15 // pred_fallthru
          _
        // Predicated region
        $region21: #{tpu_custom_call.1} parent=15 // pred_check
          %p151 = pneg %p74
        $region22: #{tpu_custom_call.1} parent=15 // pred_check_branch
          %153 = sbr.rel (%p151) target = $region24
        $region23: #{tpu_custom_call.1} parent=15 // pred_region
          %s154 = sand.u32 %s64, 1
          %s155 = scalar_lea.sflag [#allocation5], %s154
          %s156 = sand.u32 %s64, 1
          %s157 = smul.addr %s156, 16
          %s158 = scalar_lea.vmem [#allocation4], %s157
          %s160 = ssub.s32 256, 256
          %161 = vsyncadd %s155, %s160
          %s162 = smul.addr %s21, 2
          %s163 = smul.addr %s162, 128
          %s164 = scalar_lea.hbm %s1, %s163
          %s165 = sshll.u32 %s158, 4
          %s166 = int_to_ptr.vmem [resolvable:$true] %s165
          %171 = dma.hbm_to_vmem [thread:$0]  %s164, 256, %s166, %s155, 128, 128, 8
        $region24: #{tpu_custom_call.1} parent=15 // pred_fallthru
          _
      $region16: #{tpu_custom_call.1} parent=5 // pred_fallthru
        _
      %p172 = scmp.le.s32.totalorder 1, %s14
      %p173 = scmp.lt.s32.totalorder %s14, 3
      %p174 = pnand %p172, %p173
      %p175 = pneg %p174
      // Predicated region
      $region25: #{tpu_custom_call.1} parent=5 // pred_check
        _
      $region26: #{tpu_custom_call.1} parent=5 // pred_check_branch
        %177 = sbr.rel (%p174) target = $region28
      $region27: #{tpu_custom_call.1} parent=5 // pred_region
        %s178 = ssub.s32 %s14, 1
        %s179 = sand.u32 %s41, 1
        %s180 = scalar_lea.sflag [#allocation3], %s179
        %s181 = sand.u32 %s41, 1
        %s182 = smul.addr %s181, 64
        %s183 = scalar_lea.vmem [#allocation2], %s182
        // Predicated region
        $region29: #{tpu_custom_call.1} parent=27 // pred_check
          %p184 = pneg %p54
        $region30: #{tpu_custom_call.1} parent=27 // pred_check_branch
          %186 = sbr.rel (%p184) target = $region32
        $region31: #{tpu_custom_call.1} parent=27 // pred_region
          %187 = dma.done %s180, 1024
        $region32: #{tpu_custom_call.1} parent=27 // pred_fallthru
          _
        %s188 = sand.u32 %s67, 1
        %s189 = scalar_lea.sflag [#allocation5], %s188
        %s190 = sand.u32 %s67, 1
        %s191 = smul.addr %s190, 16
        %s192 = scalar_lea.vmem [#allocation4], %s191
        // Predicated region
        $region33: #{tpu_custom_call.1} parent=27 // pred_check
          %p193 = pneg %p80
        $region34: #{tpu_custom_call.1} parent=27 // pred_check_branch
          %195 = sbr.rel (%p193) target = $region36
        $region35: #{tpu_custom_call.1} parent=27 // pred_region
          %196 = dma.done %s189, 256
        $region36: #{tpu_custom_call.1} parent=27 // pred_fallthru
          _
        %s197 = sand.u32 %s41, 1
        %s198 = scalar_lea.sflag [#allocation3], %s197
        %s199 = sand.u32 %s41, 1
        %s200 = smul.addr %s199, 64
        %s201 = scalar_lea.vmem [#allocation2], %s200
        %p202 = pneg %p54
        %p203 = pneg %p51
        %s204 = sand.u32 %s67, 1
        %s205 = scalar_lea.sflag [#allocation5], %s204
        %s206 = sand.u32 %s67, 1
        %s207 = smul.addr %s206, 16
        %s208 = scalar_lea.vmem [#allocation4], %s207
        %p209 = pneg %p80
        %p210 = pneg %p77
        %p211 = pneg %p108
        %p212 = pneg %p105
        %s213 = sadd.s32 %s23, %s24
        %p214 = scmp.lt.s32.totalorder %s213, 1
        %s215 = scalar_select %p214, %s213, 1
        %s216 = smul.addr %s215, 8
        %s217 = scalar_lea.vmem %s2, %s216
        %s218 = smul.u32 4, %s24
        %s219 = sadd.s32 %s23, %s24
        %p220 = scmp.lt.s32.totalorder %s219, 1
        %s221 = scalar_select %p220, %s219, 1
        %s222 = smul.addr %s221, 8
        %s223 = scalar_lea.vmem %s2, %s222
        %s224 = sadd.s32 %s23, %s24
        %v225 = vld [vmem:[%s183] sm:$0xff]
        %v226 = vld [vmem:[%s183 + $0x8] sm:$0xff]
        %v227 = vld [vmem:[%s183 + $0x10] sm:$0xff]
        %v228 = vld [vmem:[%s183 + $0x18] sm:$0xff]
        %v229 = vld [vmem:[%s183 + $0x20] sm:$0xff]
        %v230 = vld [vmem:[%s183 + $0x28] sm:$0xff]
        %v231 = vld [vmem:[%s183 + $0x30] sm:$0xff]
        %v232 = vld [vmem:[%s183 + $0x38] sm:$0xff]
        %v233 = vld [vmem:[%s192] sm:$0xff]
        %v234 = vld [vmem:[%s192 + $0x8] sm:$0xff]
        %v235 = vlaneseq
        %v236 = vshrl.u32 %v235, 7
        %v237 = vadd.s32 %v236, 8
        %v238 = vlaneseq
        %v239 = vand.u32 %v238, 127
        %vm240 = vcmp.eq.s32.totalorder %v236, 0
        %vm241 = vcmp.eq.s32.totalorder %v237, 0
        %vm242 = vcmp.eq.s32.totalorder %v236, 15
        %vm243 = vcmp.eq.s32.totalorder %v237, 15
        %vm244 = vcmp.eq.s32.totalorder %v239, 0
        %vm245 = vcmp.eq.s32.totalorder %v239, 15
        %vm246 = vcmp.lt.s32.totalorder %v236, 16
        %vm247 = vcmp.lt.s32.totalorder %v237, 16
        %vm248 = vcmp.lt.s32.totalorder %v239, 16
        %vm249 = vmand %vm246, %vm248
        %vm250 = vmand %vm247, %vm248
        %v251 = vsel %vm249, 1, 0
        %v252 = vsel %vm250, 1, 0
        %v253 = vcvt.s32.f32 %v251
        %v254 = vcvt.s32.f32 %v252
        %s255 = smul.u32 %s24, 4
        %v256 = vstv %s255
        %vm257 = vcmp.eq.s32.totalorder %v233, %v256
        %vm258 = vcmp.eq.s32.totalorder %v234, %v256
        %v259 = vsel %vm257, 1, 0
        %v260 = vsel %vm258, 1, 0
        %v261 = vcvt.s32.f32 %v259
        %v262 = vcvt.s32.f32 %v260
        %s263 = sadd.s32 %s255, 1
        %v264 = vstv %s263
        %vm265 = vcmp.eq.s32.totalorder %v233, %v264
        %vm266 = vcmp.eq.s32.totalorder %v234, %v264
        %v267 = vsel %vm265, 1, 0
        %v268 = vsel %vm266, 1, 0
        %v269 = vcvt.s32.f32 %v267
        %v270 = vcvt.s32.f32 %v268
        %s271 = sadd.s32 %s255, 2
        %v272 = vstv %s271
        %vm273 = vcmp.eq.s32.totalorder %v233, %v272
        %vm274 = vcmp.eq.s32.totalorder %v234, %v272
        %v275 = vsel %vm273, 1, 0
        %v276 = vsel %vm274, 1, 0
        %v277 = vcvt.s32.f32 %v275
        %v278 = vcvt.s32.f32 %v276
        %s279 = sadd.s32 %s255, 3
        %v280 = vstv %s279
        %vm281 = vcmp.eq.s32.totalorder %v233, %v280
        %vm282 = vcmp.eq.s32.totalorder %v234, %v280
        %v283 = vsel %vm281, 1, 0
        %v284 = vsel %vm282, 1, 0
        %v285 = vcvt.s32.f32 %v283
        %v286 = vcvt.s32.f32 %v284
        %v287 = vrot.slane %v225, 7
        %v288 = vrot.slane %v227, 7
        %v289 = vrot.slane %v229, 7
        %v290 = vrot.slane %v231, 7
        %v291 = vrot.slane %v261, 7
        %v292 = vrot.slane %v269, 7
        %v293 = vrot.slane %v277, 7
        %v294 = vrot.slane %v285, 7
        %v295 = vrot.slane %v226, 7
        %v296 = vrot.slane %v228, 7
        %v297 = vrot.slane %v230, 7
        %v298 = vrot.slane %v232, 7
        %v299 = vrot.slane %v262, 7
        %v300 = vrot.slane %v270, 7
        %v301 = vrot.slane %v278, 7
        %v302 = vrot.slane %v286, 7
        %vm303 = vcmp.lt.s32.totalorder %v236, 1
        %v304 = vsel %vm303, %v287, %v295
        %v305 = vsel %vm303, %v288, %v296
        %v306 = vsel %vm303, %v289, %v297
        %v307 = vsel %vm303, %v290, %v298
        %v308 = vsel %vm303, %v291, %v299
        %v309 = vsel %vm303, %v292, %v300
        %v310 = vsel %vm303, %v293, %v301
        %v311 = vsel %vm303, %v294, %v302
        %v312 = vsel %vm303, %v295, %v287
        %v313 = vsel %vm303, %v296, %v288
        %v314 = vsel %vm303, %v297, %v289
        %v315 = vsel %vm303, %v298, %v290
        %v316 = vsel %vm303, %v299, %v291
        %v317 = vsel %vm303, %v300, %v292
        %v318 = vsel %vm303, %v301, %v293
        %v319 = vsel %vm303, %v302, %v294
        %v320 = vsel %vm240, 1, 0
        %v321 = vsel %vm241, 1, 0
        %vm322 = vcmp.eq.s32.totalorder %v320, 1
        %vm323 = vcmp.eq.s32.totalorder %v321, 1
        %v324 = vsel %vm322, %v225, %v312
        %v325 = vsel %vm323, %v226, %v304
        %v326 = vsel %vm322, %v227, %v313
        %v327 = vsel %vm323, %v228, %v305
        %v328 = vsel %vm322, %v229, %v314
        %v329 = vsel %vm323, %v230, %v306
        %v330 = vsel %vm322, %v231, %v315
        %v331 = vsel %vm323, %v232, %v307
        %v332 = vsel %vm322, %v261, %v316
        %v333 = vsel %vm323, %v262, %v308
        %v334 = vsel %vm322, %v269, %v317
        %v335 = vsel %vm323, %v270, %v309
        %v336 = vsel %vm322, %v277, %v318
        %v337 = vsel %vm323, %v278, %v310
        %v338 = vsel %vm322, %v285, %v319
        %v339 = vsel %vm323, %v286, %v311
        %v340 = vmin.f32 %v324, %v225
        %v341 = vmin.f32 %v325, %v226
        %v342 = vmin.f32 %v326, %v227
        %v343 = vmin.f32 %v327, %v228
        %v344 = vmin.f32 %v328, %v229
        %v345 = vmin.f32 %v329, %v230
        %v346 = vmin.f32 %v330, %v231
        %v347 = vmin.f32 %v331, %v232
        %v348 = vmin.f32 %v332, %v261
        %v349 = vmin.f32 %v333, %v262
        %v350 = vmin.f32 %v334, %v269
        %v351 = vmin.f32 %v335, %v270
        %v352 = vmin.f32 %v336, %v277
        %v353 = vmin.f32 %v337, %v278
        %v354 = vmin.f32 %v338, %v285
        %v355 = vmin.f32 %v339, %v286
        %v356 = vrot.slane %v225, 1
        %v357 = vrot.slane %v227, 1
        %v358 = vrot.slane %v229, 1
        %v359 = vrot.slane %v231, 1
        %v360 = vrot.slane %v261, 1
        %v361 = vrot.slane %v269, 1
        %v362 = vrot.slane %v277, 1
        %v363 = vrot.slane %v285, 1
        %v364 = vrot.slane %v226, 1
        %v365 = vrot.slane %v228, 1
        %v366 = vrot.slane %v230, 1
        %v367 = vrot.slane %v232, 1
        %v368 = vrot.slane %v262, 1
        %v369 = vrot.slane %v270, 1
        %v370 = vrot.slane %v278, 1
        %v371 = vrot.slane %v286, 1
        %vm372 = vcmp.lt.s32.totalorder %v236, 7
        %v373 = vsel %vm372, %v356, %v364
        %v374 = vsel %vm372, %v357, %v365
        %v375 = vsel %vm372, %v358, %v366
        %v376 = vsel %vm372, %v359, %v367
        %v377 = vsel %vm372, %v360, %v368
        %v378 = vsel %vm372, %v361, %v369
        %v379 = vsel %vm372, %v362, %v370
        %v380 = vsel %vm372, %v363, %v371
        %v381 = vsel %vm372, %v364, %v356
        %v382 = vsel %vm372, %v365, %v357
        %v383 = vsel %vm372, %v366, %v358
        %v384 = vsel %vm372, %v367, %v359
        %v385 = vsel %vm372, %v368, %v360
        %v386 = vsel %vm372, %v369, %v361
        %v387 = vsel %vm372, %v370, %v362
        %v388 = vsel %vm372, %v371, %v363
        %v389 = vsel %vm242, 1, 0
        %v390 = vsel %vm243, 1, 0
        %vm391 = vcmp.eq.s32.totalorder %v389, 1
        %vm392 = vcmp.eq.s32.totalorder %v390, 1
        %v393 = vsel %vm391, %v225, %v373
        %v394 = vsel %vm392, %v226, %v381
        %v395 = vsel %vm391, %v227, %v374
        %v396 = vsel %vm392, %v228, %v382
        %v397 = vsel %vm391, %v229, %v375
        %v398 = vsel %vm392, %v230, %v383
        %v399 = vsel %vm391, %v231, %v376
        %v400 = vsel %vm392, %v232, %v384
        %v401 = vsel %vm391, %v261, %v377
        %v402 = vsel %vm392, %v262, %v385
        %v403 = vsel %vm391, %v269, %v378
        %v404 = vsel %vm392, %v270, %v386
        %v405 = vsel %vm391, %v277, %v379
        %v406 = vsel %vm392, %v278, %v387
        %v407 = vsel %vm391, %v285, %v380
        %v408 = vsel %vm392, %v286, %v388
        %v409 = vmin.f32 %v340, %v393
        %v410 = vmin.f32 %v341, %v394
        %v411 = vmin.f32 %v342, %v395
        %v412 = vmin.f32 %v343, %v396
        %v413 = vmin.f32 %v344, %v397
        %v414 = vmin.f32 %v345, %v398
        %v415 = vmin.f32 %v346, %v399
        %v416 = vmin.f32 %v347, %v400
        %v417 = vmin.f32 %v348, %v401
        %v418 = vmin.f32 %v349, %v402
        %v419 = vmin.f32 %v350, %v403
        %v420 = vmin.f32 %v351, %v404
        %v421 = vmin.f32 %v352, %v405
        %v422 = vmin.f32 %v353, %v406
        %v423 = vmin.f32 %v354, %v407
        %v424 = vmin.f32 %v355, %v408
        %425 = vrot.lane.b32.xlu0 %v225, 1
        %v426 = vpop.permute.xlu0 %425
        %427 = vrot.lane.b32.xlu0 %v226, 1
        %v428 = vpop.permute.xlu0 %427
        %429 = vrot.lane.b32.xlu0 %v227, 1
        %v430 = vpop.permute.xlu0 %429
        %431 = vrot.lane.b32.xlu0 %v228, 1
        %v432 = vpop.permute.xlu0 %431
        %433 = vrot.lane.b32.xlu0 %v229, 1
        %v434 = vpop.permute.xlu0 %433
        %435 = vrot.lane.b32.xlu0 %v230, 1
        %v436 = vpop.permute.xlu0 %435
        %437 = vrot.lane.b32.xlu0 %v231, 1
        %v438 = vpop.permute.xlu0 %437
        %439 = vrot.lane.b32.xlu0 %v232, 1
        %v440 = vpop.permute.xlu0 %439
        %441 = vrot.lane.b32.xlu0 %v261, 1
        %v442 = vpop.permute.xlu0 %441
        %443 = vrot.lane.b32.xlu0 %v262, 1
        %v444 = vpop.permute.xlu0 %443
        %445 = vrot.lane.b32.xlu0 %v269, 1
        %v446 = vpop.permute.xlu0 %445
        %447 = vrot.lane.b32.xlu0 %v270, 1
        %v448 = vpop.permute.xlu0 %447
        %449 = vrot.lane.b32.xlu0 %v277, 1
        %v450 = vpop.permute.xlu0 %449
        %451 = vrot.lane.b32.xlu0 %v278, 1
        %v452 = vpop.permute.xlu0 %451
        %453 = vrot.lane.b32.xlu0 %v285, 1
        %v454 = vpop.permute.xlu0 %453
        %455 = vrot.lane.b32.xlu0 %v286, 1
        %v456 = vpop.permute.xlu0 %455
        %v457 = vsel %vm244, 1, 0
        %vm458 = vcmp.eq.s32.totalorder %v457, 1
        %v459 = vsel %vm458, %v225, %v426
        %v460 = vsel %vm458, %v226, %v428
        %v461 = vsel %vm458, %v227, %v430
        %v462 = vsel %vm458, %v228, %v432
        %v463 = vsel %vm458, %v229, %v434
        %v464 = vsel %vm458, %v230, %v436
        %v465 = vsel %vm458, %v231, %v438
        %v466 = vsel %vm458, %v232, %v440
        %v467 = vsel %vm458, %v261, %v442
        %v468 = vsel %vm458, %v262, %v444
        %v469 = vsel %vm458, %v269, %v446
        %v470 = vsel %vm458, %v270, %v448
        %v471 = vsel %vm458, %v277, %v450
        %v472 = vsel %vm458, %v278, %v452
        %v473 = vsel %vm458, %v285, %v454
        %v474 = vsel %vm458, %v286, %v456
        %v475 = vmin.f32 %v459, %v225
        %v476 = vmin.f32 %v460, %v226
        %v477 = vmin.f32 %v461, %v227
        %v478 = vmin.f32 %v462, %v228
        %v479 = vmin.f32 %v463, %v229
        %v480 = vmin.f32 %v464, %v230
        %v481 = vmin.f32 %v465, %v231
        %v482 = vmin.f32 %v466, %v232
        %v483 = vmin.f32 %v467, %v261
        %v484 = vmin.f32 %v468, %v262
        %v485 = vmin.f32 %v469, %v269
        %v486 = vmin.f32 %v470, %v270
        %v487 = vmin.f32 %v471, %v277
        %v488 = vmin.f32 %v472, %v278
        %v489 = vmin.f32 %v473, %v285
        %v490 = vmin.f32 %v474, %v286
        %491 = vrot.lane.b32.xlu0 %v225, 127
        %v492 = vpop.permute.xlu0 %491
        %493 = vrot.lane.b32.xlu0 %v226, 127
        %v494 = vpop.permute.xlu0 %493
        %495 = vrot.lane.b32.xlu0 %v227, 127
        %v496 = vpop.permute.xlu0 %495
        %497 = vrot.lane.b32.xlu0 %v228, 127
        %v498 = vpop.permute.xlu0 %497
        %499 = vrot.lane.b32.xlu0 %v229, 127
        %v500 = vpop.permute.xlu0 %499
        %501 = vrot.lane.b32.xlu0 %v230, 127
        %v502 = vpop.permute.xlu0 %501
        %503 = vrot.lane.b32.xlu0 %v231, 127
        %v504 = vpop.permute.xlu0 %503
        %505 = vrot.lane.b32.xlu0 %v232, 127
        %v506 = vpop.permute.xlu0 %505
        %507 = vrot.lane.b32.xlu0 %v261, 127
        %v508 = vpop.permute.xlu0 %507
        %509 = vrot.lane.b32.xlu0 %v262, 127
        %v510 = vpop.permute.xlu0 %509
        %511 = vrot.lane.b32.xlu0 %v269, 127
        %v512 = vpop.permute.xlu0 %511
        %513 = vrot.lane.b32.xlu0 %v270, 127
        %v514 = vpop.permute.xlu0 %513
        %515 = vrot.lane.b32.xlu0 %v277, 127
        %v516 = vpop.permute.xlu0 %515
        %517 = vrot.lane.b32.xlu0 %v278, 127
        %v518 = vpop.permute.xlu0 %517
        %519 = vrot.lane.b32.xlu0 %v285, 127
        %v520 = vpop.permute.xlu0 %519
        %521 = vrot.lane.b32.xlu0 %v286, 127
        %v522 = vpop.permute.xlu0 %521
        %v523 = vsel %vm245, 1, 0
        %vm524 = vcmp.eq.s32.totalorder %v523, 1
        %v525 = vsel %vm524, %v225, %v492
        %v526 = vsel %vm524, %v226, %v494
        %v527 = vsel %vm524, %v227, %v496
        %v528 = vsel %vm524, %v228, %v498
        %v529 = vsel %vm524, %v229, %v500
        %v530 = vsel %vm524, %v230, %v502
        %v531 = vsel %vm524, %v231, %v504
        %v532 = vsel %vm524, %v232, %v506
        %v533 = vsel %vm524, %v261, %v508
        %v534 = vsel %vm524, %v262, %v510
        %v535 = vsel %vm524, %v269, %v512
        %v536 = vsel %vm524, %v270, %v514
        %v537 = vsel %vm524, %v277, %v516
        %v538 = vsel %vm524, %v278, %v518
        %v539 = vsel %vm524, %v285, %v520
        %v540 = vsel %vm524, %v286, %v522
        %v541 = vmin.f32 %v475, %v525
        %v542 = vmin.f32 %v476, %v526
        %v543 = vmin.f32 %v477, %v527
        %v544 = vmin.f32 %v478, %v528
        %v545 = vmin.f32 %v479, %v529
        %v546 = vmin.f32 %v480, %v530
        %v547 = vmin.f32 %v481, %v531
        %v548 = vmin.f32 %v482, %v532
        %v549 = vmin.f32 %v483, %v533
        %v550 = vmin.f32 %v484, %v534
        %v551 = vmin.f32 %v485, %v535
        %v552 = vmin.f32 %v486, %v536
        %v553 = vmin.f32 %v487, %v537
        %v554 = vmin.f32 %v488, %v538
        %v555 = vmin.f32 %v489, %v539
        %v556 = vmin.f32 %v490, %v540
        %v557 = vmin.f32 %v409, %v541
        %v558 = vmin.f32 %v410, %v542
        %v559 = vmin.f32 %v411, %v543
        %v560 = vmin.f32 %v412, %v544
        %v561 = vmin.f32 %v413, %v545
        %v562 = vmin.f32 %v414, %v546
        %v563 = vmin.f32 %v415, %v547
        %v564 = vmin.f32 %v416, %v548
        %v565 = vmin.f32 %v417, %v549
        %v566 = vmin.f32 %v418, %v550
        %v567 = vmin.f32 %v419, %v551
        %v568 = vmin.f32 %v420, %v552
        %v569 = vmin.f32 %v421, %v553
        %v570 = vmin.f32 %v422, %v554
        %v571 = vmin.f32 %v423, %v555
        %v572 = vmin.f32 %v424, %v556
        %v573 = vrot.slane %v557, 7
        %v574 = vrot.slane %v559, 7
        %v575 = vrot.slane %v561, 7
        %v576 = vrot.slane %v563, 7
        %v577 = vrot.slane %v565, 7
        %v578 = vrot.slane %v567, 7
        %v579 = vrot.slane %v569, 7
        %v580 = vrot.slane %v571, 7
        %v581 = vrot.slane %v558, 7
        %v582 = vrot.slane %v560, 7
        %v583 = vrot.slane %v562, 7
        %v584 = vrot.slane %v564, 7
        %v585 = vrot.slane %v566, 7
        %v586 = vrot.slane %v568, 7
        %v587 = vrot.slane %v570, 7
        %v588 = vrot.slane %v572, 7
        %v589 = vsel %vm303, %v573, %v581
        %v590 = vsel %vm303, %v574, %v582
        %v591 = vsel %vm303, %v575, %v583
        %v592 = vsel %vm303, %v576, %v584
        %v593 = vsel %vm303, %v577, %v585
        %v594 = vsel %vm303, %v578, %v586
        %v595 = vsel %vm303, %v579, %v587
        %v596 = vsel %vm303, %v580, %v588
        %v597 = vsel %vm303, %v581, %v573
        %v598 = vsel %vm303, %v582, %v574
        %v599 = vsel %vm303, %v583, %v575
        %v600 = vsel %vm303, %v584, %v576
        %v601 = vsel %vm303, %v585, %v577
        %v602 = vsel %vm303, %v586, %v578
        %v603 = vsel %vm303, %v587, %v579
        %v604 = vsel %vm303, %v588, %v580
        %v605 = vsel %vm322, %v557, %v597
        %v606 = vsel %vm323, %v558, %v589
        %v607 = vsel %vm322, %v559, %v598
        %v608 = vsel %vm323, %v560, %v590
        %v609 = vsel %vm322, %v561, %v599
        %v610 = vsel %vm323, %v562, %v591
        %v611 = vsel %vm322, %v563, %v600
        %v612 = vsel %vm323, %v564, %v592
        %v613 = vsel %vm322, %v565, %v601
        %v614 = vsel %vm323, %v566, %v593
        %v615 = vsel %vm322, %v567, %v602
        %v616 = vsel %vm323, %v568, %v594
        %v617 = vsel %vm322, %v569, %v603
        %v618 = vsel %vm323, %v570, %v595
        %v619 = vsel %vm322, %v571, %v604
        %v620 = vsel %vm323, %v572, %v596
        %v621 = vmax.f32 %v605, %v557
        %v622 = vmax.f32 %v606, %v558
        %v623 = vmax.f32 %v607, %v559
        %v624 = vmax.f32 %v608, %v560
        %v625 = vmax.f32 %v609, %v561
        %v626 = vmax.f32 %v610, %v562
        %v627 = vmax.f32 %v611, %v563
        %v628 = vmax.f32 %v612, %v564
        %v629 = vmax.f32 %v613, %v565
        %v630 = vmax.f32 %v614, %v566
        %v631 = vmax.f32 %v615, %v567
        %v632 = vmax.f32 %v616, %v568
        %v633 = vmax.f32 %v617, %v569
        %v634 = vmax.f32 %v618, %v570
        %v635 = vmax.f32 %v619, %v571
        %v636 = vmax.f32 %v620, %v572
        %v637 = vrot.slane %v557, 1
        %v638 = vrot.slane %v559, 1
        %v639 = vrot.slane %v561, 1
        %v640 = vrot.slane %v563, 1
        %v641 = vrot.slane %v565, 1
        %v642 = vrot.slane %v567, 1
        %v643 = vrot.slane %v569, 1
        %v644 = vrot.slane %v571, 1
        %v645 = vrot.slane %v558, 1
        %v646 = vrot.slane %v560, 1
        %v647 = vrot.slane %v562, 1
        %v648 = vrot.slane %v564, 1
        %v649 = vrot.slane %v566, 1
        %v650 = vrot.slane %v568, 1
        %v651 = vrot.slane %v570, 1
        %v652 = vrot.slane %v572, 1
        %v653 = vsel %vm372, %v637, %v645
        %v654 = vsel %vm372, %v638, %v646
        %v655 = vsel %vm372, %v639, %v647
        %v656 = vsel %vm372, %v640, %v648
        %v657 = vsel %vm372, %v641, %v649
        %v658 = vsel %vm372, %v642, %v650
        %v659 = vsel %vm372, %v643, %v651
        %v660 = vsel %vm372, %v644, %v652
        %v661 = vsel %vm372, %v645, %v637
        %v662 = vsel %vm372, %v646, %v638
        %v663 = vsel %vm372, %v647, %v639
        %v664 = vsel %vm372, %v648, %v640
        %v665 = vsel %vm372, %v649, %v641
        %v666 = vsel %vm372, %v650, %v642
        %v667 = vsel %vm372, %v651, %v643
        %v668 = vsel %vm372, %v652, %v644
        %v669 = vsel %vm391, %v557, %v653
        %v670 = vsel %vm392, %v558, %v661
        %v671 = vsel %vm391, %v559, %v654
        %v672 = vsel %vm392, %v560, %v662
        %v673 = vsel %vm391, %v561, %v655
        %v674 = vsel %vm392, %v562, %v663
        %v675 = vsel %vm391, %v563, %v656
        %v676 = vsel %vm392, %v564, %v664
        %v677 = vsel %vm391, %v565, %v657
        %v678 = vsel %vm392, %v566, %v665
        %v679 = vsel %vm391, %v567, %v658
        %v680 = vsel %vm392, %v568, %v666
        %v681 = vsel %vm391, %v569, %v659
        %v682 = vsel %vm392, %v570, %v667
        %v683 = vsel %vm391, %v571, %v660
        %v684 = vsel %vm392, %v572, %v668
        %v685 = vmax.f32 %v621, %v669
        %v686 = vmax.f32 %v622, %v670
        %v687 = vmax.f32 %v623, %v671
        %v688 = vmax.f32 %v624, %v672
        %v689 = vmax.f32 %v625, %v673
        %v690 = vmax.f32 %v626, %v674
        %v691 = vmax.f32 %v627, %v675
        %v692 = vmax.f32 %v628, %v676
        %v693 = vmax.f32 %v629, %v677
        %v694 = vmax.f32 %v630, %v678
        %v695 = vmax.f32 %v631, %v679
        %v696 = vmax.f32 %v632, %v680
        %v697 = vmax.f32 %v633, %v681
        %v698 = vmax.f32 %v634, %v682
        %v699 = vmax.f32 %v635, %v683
        %v700 = vmax.f32 %v636, %v684
        %701 = vrot.lane.b32.xlu0 %v685, 1
        %v702 = vpop.permute.xlu0 %701
        %703 = vrot.lane.b32.xlu0 %v686, 1
        %v704 = vpop.permute.xlu0 %703
        %705 = vrot.lane.b32.xlu0 %v687, 1
        %v706 = vpop.permute.xlu0 %705
        %707 = vrot.lane.b32.xlu0 %v688, 1
        %v708 = vpop.permute.xlu0 %707
        %709 = vrot.lane.b32.xlu0 %v689, 1
        %v710 = vpop.permute.xlu0 %709
        %711 = vrot.lane.b32.xlu0 %v690, 1
        %v712 = vpop.permute.xlu0 %711
        %713 = vrot.lane.b32.xlu0 %v691, 1
        %v714 = vpop.permute.xlu0 %713
        %715 = vrot.lane.b32.xlu0 %v692, 1
        %v716 = vpop.permute.xlu0 %715
        %717 = vrot.lane.b32.xlu0 %v693, 1
        %v718 = vpop.permute.xlu0 %717
        %719 = vrot.lane.b32.xlu0 %v694, 1
        %v720 = vpop.permute.xlu0 %719
        %721 = vrot.lane.b32.xlu0 %v695, 1
        %v722 = vpop.permute.xlu0 %721
        %723 = vrot.lane.b32.xlu0 %v696, 1
        %v724 = vpop.permute.xlu0 %723
        %725 = vrot.lane.b32.xlu0 %v697, 1
        %v726 = vpop.permute.xlu0 %725
        %727 = vrot.lane.b32.xlu0 %v698, 1
        %v728 = vpop.permute.xlu0 %727
        %729 = vrot.lane.b32.xlu0 %v699, 1
        %v730 = vpop.permute.xlu0 %729
        %731 = vrot.lane.b32.xlu0 %v700, 1
        %v732 = vpop.permute.xlu0 %731
        %v733 = vsel %vm458, %v685, %v702
        %v734 = vsel %vm458, %v686, %v704
        %v735 = vsel %vm458, %v687, %v706
        %v736 = vsel %vm458, %v688, %v708
        %v737 = vsel %vm458, %v689, %v710
        %v738 = vsel %vm458, %v690, %v712
        %v739 = vsel %vm458, %v691, %v714
        %v740 = vsel %vm458, %v692, %v716
        %v741 = vsel %vm458, %v693, %v718
        %v742 = vsel %vm458, %v694, %v720
        %v743 = vsel %vm458, %v695, %v722
        %v744 = vsel %vm458, %v696, %v724
        %v745 = vsel %vm458, %v697, %v726
        %v746 = vsel %vm458, %v698, %v728
        %v747 = vsel %vm458, %v699, %v730
        %v748 = vsel %vm458, %v700, %v732
        %v749 = vmax.f32 %v733, %v685
        %v750 = vmax.f32 %v734, %v686
        %v751 = vmax.f32 %v735, %v687
        %v752 = vmax.f32 %v736, %v688
        %v753 = vmax.f32 %v737, %v689
        %v754 = vmax.f32 %v738, %v690
        %v755 = vmax.f32 %v739, %v691
        %v756 = vmax.f32 %v740, %v692
        %v757 = vmax.f32 %v741, %v693
        %v758 = vmax.f32 %v742, %v694
        %v759 = vmax.f32 %v743, %v695
        %v760 = vmax.f32 %v744, %v696
        %v761 = vmax.f32 %v745, %v697
        %v762 = vmax.f32 %v746, %v698
        %v763 = vmax.f32 %v747, %v699
        %v764 = vmax.f32 %v748, %v700
        %765 = vrot.lane.b32.xlu0 %v685, 127
        %v766 = vpop.permute.xlu0 %765
        %767 = vrot.lane.b32.xlu0 %v686, 127
        %v768 = vpop.permute.xlu0 %767
        %769 = vrot.lane.b32.xlu0 %v687, 127
        %v770 = vpop.permute.xlu0 %769
        %771 = vrot.lane.b32.xlu0 %v688, 127
        %v772 = vpop.permute.xlu0 %771
        %773 = vrot.lane.b32.xlu0 %v689, 127
        %v774 = vpop.permute.xlu0 %773
        %775 = vrot.lane.b32.xlu0 %v690, 127
        %v776 = vpop.permute.xlu0 %775
        %777 = vrot.lane.b32.xlu0 %v691, 127
        %v778 = vpop.permute.xlu0 %777
        %779 = vrot.lane.b32.xlu0 %v692, 127
        %v780 = vpop.permute.xlu0 %779
        %781 = vrot.lane.b32.xlu0 %v693, 127
        %v782 = vpop.permute.xlu0 %781
        %783 = vrot.lane.b32.xlu0 %v694, 127
        %v784 = vpop.permute.xlu0 %783
        %785 = vrot.lane.b32.xlu0 %v695, 127
        %v786 = vpop.permute.xlu0 %785
        %787 = vrot.lane.b32.xlu0 %v696, 127
        %v788 = vpop.permute.xlu0 %787
        %789 = vrot.lane.b32.xlu0 %v697, 127
        %v790 = vpop.permute.xlu0 %789
        %791 = vrot.lane.b32.xlu0 %v698, 127
        %v792 = vpop.permute.xlu0 %791
        %793 = vrot.lane.b32.xlu0 %v699, 127
        %v794 = vpop.permute.xlu0 %793
        %795 = vrot.lane.b32.xlu0 %v700, 127
        %v796 = vpop.permute.xlu0 %795
        %v797 = vsel %vm524, %v685, %v766
        %v798 = vsel %vm524, %v686, %v768
        %v799 = vsel %vm524, %v687, %v770
        %v800 = vsel %vm524, %v688, %v772
        %v801 = vsel %vm524, %v689, %v774
        %v802 = vsel %vm524, %v690, %v776
        %v803 = vsel %vm524, %v691, %v778
        %v804 = vsel %vm524, %v692, %v780
        %v805 = vsel %vm524, %v693, %v782
        %v806 = vsel %vm524, %v694, %v784
        %v807 = vsel %vm524, %v695, %v786
        %v808 = vsel %vm524, %v696, %v788
        %v809 = vsel %vm524, %v697, %v790
        %v810 = vsel %vm524, %v698, %v792
        %v811 = vsel %vm524, %v699, %v794
        %v812 = vsel %vm524, %v700, %v796
        %v813 = vmax.f32 %v749, %v797
        %v814 = vmax.f32 %v750, %v798
        %v815 = vmax.f32 %v751, %v799
        %v816 = vmax.f32 %v752, %v800
        %v817 = vmax.f32 %v753, %v801
        %v818 = vmax.f32 %v754, %v802
        %v819 = vmax.f32 %v755, %v803
        %v820 = vmax.f32 %v756, %v804
        %v821 = vmax.f32 %v757, %v805
        %v822 = vmax.f32 %v758, %v806
        %v823 = vmax.f32 %v759, %v807
        %v824 = vmax.f32 %v760, %v808
        %v825 = vmax.f32 %v761, %v809
        %v826 = vmax.f32 %v762, %v810
        %v827 = vmax.f32 %v763, %v811
        %v828 = vmax.f32 %v764, %v812
        %v829 = vsub.f32 %v225, %v813
        %v830 = vsub.f32 %v226, %v814
        %v831 = vsub.f32 %v227, %v815
        %v832 = vsub.f32 %v228, %v816
        %v833 = vsub.f32 %v229, %v817
        %v834 = vsub.f32 %v230, %v818
        %v835 = vsub.f32 %v231, %v819
        %v836 = vsub.f32 %v232, %v820
        %v837 = vsub.f32 %v261, %v821
        %v838 = vsub.f32 %v262, %v822
        %v839 = vsub.f32 %v269, %v823
        %v840 = vsub.f32 %v270, %v824
        %v841 = vsub.f32 %v277, %v825
        %v842 = vsub.f32 %v278, %v826
        %v843 = vsub.f32 %v285, %v827
        %v844 = vsub.f32 %v286, %v828
        %v845 = vmax.f32 %v829, 0.0
        %v846 = vmax.f32 %v830, 0.0
        %v847 = vmax.f32 %v831, 0.0
        %v848 = vmax.f32 %v832, 0.0
        %v849 = vmax.f32 %v833, 0.0
        %v850 = vmax.f32 %v834, 0.0
        %v851 = vmax.f32 %v835, 0.0
        %v852 = vmax.f32 %v836, 0.0
        %v853 = vmax.f32 %v837, 0.0
        %v854 = vmax.f32 %v838, 0.0
        %v855 = vmax.f32 %v839, 0.0
        %v856 = vmax.f32 %v840, 0.0
        %v857 = vmax.f32 %v841, 0.0
        %v858 = vmax.f32 %v842, 0.0
        %v859 = vmax.f32 %v843, 0.0
        %v860 = vmax.f32 %v844, 0.0
        %v861 = vand.u32 2147483647, %v557
        %v862 = vand.u32 2147483647, %v558
        %v863 = vand.u32 2147483647, %v559
        %v864 = vand.u32 2147483647, %v560
        %v865 = vand.u32 2147483647, %v561
        %v866 = vand.u32 2147483647, %v562
        %v867 = vand.u32 2147483647, %v563
        %v868 = vand.u32 2147483647, %v564
        %v869 = vand.u32 2147483647, %v565
        %v870 = vand.u32 2147483647, %v566
        %v871 = vand.u32 2147483647, %v567
        %v872 = vand.u32 2147483647, %v568
        %v873 = vand.u32 2147483647, %v569
        %v874 = vand.u32 2147483647, %v570
        %v875 = vand.u32 2147483647, %v571
        %v876 = vand.u32 2147483647, %v572
        %v877 = vmul.f32 %v861, %v253
        %v878 = vmul.f32 %v862, %v254
        %v879 = vmul.f32 %v863, %v253
        %v880 = vmul.f32 %v864, %v254
        %v881 = vmul.f32 %v865, %v253
        %v882 = vmul.f32 %v866, %v254
        %v883 = vmul.f32 %v867, %v253
        %v884 = vmul.f32 %v868, %v254
        %v885 = vmul.f32 %v869, %v253
        %v886 = vmul.f32 %v870, %v254
        %v887 = vmul.f32 %v871, %v253
        %v888 = vmul.f32 %v872, %v254
        %v889 = vmul.f32 %v873, %v253
        %v890 = vmul.f32 %v874, %v254
        %v891 = vmul.f32 %v875, %v253
        %v892 = vmul.f32 %v876, %v254
        %v893 = vadd.f32 %v877, %v878
        %v894 = vadd.f32 %v893, %v879
        %v895 = vadd.f32 %v894, %v880
        %v896 = vadd.f32 %v895, %v881
        %v897 = vadd.f32 %v896, %v882
        %v898 = vadd.f32 %v897, %v883
        %v899 = vadd.f32 %v898, %v884
        %v900 = vadd.f32 %v899, %v885
        %v901 = vadd.f32 %v900, %v886
        %v902 = vadd.f32 %v901, %v887
        %v903 = vadd.f32 %v902, %v888
        %v904 = vadd.f32 %v903, %v889
        %v905 = vadd.f32 %v904, %v890
        %v906 = vadd.f32 %v905, %v891
        %v907 = vadd.f32 %v906, %v892
        %908 = vadd.xlane.f32.xlu0 %v907
        %v909 = vpop.xlane.xlu0 %908
        %v910 = vrot.slane %v909, 4
        %v911 = vadd.f32 %v909, %v910
        %v912 = vrot.slane %v911, 2
        %v913 = vadd.f32 %v911, %v912
        %v914 = vrot.slane %v913, 1
        %v915 = vadd.f32 %v913, %v914
        %s916 = vtos %v915
        // While loop
        $region37: #{tpu_custom_call.1} parent=27 // loop_pre_header
          _
        $region38: #{tpu_custom_call.1} parent=27 // loop_header
          %v918 = vphi %v557, %v2798
          %v919 = vphi %v558, %v2799
          %v920 = vphi %v559, %v2800
          %v921 = vphi %v560, %v2801
          %v922 = vphi %v561, %v2802
          %v923 = vphi %v562, %v2803
          %v924 = vphi %v563, %v2804
          %v925 = vphi %v564, %v2805
          %v926 = vphi %v565, %v2806
          %v927 = vphi %v566, %v2807
          %v928 = vphi %v567, %v2808
          %v929 = vphi %v568, %v2809
          %v930 = vphi %v569, %v2810
          %v931 = vphi %v570, %v2811
          %v932 = vphi %v571, %v2812
          %v933 = vphi %v572, %v2813
          %v934 = vphi %v845, %v3150
          %v935 = vphi %v846, %v3151
          %v936 = vphi %v847, %v3152
          %v937 = vphi %v848, %v3153
          %v938 = vphi %v849, %v3154
          %v939 = vphi %v850, %v3155
          %v940 = vphi %v851, %v3156
          %v941 = vphi %v852, %v3157
          %v942 = vphi %v853, %v3158
          %v943 = vphi %v854, %v3159
          %v944 = vphi %v855, %v3160
          %v945 = vphi %v856, %v3161
          %v946 = vphi %v857, %v3162
          %v947 = vphi %v858, %v3163
          %v948 = vphi %v859, %v3164
          %v949 = vphi %v860, %v3165
          %s950 = sphi 0, %s3166
          %s951 = sphi %s916, %s3222
          %p952 = scmp.ne.f32.partialorder %s951, 0.0
          %p953 = scmp.lt.s32.totalorder %s950, 9
          %p954 = pnand %p952, %p953
          %p955 = pneg %p954
        $region39: #{tpu_custom_call.1} parent=27 // loop_header_branch
          %957 = sbr.rel (%p954) target = $region43
        $region40: #{tpu_custom_call.1} parent=27 // loop_body
          %v958 = vrot.slane %v918, 7
          %v959 = vrot.slane %v920, 7
          %v960 = vrot.slane %v922, 7
          %v961 = vrot.slane %v924, 7
          %v962 = vrot.slane %v926, 7
          %v963 = vrot.slane %v928, 7
          %v964 = vrot.slane %v930, 7
          %v965 = vrot.slane %v932, 7
          %v966 = vrot.slane %v919, 7
          %v967 = vrot.slane %v921, 7
          %v968 = vrot.slane %v923, 7
          %v969 = vrot.slane %v925, 7
          %v970 = vrot.slane %v927, 7
          %v971 = vrot.slane %v929, 7
          %v972 = vrot.slane %v931, 7
          %v973 = vrot.slane %v933, 7
          %v974 = vsel %vm303, %v958, %v966
          %v975 = vsel %vm303, %v959, %v967
          %v976 = vsel %vm303, %v960, %v968
          %v977 = vsel %vm303, %v961, %v969
          %v978 = vsel %vm303, %v962, %v970
          %v979 = vsel %vm303, %v963, %v971
          %v980 = vsel %vm303, %v964, %v972
          %v981 = vsel %vm303, %v965, %v973
          %v982 = vsel %vm303, %v966, %v958
          %v983 = vsel %vm303, %v967, %v959
          %v984 = vsel %vm303, %v968, %v960
          %v985 = vsel %vm303, %v969, %v961
          %v986 = vsel %vm303, %v970, %v962
          %v987 = vsel %vm303, %v971, %v963
          %v988 = vsel %vm303, %v972, %v964
          %v989 = vsel %vm303, %v973, %v965
          %v990 = vsel %vm322, %v918, %v982
          %v991 = vsel %vm323, %v919, %v974
          %v992 = vsel %vm322, %v920, %v983
          %v993 = vsel %vm323, %v921, %v975
          %v994 = vsel %vm322, %v922, %v984
          %v995 = vsel %vm323, %v923, %v976
          %v996 = vsel %vm322, %v924, %v985
          %v997 = vsel %vm323, %v925, %v977
          %v998 = vsel %vm322, %v926, %v986
          %v999 = vsel %vm323, %v927, %v978
          %v1000 = vsel %vm322, %v928, %v987
          %v1001 = vsel %vm323, %v929, %v979
          %v1002 = vsel %vm322, %v930, %v988
          %v1003 = vsel %vm323, %v931, %v980
          %v1004 = vsel %vm322, %v932, %v989
          %v1005 = vsel %vm323, %v933, %v981
          %v1006 = vmin.f32 %v990, %v918
          %v1007 = vmin.f32 %v991, %v919
          %v1008 = vmin.f32 %v992, %v920
          %v1009 = vmin.f32 %v993, %v921
          %v1010 = vmin.f32 %v994, %v922
          %v1011 = vmin.f32 %v995, %v923
          %v1012 = vmin.f32 %v996, %v924
          %v1013 = vmin.f32 %v997, %v925
          %v1014 = vmin.f32 %v998, %v926
          %v1015 = vmin.f32 %v999, %v927
          %v1016 = vmin.f32 %v1000, %v928
          %v1017 = vmin.f32 %v1001, %v929
          %v1018 = vmin.f32 %v1002, %v930
          %v1019 = vmin.f32 %v1003, %v931
          %v1020 = vmin.f32 %v1004, %v932
          %v1021 = vmin.f32 %v1005, %v933
          %v1022 = vrot.slane %v918, 1
          %v1023 = vrot.slane %v920, 1
          %v1024 = vrot.slane %v922, 1
          %v1025 = vrot.slane %v924, 1
          %v1026 = vrot.slane %v926, 1
          %v1027 = vrot.slane %v928, 1
          %v1028 = vrot.slane %v930, 1
          %v1029 = vrot.slane %v932, 1
          %v1030 = vrot.slane %v919, 1
          %v1031 = vrot.slane %v921, 1
          %v1032 = vrot.slane %v923, 1
          %v1033 = vrot.slane %v925, 1
          %v1034 = vrot.slane %v927, 1
          %v1035 = vrot.slane %v929, 1
          %v1036 = vrot.slane %v931, 1
          %v1037 = vrot.slane %v933, 1
          %v1038 = vsel %vm372, %v1022, %v1030
          %v1039 = vsel %vm372, %v1023, %v1031
          %v1040 = vsel %vm372, %v1024, %v1032
          %v1041 = vsel %vm372, %v1025, %v1033
          %v1042 = vsel %vm372, %v1026, %v1034
          %v1043 = vsel %vm372, %v1027, %v1035
          %v1044 = vsel %vm372, %v1028, %v1036
          %v1045 = vsel %vm372, %v1029, %v1037
          %v1046 = vsel %vm372, %v1030, %v1022
          %v1047 = vsel %vm372, %v1031, %v1023
          %v1048 = vsel %vm372, %v1032, %v1024
          %v1049 = vsel %vm372, %v1033, %v1025
          %v1050 = vsel %vm372, %v1034, %v1026
          %v1051 = vsel %vm372, %v1035, %v1027
          %v1052 = vsel %vm372, %v1036, %v1028
          %v1053 = vsel %vm372, %v1037, %v1029
          %v1054 = vsel %vm391, %v918, %v1038
          %v1055 = vsel %vm392, %v919, %v1046
          %v1056 = vsel %vm391, %v920, %v1039
          %v1057 = vsel %vm392, %v921, %v1047
          %v1058 = vsel %vm391, %v922, %v1040
          %v1059 = vsel %vm392, %v923, %v1048
          %v1060 = vsel %vm391, %v924, %v1041
          %v1061 = vsel %vm392, %v925, %v1049
          %v1062 = vsel %vm391, %v926, %v1042
          %v1063 = vsel %vm392, %v927, %v1050
          %v1064 = vsel %vm391, %v928, %v1043
          %v1065 = vsel %vm392, %v929, %v1051
          %v1066 = vsel %vm391, %v930, %v1044
          %v1067 = vsel %vm392, %v931, %v1052
          %v1068 = vsel %vm391, %v932, %v1045
          %v1069 = vsel %vm392, %v933, %v1053
          %v1070 = vmin.f32 %v1006, %v1054
          %v1071 = vmin.f32 %v1007, %v1055
          %v1072 = vmin.f32 %v1008, %v1056
          %v1073 = vmin.f32 %v1009, %v1057
          %v1074 = vmin.f32 %v1010, %v1058
          %v1075 = vmin.f32 %v1011, %v1059
          %v1076 = vmin.f32 %v1012, %v1060
          %v1077 = vmin.f32 %v1013, %v1061
          %v1078 = vmin.f32 %v1014, %v1062
          %v1079 = vmin.f32 %v1015, %v1063
          %v1080 = vmin.f32 %v1016, %v1064
          %v1081 = vmin.f32 %v1017, %v1065
          %v1082 = vmin.f32 %v1018, %v1066
          %v1083 = vmin.f32 %v1019, %v1067
          %v1084 = vmin.f32 %v1020, %v1068
          %v1085 = vmin.f32 %v1021, %v1069
          %1086 = vrot.lane.b32.xlu0 %v918, 1
          %v1087 = vpop.permute.xlu0 %1086
          %1088 = vrot.lane.b32.xlu0 %v919, 1
          %v1089 = vpop.permute.xlu0 %1088
          %1090 = vrot.lane.b32.xlu0 %v920, 1
          %v1091 = vpop.permute.xlu0 %1090
          %1092 = vrot.lane.b32.xlu0 %v921, 1
          %v1093 = vpop.permute.xlu0 %1092
          %1094 = vrot.lane.b32.xlu0 %v922, 1
          %v1095 = vpop.permute.xlu0 %1094
          %1096 = vrot.lane.b32.xlu0 %v923, 1
          %v1097 = vpop.permute.xlu0 %1096
          %1098 = vrot.lane.b32.xlu0 %v924, 1
          %v1099 = vpop.permute.xlu0 %1098
          %1100 = vrot.lane.b32.xlu0 %v925, 1
          %v1101 = vpop.permute.xlu0 %1100
          %1102 = vrot.lane.b32.xlu0 %v926, 1
          %v1103 = vpop.permute.xlu0 %1102
          %1104 = vrot.lane.b32.xlu0 %v927, 1
          %v1105 = vpop.permute.xlu0 %1104
          %1106 = vrot.lane.b32.xlu0 %v928, 1
          %v1107 = vpop.permute.xlu0 %1106
          %1108 = vrot.lane.b32.xlu0 %v929, 1
          %v1109 = vpop.permute.xlu0 %1108
          %1110 = vrot.lane.b32.xlu0 %v930, 1
          %v1111 = vpop.permute.xlu0 %1110
          %1112 = vrot.lane.b32.xlu0 %v931, 1
          %v1113 = vpop.permute.xlu0 %1112
          %1114 = vrot.lane.b32.xlu0 %v932, 1
          %v1115 = vpop.permute.xlu0 %1114
          %1116 = vrot.lane.b32.xlu0 %v933, 1
          %v1117 = vpop.permute.xlu0 %1116
          %v1118 = vsel %vm458, %v918, %v1087
          %v1119 = vsel %vm458, %v919, %v1089
          %v1120 = vsel %vm458, %v920, %v1091
          %v1121 = vsel %vm458, %v921, %v1093
          %v1122 = vsel %vm458, %v922, %v1095
          %v1123 = vsel %vm458, %v923, %v1097
          %v1124 = vsel %vm458, %v924, %v1099
          %v1125 = vsel %vm458, %v925, %v1101
          %v1126 = vsel %vm458, %v926, %v1103
          %v1127 = vsel %vm458, %v927, %v1105
          %v1128 = vsel %vm458, %v928, %v1107
          %v1129 = vsel %vm458, %v929, %v1109
          %v1130 = vsel %vm458, %v930, %v1111
          %v1131 = vsel %vm458, %v931, %v1113
          %v1132 = vsel %vm458, %v932, %v1115
          %v1133 = vsel %vm458, %v933, %v1117
          %v1134 = vmin.f32 %v1118, %v918
          %v1135 = vmin.f32 %v1119, %v919
          %v1136 = vmin.f32 %v1120, %v920
          %v1137 = vmin.f32 %v1121, %v921
          %v1138 = vmin.f32 %v1122, %v922
          %v1139 = vmin.f32 %v1123, %v923
          %v1140 = vmin.f32 %v1124, %v924
          %v1141 = vmin.f32 %v1125, %v925
          %v1142 = vmin.f32 %v1126, %v926
          %v1143 = vmin.f32 %v1127, %v927
          %v1144 = vmin.f32 %v1128, %v928
          %v1145 = vmin.f32 %v1129, %v929
          %v1146 = vmin.f32 %v1130, %v930
          %v1147 = vmin.f32 %v1131, %v931
          %v1148 = vmin.f32 %v1132, %v932
          %v1149 = vmin.f32 %v1133, %v933
          %1150 = vrot.lane.b32.xlu0 %v918, 127
          %v1151 = vpop.permute.xlu0 %1150
          %1152 = vrot.lane.b32.xlu0 %v919, 127
          %v1153 = vpop.permute.xlu0 %1152
          %1154 = vrot.lane.b32.xlu0 %v920, 127
          %v1155 = vpop.permute.xlu0 %1154
          %1156 = vrot.lane.b32.xlu0 %v921, 127
          %v1157 = vpop.permute.xlu0 %1156
          %1158 = vrot.lane.b32.xlu0 %v922, 127
          %v1159 = vpop.permute.xlu0 %1158
          %1160 = vrot.lane.b32.xlu0 %v923, 127
          %v1161 = vpop.permute.xlu0 %1160
          %1162 = vrot.lane.b32.xlu0 %v924, 127
          %v1163 = vpop.permute.xlu0 %1162
          %1164 = vrot.lane.b32.xlu0 %v925, 127
          %v1165 = vpop.permute.xlu0 %1164
          %1166 = vrot.lane.b32.xlu0 %v926, 127
          %v1167 = vpop.permute.xlu0 %1166
          %1168 = vrot.lane.b32.xlu0 %v927, 127
          %v1169 = vpop.permute.xlu0 %1168
          %1170 = vrot.lane.b32.xlu0 %v928, 127
          %v1171 = vpop.permute.xlu0 %1170
          %1172 = vrot.lane.b32.xlu0 %v929, 127
          %v1173 = vpop.permute.xlu0 %1172
          %1174 = vrot.lane.b32.xlu0 %v930, 127
          %v1175 = vpop.permute.xlu0 %1174
          %1176 = vrot.lane.b32.xlu0 %v931, 127
          %v1177 = vpop.permute.xlu0 %1176
          %1178 = vrot.lane.b32.xlu0 %v932, 127
          %v1179 = vpop.permute.xlu0 %1178
          %1180 = vrot.lane.b32.xlu0 %v933, 127
          %v1181 = vpop.permute.xlu0 %1180
          %v1182 = vsel %vm524, %v918, %v1151
          %v1183 = vsel %vm524, %v919, %v1153
          %v1184 = vsel %vm524, %v920, %v1155
          %v1185 = vsel %vm524, %v921, %v1157
          %v1186 = vsel %vm524, %v922, %v1159
          %v1187 = vsel %vm524, %v923, %v1161
          %v1188 = vsel %vm524, %v924, %v1163
          %v1189 = vsel %vm524, %v925, %v1165
          %v1190 = vsel %vm524, %v926, %v1167
          %v1191 = vsel %vm524, %v927, %v1169
          %v1192 = vsel %vm524, %v928, %v1171
          %v1193 = vsel %vm524, %v929, %v1173
          %v1194 = vsel %vm524, %v930, %v1175
          %v1195 = vsel %vm524, %v931, %v1177
          %v1196 = vsel %vm524, %v932, %v1179
          %v1197 = vsel %vm524, %v933, %v1181
          %v1198 = vmin.f32 %v1134, %v1182
          %v1199 = vmin.f32 %v1135, %v1183
          %v1200 = vmin.f32 %v1136, %v1184
          %v1201 = vmin.f32 %v1137, %v1185
          %v1202 = vmin.f32 %v1138, %v1186
          %v1203 = vmin.f32 %v1139, %v1187
          %v1204 = vmin.f32 %v1140, %v1188
          %v1205 = vmin.f32 %v1141, %v1189
          %v1206 = vmin.f32 %v1142, %v1190
          %v1207 = vmin.f32 %v1143, %v1191
          %v1208 = vmin.f32 %v1144, %v1192
          %v1209 = vmin.f32 %v1145, %v1193
          %v1210 = vmin.f32 %v1146, %v1194
          %v1211 = vmin.f32 %v1147, %v1195
          %v1212 = vmin.f32 %v1148, %v1196
          %v1213 = vmin.f32 %v1149, %v1197
          %v1214 = vmin.f32 %v1070, %v1198
          %v1215 = vmin.f32 %v1071, %v1199
          %v1216 = vmin.f32 %v1072, %v1200
          %v1217 = vmin.f32 %v1073, %v1201
          %v1218 = vmin.f32 %v1074, %v1202
          %v1219 = vmin.f32 %v1075, %v1203
          %v1220 = vmin.f32 %v1076, %v1204
          %v1221 = vmin.f32 %v1077, %v1205
          %v1222 = vmin.f32 %v1078, %v1206
          %v1223 = vmin.f32 %v1079, %v1207
          %v1224 = vmin.f32 %v1080, %v1208
          %v1225 = vmin.f32 %v1081, %v1209
          %v1226 = vmin.f32 %v1082, %v1210
          %v1227 = vmin.f32 %v1083, %v1211
          %v1228 = vmin.f32 %v1084, %v1212
          %v1229 = vmin.f32 %v1085, %v1213
          %v1230 = vrot.slane %v1214, 7
          %v1231 = vrot.slane %v1216, 7
          %v1232 = vrot.slane %v1218, 7
          %v1233 = vrot.slane %v1220, 7
          %v1234 = vrot.slane %v1222, 7
          %v1235 = vrot.slane %v1224, 7
          %v1236 = vrot.slane %v1226, 7
          %v1237 = vrot.slane %v1228, 7
          %v1238 = vrot.slane %v1215, 7
          %v1239 = vrot.slane %v1217, 7
          %v1240 = vrot.slane %v1219, 7
          %v1241 = vrot.slane %v1221, 7
          %v1242 = vrot.slane %v1223, 7
          %v1243 = vrot.slane %v1225, 7
          %v1244 = vrot.slane %v1227, 7
          %v1245 = vrot.slane %v1229, 7
          %v1246 = vsel %vm303, %v1230, %v1238
          %v1247 = vsel %vm303, %v1231, %v1239
          %v1248 = vsel %vm303, %v1232, %v1240
          %v1249 = vsel %vm303, %v1233, %v1241
          %v1250 = vsel %vm303, %v1234, %v1242
          %v1251 = vsel %vm303, %v1235, %v1243
          %v1252 = vsel %vm303, %v1236, %v1244
          %v1253 = vsel %vm303, %v1237, %v1245
          %v1254 = vsel %vm303, %v1238, %v1230
          %v1255 = vsel %vm303, %v1239, %v1231
          %v1256 = vsel %vm303, %v1240, %v1232
          %v1257 = vsel %vm303, %v1241, %v1233
          %v1258 = vsel %vm303, %v1242, %v1234
          %v1259 = vsel %vm303, %v1243, %v1235
          %v1260 = vsel %vm303, %v1244, %v1236
          %v1261 = vsel %vm303, %v1245, %v1237
          %v1262 = vsel %vm322, %v1214, %v1254
          %v1263 = vsel %vm323, %v1215, %v1246
          %v1264 = vsel %vm322, %v1216, %v1255
          %v1265 = vsel %vm323, %v1217, %v1247
          %v1266 = vsel %vm322, %v1218, %v1256
          %v1267 = vsel %vm323, %v1219, %v1248
          %v1268 = vsel %vm322, %v1220, %v1257
          %v1269 = vsel %vm323, %v1221, %v1249
          %v1270 = vsel %vm322, %v1222, %v1258
          %v1271 = vsel %vm323, %v1223, %v1250
          %v1272 = vsel %vm322, %v1224, %v1259
          %v1273 = vsel %vm323, %v1225, %v1251
          %v1274 = vsel %vm322, %v1226, %v1260
          %v1275 = vsel %vm323, %v1227, %v1252
          %v1276 = vsel %vm322, %v1228, %v1261
          %v1277 = vsel %vm323, %v1229, %v1253
          %v1278 = vmax.f32 %v1262, %v1214
          %v1279 = vmax.f32 %v1263, %v1215
          %v1280 = vmax.f32 %v1264, %v1216
          %v1281 = vmax.f32 %v1265, %v1217
          %v1282 = vmax.f32 %v1266, %v1218
          %v1283 = vmax.f32 %v1267, %v1219
          %v1284 = vmax.f32 %v1268, %v1220
          %v1285 = vmax.f32 %v1269, %v1221
          %v1286 = vmax.f32 %v1270, %v1222
          %v1287 = vmax.f32 %v1271, %v1223
          %v1288 = vmax.f32 %v1272, %v1224
          %v1289 = vmax.f32 %v1273, %v1225
          %v1290 = vmax.f32 %v1274, %v1226
          %v1291 = vmax.f32 %v1275, %v1227
          %v1292 = vmax.f32 %v1276, %v1228
          %v1293 = vmax.f32 %v1277, %v1229
          %v1294 = vrot.slane %v1214, 1
          %v1295 = vrot.slane %v1216, 1
          %v1296 = vrot.slane %v1218, 1
          %v1297 = vrot.slane %v1220, 1
          %v1298 = vrot.slane %v1222, 1
          %v1299 = vrot.slane %v1224, 1
          %v1300 = vrot.slane %v1226, 1
          %v1301 = vrot.slane %v1228, 1
          %v1302 = vrot.slane %v1215, 1
          %v1303 = vrot.slane %v1217, 1
          %v1304 = vrot.slane %v1219, 1
          %v1305 = vrot.slane %v1221, 1
          %v1306 = vrot.slane %v1223, 1
          %v1307 = vrot.slane %v1225, 1
          %v1308 = vrot.slane %v1227, 1
          %v1309 = vrot.slane %v1229, 1
          %v1310 = vsel %vm372, %v1294, %v1302
          %v1311 = vsel %vm372, %v1295, %v1303
          %v1312 = vsel %vm372, %v1296, %v1304
          %v1313 = vsel %vm372, %v1297, %v1305
          %v1314 = vsel %vm372, %v1298, %v1306
          %v1315 = vsel %vm372, %v1299, %v1307
          %v1316 = vsel %vm372, %v1300, %v1308
          %v1317 = vsel %vm372, %v1301, %v1309
          %v1318 = vsel %vm372, %v1302, %v1294
          %v1319 = vsel %vm372, %v1303, %v1295
          %v1320 = vsel %vm372, %v1304, %v1296
          %v1321 = vsel %vm372, %v1305, %v1297
          %v1322 = vsel %vm372, %v1306, %v1298
          %v1323 = vsel %vm372, %v1307, %v1299
          %v1324 = vsel %vm372, %v1308, %v1300
          %v1325 = vsel %vm372, %v1309, %v1301
          %v1326 = vsel %vm391, %v1214, %v1310
          %v1327 = vsel %vm392, %v1215, %v1318
          %v1328 = vsel %vm391, %v1216, %v1311
          %v1329 = vsel %vm392, %v1217, %v1319
          %v1330 = vsel %vm391, %v1218, %v1312
          %v1331 = vsel %vm392, %v1219, %v1320
          %v1332 = vsel %vm391, %v1220, %v1313
          %v1333 = vsel %vm392, %v1221, %v1321
          %v1334 = vsel %vm391, %v1222, %v1314
          %v1335 = vsel %vm392, %v1223, %v1322
          %v1336 = vsel %vm391, %v1224, %v1315
          %v1337 = vsel %vm392, %v1225, %v1323
          %v1338 = vsel %vm391, %v1226, %v1316
          %v1339 = vsel %vm392, %v1227, %v1324
          %v1340 = vsel %vm391, %v1228, %v1317
          %v1341 = vsel %vm392, %v1229, %v1325
          %v1342 = vmax.f32 %v1278, %v1326
          %v1343 = vmax.f32 %v1279, %v1327
          %v1344 = vmax.f32 %v1280, %v1328
          %v1345 = vmax.f32 %v1281, %v1329
          %v1346 = vmax.f32 %v1282, %v1330
          %v1347 = vmax.f32 %v1283, %v1331
          %v1348 = vmax.f32 %v1284, %v1332
          %v1349 = vmax.f32 %v1285, %v1333
          %v1350 = vmax.f32 %v1286, %v1334
          %v1351 = vmax.f32 %v1287, %v1335
          %v1352 = vmax.f32 %v1288, %v1336
          %v1353 = vmax.f32 %v1289, %v1337
          %v1354 = vmax.f32 %v1290, %v1338
          %v1355 = vmax.f32 %v1291, %v1339
          %v1356 = vmax.f32 %v1292, %v1340
          %v1357 = vmax.f32 %v1293, %v1341
          %1358 = vrot.lane.b32.xlu0 %v1342, 1
          %v1359 = vpop.permute.xlu0 %1358
          %1360 = vrot.lane.b32.xlu0 %v1343, 1
          %v1361 = vpop.permute.xlu0 %1360
          %1362 = vrot.lane.b32.xlu0 %v1344, 1
          %v1363 = vpop.permute.xlu0 %1362
          %1364 = vrot.lane.b32.xlu0 %v1345, 1
          %v1365 = vpop.permute.xlu0 %1364
          %1366 = vrot.lane.b32.xlu0 %v1346, 1
          %v1367 = vpop.permute.xlu0 %1366
          %1368 = vrot.lane.b32.xlu0 %v1347, 1
          %v1369 = vpop.permute.xlu0 %1368
          %1370 = vrot.lane.b32.xlu0 %v1348, 1
          %v1371 = vpop.permute.xlu0 %1370
          %1372 = vrot.lane.b32.xlu0 %v1349, 1
          %v1373 = vpop.permute.xlu0 %1372
          %1374 = vrot.lane.b32.xlu0 %v1350, 1
          %v1375 = vpop.permute.xlu0 %1374
          %1376 = vrot.lane.b32.xlu0 %v1351, 1
          %v1377 = vpop.permute.xlu0 %1376
          %1378 = vrot.lane.b32.xlu0 %v1352, 1
          %v1379 = vpop.permute.xlu0 %1378
          %1380 = vrot.lane.b32.xlu0 %v1353, 1
          %v1381 = vpop.permute.xlu0 %1380
          %1382 = vrot.lane.b32.xlu0 %v1354, 1
          %v1383 = vpop.permute.xlu0 %1382
          %1384 = vrot.lane.b32.xlu0 %v1355, 1
          %v1385 = vpop.permute.xlu0 %1384
          %1386 = vrot.lane.b32.xlu0 %v1356, 1
          %v1387 = vpop.permute.xlu0 %1386
          %1388 = vrot.lane.b32.xlu0 %v1357, 1
          %v1389 = vpop.permute.xlu0 %1388
          %v1390 = vsel %vm458, %v1342, %v1359
          %v1391 = vsel %vm458, %v1343, %v1361
          %v1392 = vsel %vm458, %v1344, %v1363
          %v1393 = vsel %vm458, %v1345, %v1365
          %v1394 = vsel %vm458, %v1346, %v1367
          %v1395 = vsel %vm458, %v1347, %v1369
          %v1396 = vsel %vm458, %v1348, %v1371
          %v1397 = vsel %vm458, %v1349, %v1373
          %v1398 = vsel %vm458, %v1350, %v1375
          %v1399 = vsel %vm458, %v1351, %v1377
          %v1400 = vsel %vm458, %v1352, %v1379
          %v1401 = vsel %vm458, %v1353, %v1381
          %v1402 = vsel %vm458, %v1354, %v1383
          %v1403 = vsel %vm458, %v1355, %v1385
          %v1404 = vsel %vm458, %v1356, %v1387
          %v1405 = vsel %vm458, %v1357, %v1389
          %v1406 = vmax.f32 %v1390, %v1342
          %v1407 = vmax.f32 %v1391, %v1343
          %v1408 = vmax.f32 %v1392, %v1344
          %v1409 = vmax.f32 %v1393, %v1345
          %v1410 = vmax.f32 %v1394, %v1346
          %v1411 = vmax.f32 %v1395, %v1347
          %v1412 = vmax.f32 %v1396, %v1348
          %v1413 = vmax.f32 %v1397, %v1349
          %v1414 = vmax.f32 %v1398, %v1350
          %v1415 = vmax.f32 %v1399, %v1351
          %v1416 = vmax.f32 %v1400, %v1352
          %v1417 = vmax.f32 %v1401, %v1353
          %v1418 = vmax.f32 %v1402, %v1354
          %v1419 = vmax.f32 %v1403, %v1355
          %v1420 = vmax.f32 %v1404, %v1356
          %v1421 = vmax.f32 %v1405, %v1357
          %1422 = vrot.lane.b32.xlu0 %v1342, 127
          %v1423 = vpop.permute.xlu0 %1422
          %1424 = vrot.lane.b32.xlu0 %v1343, 127
          %v1425 = vpop.permute.xlu0 %1424
          %1426 = vrot.lane.b32.xlu0 %v1344, 127
          %v1427 = vpop.permute.xlu0 %1426
          %1428 = vrot.lane.b32.xlu0 %v1345, 127
          %v1429 = vpop.permute.xlu0 %1428
          %1430 = vrot.lane.b32.xlu0 %v1346, 127
          %v1431 = vpop.permute.xlu0 %1430
          %1432 = vrot.lane.b32.xlu0 %v1347, 127
          %v1433 = vpop.permute.xlu0 %1432
          %1434 = vrot.lane.b32.xlu0 %v1348, 127
          %v1435 = vpop.permute.xlu0 %1434
          %1436 = vrot.lane.b32.xlu0 %v1349, 127
          %v1437 = vpop.permute.xlu0 %1436
          %1438 = vrot.lane.b32.xlu0 %v1350, 127
          %v1439 = vpop.permute.xlu0 %1438
          %1440 = vrot.lane.b32.xlu0 %v1351, 127
          %v1441 = vpop.permute.xlu0 %1440
          %1442 = vrot.lane.b32.xlu0 %v1352, 127
          %v1443 = vpop.permute.xlu0 %1442
          %1444 = vrot.lane.b32.xlu0 %v1353, 127
          %v1445 = vpop.permute.xlu0 %1444
          %1446 = vrot.lane.b32.xlu0 %v1354, 127
          %v1447 = vpop.permute.xlu0 %1446
          %1448 = vrot.lane.b32.xlu0 %v1355, 127
          %v1449 = vpop.permute.xlu0 %1448
          %1450 = vrot.lane.b32.xlu0 %v1356, 127
          %v1451 = vpop.permute.xlu0 %1450
          %1452 = vrot.lane.b32.xlu0 %v1357, 127
          %v1453 = vpop.permute.xlu0 %1452
          %v1454 = vsel %vm524, %v1342, %v1423
          %v1455 = vsel %vm524, %v1343, %v1425
          %v1456 = vsel %vm524, %v1344, %v1427
          %v1457 = vsel %vm524, %v1345, %v1429
          %v1458 = vsel %vm524, %v1346, %v1431
          %v1459 = vsel %vm524, %v1347, %v1433
          %v1460 = vsel %vm524, %v1348, %v1435
          %v1461 = vsel %vm524, %v1349, %v1437
          %v1462 = vsel %vm524, %v1350, %v1439
          %v1463 = vsel %vm524, %v1351, %v1441
          %v1464 = vsel %vm524, %v1352, %v1443
          %v1465 = vsel %vm524, %v1353, %v1445
          %v1466 = vsel %vm524, %v1354, %v1447
          %v1467 = vsel %vm524, %v1355, %v1449
          %v1468 = vsel %vm524, %v1356, %v1451
          %v1469 = vsel %vm524, %v1357, %v1453
          %v1470 = vmax.f32 %v1406, %v1454
          %v1471 = vmax.f32 %v1407, %v1455
          %v1472 = vmax.f32 %v1408, %v1456
          %v1473 = vmax.f32 %v1409, %v1457
          %v1474 = vmax.f32 %v1410, %v1458
          %v1475 = vmax.f32 %v1411, %v1459
          %v1476 = vmax.f32 %v1412, %v1460
          %v1477 = vmax.f32 %v1413, %v1461
          %v1478 = vmax.f32 %v1414, %v1462
          %v1479 = vmax.f32 %v1415, %v1463
          %v1480 = vmax.f32 %v1416, %v1464
          %v1481 = vmax.f32 %v1417, %v1465
          %v1482 = vmax.f32 %v1418, %v1466
          %v1483 = vmax.f32 %v1419, %v1467
          %v1484 = vmax.f32 %v1420, %v1468
          %v1485 = vmax.f32 %v1421, %v1469
          %v1486 = vsub.f32 1.0, %v934
          %v1487 = vsub.f32 1.0, %v935
          %v1488 = vsub.f32 1.0, %v936
          %v1489 = vsub.f32 1.0, %v937
          %v1490 = vsub.f32 1.0, %v938
          %v1491 = vsub.f32 1.0, %v939
          %v1492 = vsub.f32 1.0, %v940
          %v1493 = vsub.f32 1.0, %v941
          %v1494 = vsub.f32 1.0, %v942
          %v1495 = vsub.f32 1.0, %v943
          %v1496 = vsub.f32 1.0, %v944
          %v1497 = vsub.f32 1.0, %v945
          %v1498 = vsub.f32 1.0, %v946
          %v1499 = vsub.f32 1.0, %v947
          %v1500 = vsub.f32 1.0, %v948
          %v1501 = vsub.f32 1.0, %v949
          %v1502 = vsub.f32 %v918, %v1470
          %v1503 = vsub.f32 %v919, %v1471
          %v1504 = vsub.f32 %v920, %v1472
          %v1505 = vsub.f32 %v921, %v1473
          %v1506 = vsub.f32 %v922, %v1474
          %v1507 = vsub.f32 %v923, %v1475
          %v1508 = vsub.f32 %v924, %v1476
          %v1509 = vsub.f32 %v925, %v1477
          %v1510 = vsub.f32 %v926, %v1478
          %v1511 = vsub.f32 %v927, %v1479
          %v1512 = vsub.f32 %v928, %v1480
          %v1513 = vsub.f32 %v929, %v1481
          %v1514 = vsub.f32 %v930, %v1482
          %v1515 = vsub.f32 %v931, %v1483
          %v1516 = vsub.f32 %v932, %v1484
          %v1517 = vsub.f32 %v933, %v1485
          %v1518 = vmax.f32 %v1502, 0.0
          %v1519 = vmax.f32 %v1503, 0.0
          %v1520 = vmax.f32 %v1504, 0.0
          %v1521 = vmax.f32 %v1505, 0.0
          %v1522 = vmax.f32 %v1506, 0.0
          %v1523 = vmax.f32 %v1507, 0.0
          %v1524 = vmax.f32 %v1508, 0.0
          %v1525 = vmax.f32 %v1509, 0.0
          %v1526 = vmax.f32 %v1510, 0.0
          %v1527 = vmax.f32 %v1511, 0.0
          %v1528 = vmax.f32 %v1512, 0.0
          %v1529 = vmax.f32 %v1513, 0.0
          %v1530 = vmax.f32 %v1514, 0.0
          %v1531 = vmax.f32 %v1515, 0.0
          %v1532 = vmax.f32 %v1516, 0.0
          %v1533 = vmax.f32 %v1517, 0.0
          %v1534 = vmul.f32 %v1486, %v1518
          %v1535 = vmul.f32 %v1487, %v1519
          %v1536 = vmul.f32 %v1488, %v1520
          %v1537 = vmul.f32 %v1489, %v1521
          %v1538 = vmul.f32 %v1490, %v1522
          %v1539 = vmul.f32 %v1491, %v1523
          %v1540 = vmul.f32 %v1492, %v1524
          %v1541 = vmul.f32 %v1493, %v1525
          %v1542 = vmul.f32 %v1494, %v1526
          %v1543 = vmul.f32 %v1495, %v1527
          %v1544 = vmul.f32 %v1496, %v1528
          %v1545 = vmul.f32 %v1497, %v1529
          %v1546 = vmul.f32 %v1498, %v1530
          %v1547 = vmul.f32 %v1499, %v1531
          %v1548 = vmul.f32 %v1500, %v1532
          %v1549 = vmul.f32 %v1501, %v1533
          %v1550 = vmax.f32 %v1534, 0.0
          %v1551 = vmax.f32 %v1535, 0.0
          %v1552 = vmax.f32 %v1536, 0.0
          %v1553 = vmax.f32 %v1537, 0.0
          %v1554 = vmax.f32 %v1538, 0.0
          %v1555 = vmax.f32 %v1539, 0.0
          %v1556 = vmax.f32 %v1540, 0.0
          %v1557 = vmax.f32 %v1541, 0.0
          %v1558 = vmax.f32 %v1542, 0.0
          %v1559 = vmax.f32 %v1543, 0.0
          %v1560 = vmax.f32 %v1544, 0.0
          %v1561 = vmax.f32 %v1545, 0.0
          %v1562 = vmax.f32 %v1546, 0.0
          %v1563 = vmax.f32 %v1547, 0.0
          %v1564 = vmax.f32 %v1548, 0.0
          %v1565 = vmax.f32 %v1549, 0.0
          %v1566 = vadd.f32 %v934, %v1550
          %v1567 = vadd.f32 %v935, %v1551
          %v1568 = vadd.f32 %v936, %v1552
          %v1569 = vadd.f32 %v937, %v1553
          %v1570 = vadd.f32 %v938, %v1554
          %v1571 = vadd.f32 %v939, %v1555
          %v1572 = vadd.f32 %v940, %v1556
          %v1573 = vadd.f32 %v941, %v1557
          %v1574 = vadd.f32 %v942, %v1558
          %v1575 = vadd.f32 %v943, %v1559
          %v1576 = vadd.f32 %v944, %v1560
          %v1577 = vadd.f32 %v945, %v1561
          %v1578 = vadd.f32 %v946, %v1562
          %v1579 = vadd.f32 %v947, %v1563
          %v1580 = vadd.f32 %v948, %v1564
          %v1581 = vadd.f32 %v949, %v1565
          %v1582 = vmin.f32 %v1262, %v1214
          %v1583 = vmin.f32 %v1263, %v1215
          %v1584 = vmin.f32 %v1264, %v1216
          %v1585 = vmin.f32 %v1265, %v1217
          %v1586 = vmin.f32 %v1266, %v1218
          %v1587 = vmin.f32 %v1267, %v1219
          %v1588 = vmin.f32 %v1268, %v1220
          %v1589 = vmin.f32 %v1269, %v1221
          %v1590 = vmin.f32 %v1270, %v1222
          %v1591 = vmin.f32 %v1271, %v1223
          %v1592 = vmin.f32 %v1272, %v1224
          %v1593 = vmin.f32 %v1273, %v1225
          %v1594 = vmin.f32 %v1274, %v1226
          %v1595 = vmin.f32 %v1275, %v1227
          %v1596 = vmin.f32 %v1276, %v1228
          %v1597 = vmin.f32 %v1277, %v1229
          %v1598 = vmin.f32 %v1582, %v1326
          %v1599 = vmin.f32 %v1583, %v1327
          %v1600 = vmin.f32 %v1584, %v1328
          %v1601 = vmin.f32 %v1585, %v1329
          %v1602 = vmin.f32 %v1586, %v1330
          %v1603 = vmin.f32 %v1587, %v1331
          %v1604 = vmin.f32 %v1588, %v1332
          %v1605 = vmin.f32 %v1589, %v1333
          %v1606 = vmin.f32 %v1590, %v1334
          %v1607 = vmin.f32 %v1591, %v1335
          %v1608 = vmin.f32 %v1592, %v1336
          %v1609 = vmin.f32 %v1593, %v1337
          %v1610 = vmin.f32 %v1594, %v1338
          %v1611 = vmin.f32 %v1595, %v1339
          %v1612 = vmin.f32 %v1596, %v1340
          %v1613 = vmin.f32 %v1597, %v1341
          %1614 = vrot.lane.b32.xlu0 %v1214, 1
          %v1615 = vpop.permute.xlu0 %1614
          %1616 = vrot.lane.b32.xlu0 %v1215, 1
          %v1617 = vpop.permute.xlu0 %1616
          %1618 = vrot.lane.b32.xlu0 %v1216, 1
          %v1619 = vpop.permute.xlu0 %1618
          %1620 = vrot.lane.b32.xlu0 %v1217, 1
          %v1621 = vpop.permute.xlu0 %1620
          %1622 = vrot.lane.b32.xlu0 %v1218, 1
          %v1623 = vpop.permute.xlu0 %1622
          %1624 = vrot.lane.b32.xlu0 %v1219, 1
          %v1625 = vpop.permute.xlu0 %1624
          %1626 = vrot.lane.b32.xlu0 %v1220, 1
          %v1627 = vpop.permute.xlu0 %1626
          %1628 = vrot.lane.b32.xlu0 %v1221, 1
          %v1629 = vpop.permute.xlu0 %1628
          %1630 = vrot.lane.b32.xlu0 %v1222, 1
          %v1631 = vpop.permute.xlu0 %1630
          %1632 = vrot.lane.b32.xlu0 %v1223, 1
          %v1633 = vpop.permute.xlu0 %1632
          %1634 = vrot.lane.b32.xlu0 %v1224, 1
          %v1635 = vpop.permute.xlu0 %1634
          %1636 = vrot.lane.b32.xlu0 %v1225, 1
          %v1637 = vpop.permute.xlu0 %1636
          %1638 = vrot.lane.b32.xlu0 %v1226, 1
          %v1639 = vpop.permute.xlu0 %1638
          %1640 = vrot.lane.b32.xlu0 %v1227, 1
          %v1641 = vpop.permute.xlu0 %1640
          %1642 = vrot.lane.b32.xlu0 %v1228, 1
          %v1643 = vpop.permute.xlu0 %1642
          %1644 = vrot.lane.b32.xlu0 %v1229, 1
          %v1645 = vpop.permute.xlu0 %1644
          %v1646 = vsel %vm458, %v1214, %v1615
          %v1647 = vsel %vm458, %v1215, %v1617
          %v1648 = vsel %vm458, %v1216, %v1619
          %v1649 = vsel %vm458, %v1217, %v1621
          %v1650 = vsel %vm458, %v1218, %v1623
          %v1651 = vsel %vm458, %v1219, %v1625
          %v1652 = vsel %vm458, %v1220, %v1627
          %v1653 = vsel %vm458, %v1221, %v1629
          %v1654 = vsel %vm458, %v1222, %v1631
          %v1655 = vsel %vm458, %v1223, %v1633
          %v1656 = vsel %vm458, %v1224, %v1635
          %v1657 = vsel %vm458, %v1225, %v1637
          %v1658 = vsel %vm458, %v1226, %v1639
          %v1659 = vsel %vm458, %v1227, %v1641
          %v1660 = vsel %vm458, %v1228, %v1643
          %v1661 = vsel %vm458, %v1229, %v1645
          %v1662 = vmin.f32 %v1646, %v1214
          %v1663 = vmin.f32 %v1647, %v1215
          %v1664 = vmin.f32 %v1648, %v1216
          %v1665 = vmin.f32 %v1649, %v1217
          %v1666 = vmin.f32 %v1650, %v1218
          %v1667 = vmin.f32 %v1651, %v1219
          %v1668 = vmin.f32 %v1652, %v1220
          %v1669 = vmin.f32 %v1653, %v1221
          %v1670 = vmin.f32 %v1654, %v1222
          %v1671 = vmin.f32 %v1655, %v1223
          %v1672 = vmin.f32 %v1656, %v1224
          %v1673 = vmin.f32 %v1657, %v1225
          %v1674 = vmin.f32 %v1658, %v1226
          %v1675 = vmin.f32 %v1659, %v1227
          %v1676 = vmin.f32 %v1660, %v1228
          %v1677 = vmin.f32 %v1661, %v1229
          %1678 = vrot.lane.b32.xlu0 %v1214, 127
          %v1679 = vpop.permute.xlu0 %1678
          %1680 = vrot.lane.b32.xlu0 %v1215, 127
          %v1681 = vpop.permute.xlu0 %1680
          %1682 = vrot.lane.b32.xlu0 %v1216, 127
          %v1683 = vpop.permute.xlu0 %1682
          %1684 = vrot.lane.b32.xlu0 %v1217, 127
          %v1685 = vpop.permute.xlu0 %1684
          %1686 = vrot.lane.b32.xlu0 %v1218, 127
          %v1687 = vpop.permute.xlu0 %1686
          %1688 = vrot.lane.b32.xlu0 %v1219, 127
          %v1689 = vpop.permute.xlu0 %1688
          %1690 = vrot.lane.b32.xlu0 %v1220, 127
          %v1691 = vpop.permute.xlu0 %1690
          %1692 = vrot.lane.b32.xlu0 %v1221, 127
          %v1693 = vpop.permute.xlu0 %1692
          %1694 = vrot.lane.b32.xlu0 %v1222, 127
          %v1695 = vpop.permute.xlu0 %1694
          %1696 = vrot.lane.b32.xlu0 %v1223, 127
          %v1697 = vpop.permute.xlu0 %1696
          %1698 = vrot.lane.b32.xlu0 %v1224, 127
          %v1699 = vpop.permute.xlu0 %1698
          %1700 = vrot.lane.b32.xlu0 %v1225, 127
          %v1701 = vpop.permute.xlu0 %1700
          %1702 = vrot.lane.b32.xlu0 %v1226, 127
          %v1703 = vpop.permute.xlu0 %1702
          %1704 = vrot.lane.b32.xlu0 %v1227, 127
          %v1705 = vpop.permute.xlu0 %1704
          %1706 = vrot.lane.b32.xlu0 %v1228, 127
          %v1707 = vpop.permute.xlu0 %1706
          %1708 = vrot.lane.b32.xlu0 %v1229, 127
          %v1709 = vpop.permute.xlu0 %1708
          %v1710 = vsel %vm524, %v1214, %v1679
          %v1711 = vsel %vm524, %v1215, %v1681
          %v1712 = vsel %vm524, %v1216, %v1683
          %v1713 = vsel %vm524, %v1217, %v1685
          %v1714 = vsel %vm524, %v1218, %v1687
          %v1715 = vsel %vm524, %v1219, %v1689
          %v1716 = vsel %vm524, %v1220, %v1691
          %v1717 = vsel %vm524, %v1221, %v1693
          %v1718 = vsel %vm524, %v1222, %v1695
          %v1719 = vsel %vm524, %v1223, %v1697
          %v1720 = vsel %vm524, %v1224, %v1699
          %v1721 = vsel %vm524, %v1225, %v1701
          %v1722 = vsel %vm524, %v1226, %v1703
          %v1723 = vsel %vm524, %v1227, %v1705
          %v1724 = vsel %vm524, %v1228, %v1707
          %v1725 = vsel %vm524, %v1229, %v1709
          %v1726 = vmin.f32 %v1662, %v1710
          %v1727 = vmin.f32 %v1663, %v1711
          %v1728 = vmin.f32 %v1664, %v1712
          %v1729 = vmin.f32 %v1665, %v1713
          %v1730 = vmin.f32 %v1666, %v1714
          %v1731 = vmin.f32 %v1667, %v1715
          %v1732 = vmin.f32 %v1668, %v1716
          %v1733 = vmin.f32 %v1669, %v1717
          %v1734 = vmin.f32 %v1670, %v1718
          %v1735 = vmin.f32 %v1671, %v1719
          %v1736 = vmin.f32 %v1672, %v1720
          %v1737 = vmin.f32 %v1673, %v1721
          %v1738 = vmin.f32 %v1674, %v1722
          %v1739 = vmin.f32 %v1675, %v1723
          %v1740 = vmin.f32 %v1676, %v1724
          %v1741 = vmin.f32 %v1677, %v1725
          %v1742 = vmin.f32 %v1598, %v1726
          %v1743 = vmin.f32 %v1599, %v1727
          %v1744 = vmin.f32 %v1600, %v1728
          %v1745 = vmin.f32 %v1601, %v1729
          %v1746 = vmin.f32 %v1602, %v1730
          %v1747 = vmin.f32 %v1603, %v1731
          %v1748 = vmin.f32 %v1604, %v1732
          %v1749 = vmin.f32 %v1605, %v1733
          %v1750 = vmin.f32 %v1606, %v1734
          %v1751 = vmin.f32 %v1607, %v1735
          %v1752 = vmin.f32 %v1608, %v1736
          %v1753 = vmin.f32 %v1609, %v1737
          %v1754 = vmin.f32 %v1610, %v1738
          %v1755 = vmin.f32 %v1611, %v1739
          %v1756 = vmin.f32 %v1612, %v1740
          %v1757 = vmin.f32 %v1613, %v1741
          %v1758 = vrot.slane %v1742, 7
          %v1759 = vrot.slane %v1744, 7
          %v1760 = vrot.slane %v1746, 7
          %v1761 = vrot.slane %v1748, 7
          %v1762 = vrot.slane %v1750, 7
          %v1763 = vrot.slane %v1752, 7
          %v1764 = vrot.slane %v1754, 7
          %v1765 = vrot.slane %v1756, 7
          %v1766 = vrot.slane %v1743, 7
          %v1767 = vrot.slane %v1745, 7
          %v1768 = vrot.slane %v1747, 7
          %v1769 = vrot.slane %v1749, 7
          %v1770 = vrot.slane %v1751, 7
          %v1771 = vrot.slane %v1753, 7
          %v1772 = vrot.slane %v1755, 7
          %v1773 = vrot.slane %v1757, 7
          %v1774 = vsel %vm303, %v1758, %v1766
          %v1775 = vsel %vm303, %v1759, %v1767
          %v1776 = vsel %vm303, %v1760, %v1768
          %v1777 = vsel %vm303, %v1761, %v1769
          %v1778 = vsel %vm303, %v1762, %v1770
          %v1779 = vsel %vm303, %v1763, %v1771
          %v1780 = vsel %vm303, %v1764, %v1772
          %v1781 = vsel %vm303, %v1765, %v1773
          %v1782 = vsel %vm303, %v1766, %v1758
          %v1783 = vsel %vm303, %v1767, %v1759
          %v1784 = vsel %vm303, %v1768, %v1760
          %v1785 = vsel %vm303, %v1769, %v1761
          %v1786 = vsel %vm303, %v1770, %v1762
          %v1787 = vsel %vm303, %v1771, %v1763
          %v1788 = vsel %vm303, %v1772, %v1764
          %v1789 = vsel %vm303, %v1773, %v1765
          %v1790 = vsel %vm322, %v1742, %v1782
          %v1791 = vsel %vm323, %v1743, %v1774
          %v1792 = vsel %vm322, %v1744, %v1783
          %v1793 = vsel %vm323, %v1745, %v1775
          %v1794 = vsel %vm322, %v1746, %v1784
          %v1795 = vsel %vm323, %v1747, %v1776
          %v1796 = vsel %vm322, %v1748, %v1785
          %v1797 = vsel %vm323, %v1749, %v1777
          %v1798 = vsel %vm322, %v1750, %v1786
          %v1799 = vsel %vm323, %v1751, %v1778
          %v1800 = vsel %vm322, %v1752, %v1787
          %v1801 = vsel %vm323, %v1753, %v1779
          %v1802 = vsel %vm322, %v1754, %v1788
          %v1803 = vsel %vm323, %v1755, %v1780
          %v1804 = vsel %vm322, %v1756, %v1789
          %v1805 = vsel %vm323, %v1757, %v1781
          %v1806 = vmax.f32 %v1790, %v1742
          %v1807 = vmax.f32 %v1791, %v1743
          %v1808 = vmax.f32 %v1792, %v1744
          %v1809 = vmax.f32 %v1793, %v1745
          %v1810 = vmax.f32 %v1794, %v1746
          %v1811 = vmax.f32 %v1795, %v1747
          %v1812 = vmax.f32 %v1796, %v1748
          %v1813 = vmax.f32 %v1797, %v1749
          %v1814 = vmax.f32 %v1798, %v1750
          %v1815 = vmax.f32 %v1799, %v1751
          %v1816 = vmax.f32 %v1800, %v1752
          %v1817 = vmax.f32 %v1801, %v1753
          %v1818 = vmax.f32 %v1802, %v1754
          %v1819 = vmax.f32 %v1803, %v1755
          %v1820 = vmax.f32 %v1804, %v1756
          %v1821 = vmax.f32 %v1805, %v1757
          %v1822 = vrot.slane %v1742, 1
          %v1823 = vrot.slane %v1744, 1
          %v1824 = vrot.slane %v1746, 1
          %v1825 = vrot.slane %v1748, 1
          %v1826 = vrot.slane %v1750, 1
          %v1827 = vrot.slane %v1752, 1
          %v1828 = vrot.slane %v1754, 1
          %v1829 = vrot.slane %v1756, 1
          %v1830 = vrot.slane %v1743, 1
          %v1831 = vrot.slane %v1745, 1
          %v1832 = vrot.slane %v1747, 1
          %v1833 = vrot.slane %v1749, 1
          %v1834 = vrot.slane %v1751, 1
          %v1835 = vrot.slane %v1753, 1
          %v1836 = vrot.slane %v1755, 1
          %v1837 = vrot.slane %v1757, 1
          %v1838 = vsel %vm372, %v1822, %v1830
          %v1839 = vsel %vm372, %v1823, %v1831
          %v1840 = vsel %vm372, %v1824, %v1832
          %v1841 = vsel %vm372, %v1825, %v1833
          %v1842 = vsel %vm372, %v1826, %v1834
          %v1843 = vsel %vm372, %v1827, %v1835
          %v1844 = vsel %vm372, %v1828, %v1836
          %v1845 = vsel %vm372, %v1829, %v1837
          %v1846 = vsel %vm372, %v1830, %v1822
          %v1847 = vsel %vm372, %v1831, %v1823
          %v1848 = vsel %vm372, %v1832, %v1824
          %v1849 = vsel %vm372, %v1833, %v1825
          %v1850 = vsel %vm372, %v1834, %v1826
          %v1851 = vsel %vm372, %v1835, %v1827
          %v1852 = vsel %vm372, %v1836, %v1828
          %v1853 = vsel %vm372, %v1837, %v1829
          %v1854 = vsel %vm391, %v1742, %v1838
          %v1855 = vsel %vm392, %v1743, %v1846
          %v1856 = vsel %vm391, %v1744, %v1839
          %v1857 = vsel %vm392, %v1745, %v1847
          %v1858 = vsel %vm391, %v1746, %v1840
          %v1859 = vsel %vm392, %v1747, %v1848
          %v1860 = vsel %vm391, %v1748, %v1841
          %v1861 = vsel %vm392, %v1749, %v1849
          %v1862 = vsel %vm391, %v1750, %v1842
          %v1863 = vsel %vm392, %v1751, %v1850
          %v1864 = vsel %vm391, %v1752, %v1843
          %v1865 = vsel %vm392, %v1753, %v1851
          %v1866 = vsel %vm391, %v1754, %v1844
          %v1867 = vsel %vm392, %v1755, %v1852
          %v1868 = vsel %vm391, %v1756, %v1845
          %v1869 = vsel %vm392, %v1757, %v1853
          %v1870 = vmax.f32 %v1806, %v1854
          %v1871 = vmax.f32 %v1807, %v1855
          %v1872 = vmax.f32 %v1808, %v1856
          %v1873 = vmax.f32 %v1809, %v1857
          %v1874 = vmax.f32 %v1810, %v1858
          %v1875 = vmax.f32 %v1811, %v1859
          %v1876 = vmax.f32 %v1812, %v1860
          %v1877 = vmax.f32 %v1813, %v1861
          %v1878 = vmax.f32 %v1814, %v1862
          %v1879 = vmax.f32 %v1815, %v1863
          %v1880 = vmax.f32 %v1816, %v1864
          %v1881 = vmax.f32 %v1817, %v1865
          %v1882 = vmax.f32 %v1818, %v1866
          %v1883 = vmax.f32 %v1819, %v1867
          %v1884 = vmax.f32 %v1820, %v1868
          %v1885 = vmax.f32 %v1821, %v1869
          %1886 = vrot.lane.b32.xlu0 %v1870, 1
          %v1887 = vpop.permute.xlu0 %1886
          %1888 = vrot.lane.b32.xlu0 %v1871, 1
          %v1889 = vpop.permute.xlu0 %1888
          %1890 = vrot.lane.b32.xlu0 %v1872, 1
          %v1891 = vpop.permute.xlu0 %1890
          %1892 = vrot.lane.b32.xlu0 %v1873, 1
          %v1893 = vpop.permute.xlu0 %1892
          %1894 = vrot.lane.b32.xlu0 %v1874, 1
          %v1895 = vpop.permute.xlu0 %1894
          %1896 = vrot.lane.b32.xlu0 %v1875, 1
          %v1897 = vpop.permute.xlu0 %1896
          %1898 = vrot.lane.b32.xlu0 %v1876, 1
          %v1899 = vpop.permute.xlu0 %1898
          %1900 = vrot.lane.b32.xlu0 %v1877, 1
          %v1901 = vpop.permute.xlu0 %1900
          %1902 = vrot.lane.b32.xlu0 %v1878, 1
          %v1903 = vpop.permute.xlu0 %1902
          %1904 = vrot.lane.b32.xlu0 %v1879, 1
          %v1905 = vpop.permute.xlu0 %1904
          %1906 = vrot.lane.b32.xlu0 %v1880, 1
          %v1907 = vpop.permute.xlu0 %1906
          %1908 = vrot.lane.b32.xlu0 %v1881, 1
          %v1909 = vpop.permute.xlu0 %1908
          %1910 = vrot.lane.b32.xlu0 %v1882, 1
          %v1911 = vpop.permute.xlu0 %1910
          %1912 = vrot.lane.b32.xlu0 %v1883, 1
          %v1913 = vpop.permute.xlu0 %1912
          %1914 = vrot.lane.b32.xlu0 %v1884, 1
          %v1915 = vpop.permute.xlu0 %1914
          %1916 = vrot.lane.b32.xlu0 %v1885, 1
          %v1917 = vpop.permute.xlu0 %1916
          %v1918 = vsel %vm458, %v1870, %v1887
          %v1919 = vsel %vm458, %v1871, %v1889
          %v1920 = vsel %vm458, %v1872, %v1891
          %v1921 = vsel %vm458, %v1873, %v1893
          %v1922 = vsel %vm458, %v1874, %v1895
          %v1923 = vsel %vm458, %v1875, %v1897
          %v1924 = vsel %vm458, %v1876, %v1899
          %v1925 = vsel %vm458, %v1877, %v1901
          %v1926 = vsel %vm458, %v1878, %v1903
          %v1927 = vsel %vm458, %v1879, %v1905
          %v1928 = vsel %vm458, %v1880, %v1907
          %v1929 = vsel %vm458, %v1881, %v1909
          %v1930 = vsel %vm458, %v1882, %v1911
          %v1931 = vsel %vm458, %v1883, %v1913
          %v1932 = vsel %vm458, %v1884, %v1915
          %v1933 = vsel %vm458, %v1885, %v1917
          %v1934 = vmax.f32 %v1918, %v1870
          %v1935 = vmax.f32 %v1919, %v1871
          %v1936 = vmax.f32 %v1920, %v1872
          %v1937 = vmax.f32 %v1921, %v1873
          %v1938 = vmax.f32 %v1922, %v1874
          %v1939 = vmax.f32 %v1923, %v1875
          %v1940 = vmax.f32 %v1924, %v1876
          %v1941 = vmax.f32 %v1925, %v1877
          %v1942 = vmax.f32 %v1926, %v1878
          %v1943 = vmax.f32 %v1927, %v1879
          %v1944 = vmax.f32 %v1928, %v1880
          %v1945 = vmax.f32 %v1929, %v1881
          %v1946 = vmax.f32 %v1930, %v1882
          %v1947 = vmax.f32 %v1931, %v1883
          %v1948 = vmax.f32 %v1932, %v1884
          %v1949 = vmax.f32 %v1933, %v1885
          %1950 = vrot.lane.b32.xlu0 %v1870, 127
          %v1951 = vpop.permute.xlu0 %1950
          %1952 = vrot.lane.b32.xlu0 %v1871, 127
          %v1953 = vpop.permute.xlu0 %1952
          %1954 = vrot.lane.b32.xlu0 %v1872, 127
          %v1955 = vpop.permute.xlu0 %1954
          %1956 = vrot.lane.b32.xlu0 %v1873, 127
          %v1957 = vpop.permute.xlu0 %1956
          %1958 = vrot.lane.b32.xlu0 %v1874, 127
          %v1959 = vpop.permute.xlu0 %1958
          %1960 = vrot.lane.b32.xlu0 %v1875, 127
          %v1961 = vpop.permute.xlu0 %1960
          %1962 = vrot.lane.b32.xlu0 %v1876, 127
          %v1963 = vpop.permute.xlu0 %1962
          %1964 = vrot.lane.b32.xlu0 %v1877, 127
          %v1965 = vpop.permute.xlu0 %1964
          %1966 = vrot.lane.b32.xlu0 %v1878, 127
          %v1967 = vpop.permute.xlu0 %1966
          %1968 = vrot.lane.b32.xlu0 %v1879, 127
          %v1969 = vpop.permute.xlu0 %1968
          %1970 = vrot.lane.b32.xlu0 %v1880, 127
          %v1971 = vpop.permute.xlu0 %1970
          %1972 = vrot.lane.b32.xlu0 %v1881, 127
          %v1973 = vpop.permute.xlu0 %1972
          %1974 = vrot.lane.b32.xlu0 %v1882, 127
          %v1975 = vpop.permute.xlu0 %1974
          %1976 = vrot.lane.b32.xlu0 %v1883, 127
          %v1977 = vpop.permute.xlu0 %1976
          %1978 = vrot.lane.b32.xlu0 %v1884, 127
          %v1979 = vpop.permute.xlu0 %1978
          %1980 = vrot.lane.b32.xlu0 %v1885, 127
          %v1981 = vpop.permute.xlu0 %1980
          %v1982 = vsel %vm524, %v1870, %v1951
          %v1983 = vsel %vm524, %v1871, %v1953
          %v1984 = vsel %vm524, %v1872, %v1955
          %v1985 = vsel %vm524, %v1873, %v1957
          %v1986 = vsel %vm524, %v1874, %v1959
          %v1987 = vsel %vm524, %v1875, %v1961
          %v1988 = vsel %vm524, %v1876, %v1963
          %v1989 = vsel %vm524, %v1877, %v1965
          %v1990 = vsel %vm524, %v1878, %v1967
          %v1991 = vsel %vm524, %v1879, %v1969
          %v1992 = vsel %vm524, %v1880, %v1971
          %v1993 = vsel %vm524, %v1881, %v1973
          %v1994 = vsel %vm524, %v1882, %v1975
          %v1995 = vsel %vm524, %v1883, %v1977
          %v1996 = vsel %vm524, %v1884, %v1979
          %v1997 = vsel %vm524, %v1885, %v1981
          %v1998 = vmax.f32 %v1934, %v1982
          %v1999 = vmax.f32 %v1935, %v1983
          %v2000 = vmax.f32 %v1936, %v1984
          %v2001 = vmax.f32 %v1937, %v1985
          %v2002 = vmax.f32 %v1938, %v1986
          %v2003 = vmax.f32 %v1939, %v1987
          %v2004 = vmax.f32 %v1940, %v1988
          %v2005 = vmax.f32 %v1941, %v1989
          %v2006 = vmax.f32 %v1942, %v1990
          %v2007 = vmax.f32 %v1943, %v1991
          %v2008 = vmax.f32 %v1944, %v1992
          %v2009 = vmax.f32 %v1945, %v1993
          %v2010 = vmax.f32 %v1946, %v1994
          %v2011 = vmax.f32 %v1947, %v1995
          %v2012 = vmax.f32 %v1948, %v1996
          %v2013 = vmax.f32 %v1949, %v1997
          %v2014 = vsub.f32 1.0, %v1566
          %v2015 = vsub.f32 1.0, %v1567
          %v2016 = vsub.f32 1.0, %v1568
          %v2017 = vsub.f32 1.0, %v1569
          %v2018 = vsub.f32 1.0, %v1570
          %v2019 = vsub.f32 1.0, %v1571
          %v2020 = vsub.f32 1.0, %v1572
          %v2021 = vsub.f32 1.0, %v1573
          %v2022 = vsub.f32 1.0, %v1574
          %v2023 = vsub.f32 1.0, %v1575
          %v2024 = vsub.f32 1.0, %v1576
          %v2025 = vsub.f32 1.0, %v1577
          %v2026 = vsub.f32 1.0, %v1578
          %v2027 = vsub.f32 1.0, %v1579
          %v2028 = vsub.f32 1.0, %v1580
          %v2029 = vsub.f32 1.0, %v1581
          %v2030 = vsub.f32 %v1214, %v1998
          %v2031 = vsub.f32 %v1215, %v1999
          %v2032 = vsub.f32 %v1216, %v2000
          %v2033 = vsub.f32 %v1217, %v2001
          %v2034 = vsub.f32 %v1218, %v2002
          %v2035 = vsub.f32 %v1219, %v2003
          %v2036 = vsub.f32 %v1220, %v2004
          %v2037 = vsub.f32 %v1221, %v2005
          %v2038 = vsub.f32 %v1222, %v2006
          %v2039 = vsub.f32 %v1223, %v2007
          %v2040 = vsub.f32 %v1224, %v2008
          %v2041 = vsub.f32 %v1225, %v2009
          %v2042 = vsub.f32 %v1226, %v2010
          %v2043 = vsub.f32 %v1227, %v2011
          %v2044 = vsub.f32 %v1228, %v2012
          %v2045 = vsub.f32 %v1229, %v2013
          %v2046 = vmax.f32 %v2030, 0.0
          %v2047 = vmax.f32 %v2031, 0.0
          %v2048 = vmax.f32 %v2032, 0.0
          %v2049 = vmax.f32 %v2033, 0.0
          %v2050 = vmax.f32 %v2034, 0.0
          %v2051 = vmax.f32 %v2035, 0.0
          %v2052 = vmax.f32 %v2036, 0.0
          %v2053 = vmax.f32 %v2037, 0.0
          %v2054 = vmax.f32 %v2038, 0.0
          %v2055 = vmax.f32 %v2039, 0.0
          %v2056 = vmax.f32 %v2040, 0.0
          %v2057 = vmax.f32 %v2041, 0.0
          %v2058 = vmax.f32 %v2042, 0.0
          %v2059 = vmax.f32 %v2043, 0.0
          %v2060 = vmax.f32 %v2044, 0.0
          %v2061 = vmax.f32 %v2045, 0.0
          %v2062 = vmul.f32 %v2014, %v2046
          %v2063 = vmul.f32 %v2015, %v2047
          %v2064 = vmul.f32 %v2016, %v2048
          %v2065 = vmul.f32 %v2017, %v2049
          %v2066 = vmul.f32 %v2018, %v2050
          %v2067 = vmul.f32 %v2019, %v2051
          %v2068 = vmul.f32 %v2020, %v2052
          %v2069 = vmul.f32 %v2021, %v2053
          %v2070 = vmul.f32 %v2022, %v2054
          %v2071 = vmul.f32 %v2023, %v2055
          %v2072 = vmul.f32 %v2024, %v2056
          %v2073 = vmul.f32 %v2025, %v2057
          %v2074 = vmul.f32 %v2026, %v2058
          %v2075 = vmul.f32 %v2027, %v2059
          %v2076 = vmul.f32 %v2028, %v2060
          %v2077 = vmul.f32 %v2029, %v2061
          %v2078 = vmax.f32 %v2062, 0.0
          %v2079 = vmax.f32 %v2063, 0.0
          %v2080 = vmax.f32 %v2064, 0.0
          %v2081 = vmax.f32 %v2065, 0.0
          %v2082 = vmax.f32 %v2066, 0.0
          %v2083 = vmax.f32 %v2067, 0.0
          %v2084 = vmax.f32 %v2068, 0.0
          %v2085 = vmax.f32 %v2069, 0.0
          %v2086 = vmax.f32 %v2070, 0.0
          %v2087 = vmax.f32 %v2071, 0.0
          %v2088 = vmax.f32 %v2072, 0.0
          %v2089 = vmax.f32 %v2073, 0.0
          %v2090 = vmax.f32 %v2074, 0.0
          %v2091 = vmax.f32 %v2075, 0.0
          %v2092 = vmax.f32 %v2076, 0.0
          %v2093 = vmax.f32 %v2077, 0.0
          %v2094 = vadd.f32 %v1566, %v2078
          %v2095 = vadd.f32 %v1567, %v2079
          %v2096 = vadd.f32 %v1568, %v2080
          %v2097 = vadd.f32 %v1569, %v2081
          %v2098 = vadd.f32 %v1570, %v2082
          %v2099 = vadd.f32 %v1571, %v2083
          %v2100 = vadd.f32 %v1572, %v2084
          %v2101 = vadd.f32 %v1573, %v2085
          %v2102 = vadd.f32 %v1574, %v2086
          %v2103 = vadd.f32 %v1575, %v2087
          %v2104 = vadd.f32 %v1576, %v2088
          %v2105 = vadd.f32 %v1577, %v2089
          %v2106 = vadd.f32 %v1578, %v2090
          %v2107 = vadd.f32 %v1579, %v2091
          %v2108 = vadd.f32 %v1580, %v2092
          %v2109 = vadd.f32 %v1581, %v2093
          %v2110 = vmin.f32 %v1790, %v1742
          %v2111 = vmin.f32 %v1791, %v1743
          %v2112 = vmin.f32 %v1792, %v1744
          %v2113 = vmin.f32 %v1793, %v1745
          %v2114 = vmin.f32 %v1794, %v1746
          %v2115 = vmin.f32 %v1795, %v1747
          %v2116 = vmin.f32 %v1796, %v1748
          %v2117 = vmin.f32 %v1797, %v1749
          %v2118 = vmin.f32 %v1798, %v1750
          %v2119 = vmin.f32 %v1799, %v1751
          %v2120 = vmin.f32 %v1800, %v1752
          %v2121 = vmin.f32 %v1801, %v1753
          %v2122 = vmin.f32 %v1802, %v1754
          %v2123 = vmin.f32 %v1803, %v1755
          %v2124 = vmin.f32 %v1804, %v1756
          %v2125 = vmin.f32 %v1805, %v1757
          %v2126 = vmin.f32 %v2110, %v1854
          %v2127 = vmin.f32 %v2111, %v1855
          %v2128 = vmin.f32 %v2112, %v1856
          %v2129 = vmin.f32 %v2113, %v1857
          %v2130 = vmin.f32 %v2114, %v1858
          %v2131 = vmin.f32 %v2115, %v1859
          %v2132 = vmin.f32 %v2116, %v1860
          %v2133 = vmin.f32 %v2117, %v1861
          %v2134 = vmin.f32 %v2118, %v1862
          %v2135 = vmin.f32 %v2119, %v1863
          %v2136 = vmin.f32 %v2120, %v1864
          %v2137 = vmin.f32 %v2121, %v1865
          %v2138 = vmin.f32 %v2122, %v1866
          %v2139 = vmin.f32 %v2123, %v1867
          %v2140 = vmin.f32 %v2124, %v1868
          %v2141 = vmin.f32 %v2125, %v1869
          %2142 = vrot.lane.b32.xlu0 %v1742, 1
          %v2143 = vpop.permute.xlu0 %2142
          %2144 = vrot.lane.b32.xlu0 %v1743, 1
          %v2145 = vpop.permute.xlu0 %2144
          %2146 = vrot.lane.b32.xlu0 %v1744, 1
          %v2147 = vpop.permute.xlu0 %2146
          %2148 = vrot.lane.b32.xlu0 %v1745, 1
          %v2149 = vpop.permute.xlu0 %2148
          %2150 = vrot.lane.b32.xlu0 %v1746, 1
          %v2151 = vpop.permute.xlu0 %2150
          %2152 = vrot.lane.b32.xlu0 %v1747, 1
          %v2153 = vpop.permute.xlu0 %2152
          %2154 = vrot.lane.b32.xlu0 %v1748, 1
          %v2155 = vpop.permute.xlu0 %2154
          %2156 = vrot.lane.b32.xlu0 %v1749, 1
          %v2157 = vpop.permute.xlu0 %2156
          %2158 = vrot.lane.b32.xlu0 %v1750, 1
          %v2159 = vpop.permute.xlu0 %2158
          %2160 = vrot.lane.b32.xlu0 %v1751, 1
          %v2161 = vpop.permute.xlu0 %2160
          %2162 = vrot.lane.b32.xlu0 %v1752, 1
          %v2163 = vpop.permute.xlu0 %2162
          %2164 = vrot.lane.b32.xlu0 %v1753, 1
          %v2165 = vpop.permute.xlu0 %2164
          %2166 = vrot.lane.b32.xlu0 %v1754, 1
          %v2167 = vpop.permute.xlu0 %2166
          %2168 = vrot.lane.b32.xlu0 %v1755, 1
          %v2169 = vpop.permute.xlu0 %2168
          %2170 = vrot.lane.b32.xlu0 %v1756, 1
          %v2171 = vpop.permute.xlu0 %2170
          %2172 = vrot.lane.b32.xlu0 %v1757, 1
          %v2173 = vpop.permute.xlu0 %2172
          %v2174 = vsel %vm458, %v1742, %v2143
          %v2175 = vsel %vm458, %v1743, %v2145
          %v2176 = vsel %vm458, %v1744, %v2147
          %v2177 = vsel %vm458, %v1745, %v2149
          %v2178 = vsel %vm458, %v1746, %v2151
          %v2179 = vsel %vm458, %v1747, %v2153
          %v2180 = vsel %vm458, %v1748, %v2155
          %v2181 = vsel %vm458, %v1749, %v2157
          %v2182 = vsel %vm458, %v1750, %v2159
          %v2183 = vsel %vm458, %v1751, %v2161
          %v2184 = vsel %vm458, %v1752, %v2163
          %v2185 = vsel %vm458, %v1753, %v2165
          %v2186 = vsel %vm458, %v1754, %v2167
          %v2187 = vsel %vm458, %v1755, %v2169
          %v2188 = vsel %vm458, %v1756, %v2171
          %v2189 = vsel %vm458, %v1757, %v2173
          %v2190 = vmin.f32 %v2174, %v1742
          %v2191 = vmin.f32 %v2175, %v1743
          %v2192 = vmin.f32 %v2176, %v1744
          %v2193 = vmin.f32 %v2177, %v1745
          %v2194 = vmin.f32 %v2178, %v1746
          %v2195 = vmin.f32 %v2179, %v1747
          %v2196 = vmin.f32 %v2180, %v1748
          %v2197 = vmin.f32 %v2181, %v1749
          %v2198 = vmin.f32 %v2182, %v1750
          %v2199 = vmin.f32 %v2183, %v1751
          %v2200 = vmin.f32 %v2184, %v1752
          %v2201 = vmin.f32 %v2185, %v1753
          %v2202 = vmin.f32 %v2186, %v1754
          %v2203 = vmin.f32 %v2187, %v1755
          %v2204 = vmin.f32 %v2188, %v1756
          %v2205 = vmin.f32 %v2189, %v1757
          %2206 = vrot.lane.b32.xlu0 %v1742, 127
          %v2207 = vpop.permute.xlu0 %2206
          %2208 = vrot.lane.b32.xlu0 %v1743, 127
          %v2209 = vpop.permute.xlu0 %2208
          %2210 = vrot.lane.b32.xlu0 %v1744, 127
          %v2211 = vpop.permute.xlu0 %2210
          %2212 = vrot.lane.b32.xlu0 %v1745, 127
          %v2213 = vpop.permute.xlu0 %2212
          %2214 = vrot.lane.b32.xlu0 %v1746, 127
          %v2215 = vpop.permute.xlu0 %2214
          %2216 = vrot.lane.b32.xlu0 %v1747, 127
          %v2217 = vpop.permute.xlu0 %2216
          %2218 = vrot.lane.b32.xlu0 %v1748, 127
          %v2219 = vpop.permute.xlu0 %2218
          %2220 = vrot.lane.b32.xlu0 %v1749, 127
          %v2221 = vpop.permute.xlu0 %2220
          %2222 = vrot.lane.b32.xlu0 %v1750, 127
          %v2223 = vpop.permute.xlu0 %2222
          %2224 = vrot.lane.b32.xlu0 %v1751, 127
          %v2225 = vpop.permute.xlu0 %2224
          %2226 = vrot.lane.b32.xlu0 %v1752, 127
          %v2227 = vpop.permute.xlu0 %2226
          %2228 = vrot.lane.b32.xlu0 %v1753, 127
          %v2229 = vpop.permute.xlu0 %2228
          %2230 = vrot.lane.b32.xlu0 %v1754, 127
          %v2231 = vpop.permute.xlu0 %2230
          %2232 = vrot.lane.b32.xlu0 %v1755, 127
          %v2233 = vpop.permute.xlu0 %2232
          %2234 = vrot.lane.b32.xlu0 %v1756, 127
          %v2235 = vpop.permute.xlu0 %2234
          %2236 = vrot.lane.b32.xlu0 %v1757, 127
          %v2237 = vpop.permute.xlu0 %2236
          %v2238 = vsel %vm524, %v1742, %v2207
          %v2239 = vsel %vm524, %v1743, %v2209
          %v2240 = vsel %vm524, %v1744, %v2211
          %v2241 = vsel %vm524, %v1745, %v2213
          %v2242 = vsel %vm524, %v1746, %v2215
          %v2243 = vsel %vm524, %v1747, %v2217
          %v2244 = vsel %vm524, %v1748, %v2219
          %v2245 = vsel %vm524, %v1749, %v2221
          %v2246 = vsel %vm524, %v1750, %v2223
          %v2247 = vsel %vm524, %v1751, %v2225
          %v2248 = vsel %vm524, %v1752, %v2227
          %v2249 = vsel %vm524, %v1753, %v2229
          %v2250 = vsel %vm524, %v1754, %v2231
          %v2251 = vsel %vm524, %v1755, %v2233
          %v2252 = vsel %vm524, %v1756, %v2235
          %v2253 = vsel %vm524, %v1757, %v2237
          %v2254 = vmin.f32 %v2190, %v2238
          %v2255 = vmin.f32 %v2191, %v2239
          %v2256 = vmin.f32 %v2192, %v2240
          %v2257 = vmin.f32 %v2193, %v2241
          %v2258 = vmin.f32 %v2194, %v2242
          %v2259 = vmin.f32 %v2195, %v2243
          %v2260 = vmin.f32 %v2196, %v2244
          %v2261 = vmin.f32 %v2197, %v2245
          %v2262 = vmin.f32 %v2198, %v2246
          %v2263 = vmin.f32 %v2199, %v2247
          %v2264 = vmin.f32 %v2200, %v2248
          %v2265 = vmin.f32 %v2201, %v2249
          %v2266 = vmin.f32 %v2202, %v2250
          %v2267 = vmin.f32 %v2203, %v2251
          %v2268 = vmin.f32 %v2204, %v2252
          %v2269 = vmin.f32 %v2205, %v2253
          %v2270 = vmin.f32 %v2126, %v2254
          %v2271 = vmin.f32 %v2127, %v2255
          %v2272 = vmin.f32 %v2128, %v2256
          %v2273 = vmin.f32 %v2129, %v2257
          %v2274 = vmin.f32 %v2130, %v2258
          %v2275 = vmin.f32 %v2131, %v2259
          %v2276 = vmin.f32 %v2132, %v2260
          %v2277 = vmin.f32 %v2133, %v2261
          %v2278 = vmin.f32 %v2134, %v2262
          %v2279 = vmin.f32 %v2135, %v2263
          %v2280 = vmin.f32 %v2136, %v2264
          %v2281 = vmin.f32 %v2137, %v2265
          %v2282 = vmin.f32 %v2138, %v2266
          %v2283 = vmin.f32 %v2139, %v2267
          %v2284 = vmin.f32 %v2140, %v2268
          %v2285 = vmin.f32 %v2141, %v2269
          %v2286 = vrot.slane %v2270, 7
          %v2287 = vrot.slane %v2272, 7
          %v2288 = vrot.slane %v2274, 7
          %v2289 = vrot.slane %v2276, 7
          %v2290 = vrot.slane %v2278, 7
          %v2291 = vrot.slane %v2280, 7
          %v2292 = vrot.slane %v2282, 7
          %v2293 = vrot.slane %v2284, 7
          %v2294 = vrot.slane %v2271, 7
          %v2295 = vrot.slane %v2273, 7
          %v2296 = vrot.slane %v2275, 7
          %v2297 = vrot.slane %v2277, 7
          %v2298 = vrot.slane %v2279, 7
          %v2299 = vrot.slane %v2281, 7
          %v2300 = vrot.slane %v2283, 7
          %v2301 = vrot.slane %v2285, 7
          %v2302 = vsel %vm303, %v2286, %v2294
          %v2303 = vsel %vm303, %v2287, %v2295
          %v2304 = vsel %vm303, %v2288, %v2296
          %v2305 = vsel %vm303, %v2289, %v2297
          %v2306 = vsel %vm303, %v2290, %v2298
          %v2307 = vsel %vm303, %v2291, %v2299
          %v2308 = vsel %vm303, %v2292, %v2300
          %v2309 = vsel %vm303, %v2293, %v2301
          %v2310 = vsel %vm303, %v2294, %v2286
          %v2311 = vsel %vm303, %v2295, %v2287
          %v2312 = vsel %vm303, %v2296, %v2288
          %v2313 = vsel %vm303, %v2297, %v2289
          %v2314 = vsel %vm303, %v2298, %v2290
          %v2315 = vsel %vm303, %v2299, %v2291
          %v2316 = vsel %vm303, %v2300, %v2292
          %v2317 = vsel %vm303, %v2301, %v2293
          %v2318 = vsel %vm322, %v2270, %v2310
          %v2319 = vsel %vm323, %v2271, %v2302
          %v2320 = vsel %vm322, %v2272, %v2311
          %v2321 = vsel %vm323, %v2273, %v2303
          %v2322 = vsel %vm322, %v2274, %v2312
          %v2323 = vsel %vm323, %v2275, %v2304
          %v2324 = vsel %vm322, %v2276, %v2313
          %v2325 = vsel %vm323, %v2277, %v2305
          %v2326 = vsel %vm322, %v2278, %v2314
          %v2327 = vsel %vm323, %v2279, %v2306
          %v2328 = vsel %vm322, %v2280, %v2315
          %v2329 = vsel %vm323, %v2281, %v2307
          %v2330 = vsel %vm322, %v2282, %v2316
          %v2331 = vsel %vm323, %v2283, %v2308
          %v2332 = vsel %vm322, %v2284, %v2317
          %v2333 = vsel %vm323, %v2285, %v2309
          %v2334 = vmax.f32 %v2318, %v2270
          %v2335 = vmax.f32 %v2319, %v2271
          %v2336 = vmax.f32 %v2320, %v2272
          %v2337 = vmax.f32 %v2321, %v2273
          %v2338 = vmax.f32 %v2322, %v2274
          %v2339 = vmax.f32 %v2323, %v2275
          %v2340 = vmax.f32 %v2324, %v2276
          %v2341 = vmax.f32 %v2325, %v2277
          %v2342 = vmax.f32 %v2326, %v2278
          %v2343 = vmax.f32 %v2327, %v2279
          %v2344 = vmax.f32 %v2328, %v2280
          %v2345 = vmax.f32 %v2329, %v2281
          %v2346 = vmax.f32 %v2330, %v2282
          %v2347 = vmax.f32 %v2331, %v2283
          %v2348 = vmax.f32 %v2332, %v2284
          %v2349 = vmax.f32 %v2333, %v2285
          %v2350 = vrot.slane %v2270, 1
          %v2351 = vrot.slane %v2272, 1
          %v2352 = vrot.slane %v2274, 1
          %v2353 = vrot.slane %v2276, 1
          %v2354 = vrot.slane %v2278, 1
          %v2355 = vrot.slane %v2280, 1
          %v2356 = vrot.slane %v2282, 1
          %v2357 = vrot.slane %v2284, 1
          %v2358 = vrot.slane %v2271, 1
          %v2359 = vrot.slane %v2273, 1
          %v2360 = vrot.slane %v2275, 1
          %v2361 = vrot.slane %v2277, 1
          %v2362 = vrot.slane %v2279, 1
          %v2363 = vrot.slane %v2281, 1
          %v2364 = vrot.slane %v2283, 1
          %v2365 = vrot.slane %v2285, 1
          %v2366 = vsel %vm372, %v2350, %v2358
          %v2367 = vsel %vm372, %v2351, %v2359
          %v2368 = vsel %vm372, %v2352, %v2360
          %v2369 = vsel %vm372, %v2353, %v2361
          %v2370 = vsel %vm372, %v2354, %v2362
          %v2371 = vsel %vm372, %v2355, %v2363
          %v2372 = vsel %vm372, %v2356, %v2364
          %v2373 = vsel %vm372, %v2357, %v2365
          %v2374 = vsel %vm372, %v2358, %v2350
          %v2375 = vsel %vm372, %v2359, %v2351
          %v2376 = vsel %vm372, %v2360, %v2352
          %v2377 = vsel %vm372, %v2361, %v2353
          %v2378 = vsel %vm372, %v2362, %v2354
          %v2379 = vsel %vm372, %v2363, %v2355
          %v2380 = vsel %vm372, %v2364, %v2356
          %v2381 = vsel %vm372, %v2365, %v2357
          %v2382 = vsel %vm391, %v2270, %v2366
          %v2383 = vsel %vm392, %v2271, %v2374
          %v2384 = vsel %vm391, %v2272, %v2367
          %v2385 = vsel %vm392, %v2273, %v2375
          %v2386 = vsel %vm391, %v2274, %v2368
          %v2387 = vsel %vm392, %v2275, %v2376
          %v2388 = vsel %vm391, %v2276, %v2369
          %v2389 = vsel %vm392, %v2277, %v2377
          %v2390 = vsel %vm391, %v2278, %v2370
          %v2391 = vsel %vm392, %v2279, %v2378
          %v2392 = vsel %vm391, %v2280, %v2371
          %v2393 = vsel %vm392, %v2281, %v2379
          %v2394 = vsel %vm391, %v2282, %v2372
          %v2395 = vsel %vm392, %v2283, %v2380
          %v2396 = vsel %vm391, %v2284, %v2373
          %v2397 = vsel %vm392, %v2285, %v2381
          %v2398 = vmax.f32 %v2334, %v2382
          %v2399 = vmax.f32 %v2335, %v2383
          %v2400 = vmax.f32 %v2336, %v2384
          %v2401 = vmax.f32 %v2337, %v2385
          %v2402 = vmax.f32 %v2338, %v2386
          %v2403 = vmax.f32 %v2339, %v2387
          %v2404 = vmax.f32 %v2340, %v2388
          %v2405 = vmax.f32 %v2341, %v2389
          %v2406 = vmax.f32 %v2342, %v2390
          %v2407 = vmax.f32 %v2343, %v2391
          %v2408 = vmax.f32 %v2344, %v2392
          %v2409 = vmax.f32 %v2345, %v2393
          %v2410 = vmax.f32 %v2346, %v2394
          %v2411 = vmax.f32 %v2347, %v2395
          %v2412 = vmax.f32 %v2348, %v2396
          %v2413 = vmax.f32 %v2349, %v2397
          %2414 = vrot.lane.b32.xlu0 %v2398, 1
          %v2415 = vpop.permute.xlu0 %2414
          %2416 = vrot.lane.b32.xlu0 %v2399, 1
          %v2417 = vpop.permute.xlu0 %2416
          %2418 = vrot.lane.b32.xlu0 %v2400, 1
          %v2419 = vpop.permute.xlu0 %2418
          %2420 = vrot.lane.b32.xlu0 %v2401, 1
          %v2421 = vpop.permute.xlu0 %2420
          %2422 = vrot.lane.b32.xlu0 %v2402, 1
          %v2423 = vpop.permute.xlu0 %2422
          %2424 = vrot.lane.b32.xlu0 %v2403, 1
          %v2425 = vpop.permute.xlu0 %2424
          %2426 = vrot.lane.b32.xlu0 %v2404, 1
          %v2427 = vpop.permute.xlu0 %2426
          %2428 = vrot.lane.b32.xlu0 %v2405, 1
          %v2429 = vpop.permute.xlu0 %2428
          %2430 = vrot.lane.b32.xlu0 %v2406, 1
          %v2431 = vpop.permute.xlu0 %2430
          %2432 = vrot.lane.b32.xlu0 %v2407, 1
          %v2433 = vpop.permute.xlu0 %2432
          %2434 = vrot.lane.b32.xlu0 %v2408, 1
          %v2435 = vpop.permute.xlu0 %2434
          %2436 = vrot.lane.b32.xlu0 %v2409, 1
          %v2437 = vpop.permute.xlu0 %2436
          %2438 = vrot.lane.b32.xlu0 %v2410, 1
          %v2439 = vpop.permute.xlu0 %2438
          %2440 = vrot.lane.b32.xlu0 %v2411, 1
          %v2441 = vpop.permute.xlu0 %2440
          %2442 = vrot.lane.b32.xlu0 %v2412, 1
          %v2443 = vpop.permute.xlu0 %2442
          %2444 = vrot.lane.b32.xlu0 %v2413, 1
          %v2445 = vpop.permute.xlu0 %2444
          %v2446 = vsel %vm458, %v2398, %v2415
          %v2447 = vsel %vm458, %v2399, %v2417
          %v2448 = vsel %vm458, %v2400, %v2419
          %v2449 = vsel %vm458, %v2401, %v2421
          %v2450 = vsel %vm458, %v2402, %v2423
          %v2451 = vsel %vm458, %v2403, %v2425
          %v2452 = vsel %vm458, %v2404, %v2427
          %v2453 = vsel %vm458, %v2405, %v2429
          %v2454 = vsel %vm458, %v2406, %v2431
          %v2455 = vsel %vm458, %v2407, %v2433
          %v2456 = vsel %vm458, %v2408, %v2435
          %v2457 = vsel %vm458, %v2409, %v2437
          %v2458 = vsel %vm458, %v2410, %v2439
          %v2459 = vsel %vm458, %v2411, %v2441
          %v2460 = vsel %vm458, %v2412, %v2443
          %v2461 = vsel %vm458, %v2413, %v2445
          %v2462 = vmax.f32 %v2446, %v2398
          %v2463 = vmax.f32 %v2447, %v2399
          %v2464 = vmax.f32 %v2448, %v2400
          %v2465 = vmax.f32 %v2449, %v2401
          %v2466 = vmax.f32 %v2450, %v2402
          %v2467 = vmax.f32 %v2451, %v2403
          %v2468 = vmax.f32 %v2452, %v2404
          %v2469 = vmax.f32 %v2453, %v2405
          %v2470 = vmax.f32 %v2454, %v2406
          %v2471 = vmax.f32 %v2455, %v2407
          %v2472 = vmax.f32 %v2456, %v2408
          %v2473 = vmax.f32 %v2457, %v2409
          %v2474 = vmax.f32 %v2458, %v2410
          %v2475 = vmax.f32 %v2459, %v2411
          %v2476 = vmax.f32 %v2460, %v2412
          %v2477 = vmax.f32 %v2461, %v2413
          %2478 = vrot.lane.b32.xlu0 %v2398, 127
          %v2479 = vpop.permute.xlu0 %2478
          %2480 = vrot.lane.b32.xlu0 %v2399, 127
          %v2481 = vpop.permute.xlu0 %2480
          %2482 = vrot.lane.b32.xlu0 %v2400, 127
          %v2483 = vpop.permute.xlu0 %2482
          %2484 = vrot.lane.b32.xlu0 %v2401, 127
          %v2485 = vpop.permute.xlu0 %2484
          %2486 = vrot.lane.b32.xlu0 %v2402, 127
          %v2487 = vpop.permute.xlu0 %2486
          %2488 = vrot.lane.b32.xlu0 %v2403, 127
          %v2489 = vpop.permute.xlu0 %2488
          %2490 = vrot.lane.b32.xlu0 %v2404, 127
          %v2491 = vpop.permute.xlu0 %2490
          %2492 = vrot.lane.b32.xlu0 %v2405, 127
          %v2493 = vpop.permute.xlu0 %2492
          %2494 = vrot.lane.b32.xlu0 %v2406, 127
          %v2495 = vpop.permute.xlu0 %2494
          %2496 = vrot.lane.b32.xlu0 %v2407, 127
          %v2497 = vpop.permute.xlu0 %2496
          %2498 = vrot.lane.b32.xlu0 %v2408, 127
          %v2499 = vpop.permute.xlu0 %2498
          %2500 = vrot.lane.b32.xlu0 %v2409, 127
          %v2501 = vpop.permute.xlu0 %2500
          %2502 = vrot.lane.b32.xlu0 %v2410, 127
          %v2503 = vpop.permute.xlu0 %2502
          %2504 = vrot.lane.b32.xlu0 %v2411, 127
          %v2505 = vpop.permute.xlu0 %2504
          %2506 = vrot.lane.b32.xlu0 %v2412, 127
          %v2507 = vpop.permute.xlu0 %2506
          %2508 = vrot.lane.b32.xlu0 %v2413, 127
          %v2509 = vpop.permute.xlu0 %2508
          %v2510 = vsel %vm524, %v2398, %v2479
          %v2511 = vsel %vm524, %v2399, %v2481
          %v2512 = vsel %vm524, %v2400, %v2483
          %v2513 = vsel %vm524, %v2401, %v2485
          %v2514 = vsel %vm524, %v2402, %v2487
          %v2515 = vsel %vm524, %v2403, %v2489
          %v2516 = vsel %vm524, %v2404, %v2491
          %v2517 = vsel %vm524, %v2405, %v2493
          %v2518 = vsel %vm524, %v2406, %v2495
          %v2519 = vsel %vm524, %v2407, %v2497
          %v2520 = vsel %vm524, %v2408, %v2499
          %v2521 = vsel %vm524, %v2409, %v2501
          %v2522 = vsel %vm524, %v2410, %v2503
          %v2523 = vsel %vm524, %v2411, %v2505
          %v2524 = vsel %vm524, %v2412, %v2507
          %v2525 = vsel %vm524, %v2413, %v2509
          %v2526 = vmax.f32 %v2462, %v2510
          %v2527 = vmax.f32 %v2463, %v2511
          %v2528 = vmax.f32 %v2464, %v2512
          %v2529 = vmax.f32 %v2465, %v2513
          %v2530 = vmax.f32 %v2466, %v2514
          %v2531 = vmax.f32 %v2467, %v2515
          %v2532 = vmax.f32 %v2468, %v2516
          %v2533 = vmax.f32 %v2469, %v2517
          %v2534 = vmax.f32 %v2470, %v2518
          %v2535 = vmax.f32 %v2471, %v2519
          %v2536 = vmax.f32 %v2472, %v2520
          %v2537 = vmax.f32 %v2473, %v2521
          %v2538 = vmax.f32 %v2474, %v2522
          %v2539 = vmax.f32 %v2475, %v2523
          %v2540 = vmax.f32 %v2476, %v2524
          %v2541 = vmax.f32 %v2477, %v2525
          %v2542 = vsub.f32 1.0, %v2094
          %v2543 = vsub.f32 1.0, %v2095
          %v2544 = vsub.f32 1.0, %v2096
          %v2545 = vsub.f32 1.0, %v2097
          %v2546 = vsub.f32 1.0, %v2098
          %v2547 = vsub.f32 1.0, %v2099
          %v2548 = vsub.f32 1.0, %v2100
          %v2549 = vsub.f32 1.0, %v2101
          %v2550 = vsub.f32 1.0, %v2102
          %v2551 = vsub.f32 1.0, %v2103
          %v2552 = vsub.f32 1.0, %v2104
          %v2553 = vsub.f32 1.0, %v2105
          %v2554 = vsub.f32 1.0, %v2106
          %v2555 = vsub.f32 1.0, %v2107
          %v2556 = vsub.f32 1.0, %v2108
          %v2557 = vsub.f32 1.0, %v2109
          %v2558 = vsub.f32 %v1742, %v2526
          %v2559 = vsub.f32 %v1743, %v2527
          %v2560 = vsub.f32 %v1744, %v2528
          %v2561 = vsub.f32 %v1745, %v2529
          %v2562 = vsub.f32 %v1746, %v2530
          %v2563 = vsub.f32 %v1747, %v2531
          %v2564 = vsub.f32 %v1748, %v2532
          %v2565 = vsub.f32 %v1749, %v2533
          %v2566 = vsub.f32 %v1750, %v2534
          %v2567 = vsub.f32 %v1751, %v2535
          %v2568 = vsub.f32 %v1752, %v2536
          %v2569 = vsub.f32 %v1753, %v2537
          %v2570 = vsub.f32 %v1754, %v2538
          %v2571 = vsub.f32 %v1755, %v2539
          %v2572 = vsub.f32 %v1756, %v2540
          %v2573 = vsub.f32 %v1757, %v2541
          %v2574 = vmax.f32 %v2558, 0.0
          %v2575 = vmax.f32 %v2559, 0.0
          %v2576 = vmax.f32 %v2560, 0.0
          %v2577 = vmax.f32 %v2561, 0.0
          %v2578 = vmax.f32 %v2562, 0.0
          %v2579 = vmax.f32 %v2563, 0.0
          %v2580 = vmax.f32 %v2564, 0.0
          %v2581 = vmax.f32 %v2565, 0.0
          %v2582 = vmax.f32 %v2566, 0.0
          %v2583 = vmax.f32 %v2567, 0.0
          %v2584 = vmax.f32 %v2568, 0.0
          %v2585 = vmax.f32 %v2569, 0.0
          %v2586 = vmax.f32 %v2570, 0.0
          %v2587 = vmax.f32 %v2571, 0.0
          %v2588 = vmax.f32 %v2572, 0.0
          %v2589 = vmax.f32 %v2573, 0.0
          %v2590 = vmul.f32 %v2542, %v2574
          %v2591 = vmul.f32 %v2543, %v2575
          %v2592 = vmul.f32 %v2544, %v2576
          %v2593 = vmul.f32 %v2545, %v2577
          %v2594 = vmul.f32 %v2546, %v2578
          %v2595 = vmul.f32 %v2547, %v2579
          %v2596 = vmul.f32 %v2548, %v2580
          %v2597 = vmul.f32 %v2549, %v2581
          %v2598 = vmul.f32 %v2550, %v2582
          %v2599 = vmul.f32 %v2551, %v2583
          %v2600 = vmul.f32 %v2552, %v2584
          %v2601 = vmul.f32 %v2553, %v2585
          %v2602 = vmul.f32 %v2554, %v2586
          %v2603 = vmul.f32 %v2555, %v2587
          %v2604 = vmul.f32 %v2556, %v2588
          %v2605 = vmul.f32 %v2557, %v2589
          %v2606 = vmax.f32 %v2590, 0.0
          %v2607 = vmax.f32 %v2591, 0.0
          %v2608 = vmax.f32 %v2592, 0.0
          %v2609 = vmax.f32 %v2593, 0.0
          %v2610 = vmax.f32 %v2594, 0.0
          %v2611 = vmax.f32 %v2595, 0.0
          %v2612 = vmax.f32 %v2596, 0.0
          %v2613 = vmax.f32 %v2597, 0.0
          %v2614 = vmax.f32 %v2598, 0.0
          %v2615 = vmax.f32 %v2599, 0.0
          %v2616 = vmax.f32 %v2600, 0.0
          %v2617 = vmax.f32 %v2601, 0.0
          %v2618 = vmax.f32 %v2602, 0.0
          %v2619 = vmax.f32 %v2603, 0.0
          %v2620 = vmax.f32 %v2604, 0.0
          %v2621 = vmax.f32 %v2605, 0.0
          %v2622 = vadd.f32 %v2094, %v2606
          %v2623 = vadd.f32 %v2095, %v2607
          %v2624 = vadd.f32 %v2096, %v2608
          %v2625 = vadd.f32 %v2097, %v2609
          %v2626 = vadd.f32 %v2098, %v2610
          %v2627 = vadd.f32 %v2099, %v2611
          %v2628 = vadd.f32 %v2100, %v2612
          %v2629 = vadd.f32 %v2101, %v2613
          %v2630 = vadd.f32 %v2102, %v2614
          %v2631 = vadd.f32 %v2103, %v2615
          %v2632 = vadd.f32 %v2104, %v2616
          %v2633 = vadd.f32 %v2105, %v2617
          %v2634 = vadd.f32 %v2106, %v2618
          %v2635 = vadd.f32 %v2107, %v2619
          %v2636 = vadd.f32 %v2108, %v2620
          %v2637 = vadd.f32 %v2109, %v2621
          %v2638 = vmin.f32 %v2318, %v2270
          %v2639 = vmin.f32 %v2319, %v2271
          %v2640 = vmin.f32 %v2320, %v2272
          %v2641 = vmin.f32 %v2321, %v2273
          %v2642 = vmin.f32 %v2322, %v2274
          %v2643 = vmin.f32 %v2323, %v2275
          %v2644 = vmin.f32 %v2324, %v2276
          %v2645 = vmin.f32 %v2325, %v2277
          %v2646 = vmin.f32 %v2326, %v2278
          %v2647 = vmin.f32 %v2327, %v2279
          %v2648 = vmin.f32 %v2328, %v2280
          %v2649 = vmin.f32 %v2329, %v2281
          %v2650 = vmin.f32 %v2330, %v2282
          %v2651 = vmin.f32 %v2331, %v2283
          %v2652 = vmin.f32 %v2332, %v2284
          %v2653 = vmin.f32 %v2333, %v2285
          %v2654 = vmin.f32 %v2638, %v2382
          %v2655 = vmin.f32 %v2639, %v2383
          %v2656 = vmin.f32 %v2640, %v2384
          %v2657 = vmin.f32 %v2641, %v2385
          %v2658 = vmin.f32 %v2642, %v2386
          %v2659 = vmin.f32 %v2643, %v2387
          %v2660 = vmin.f32 %v2644, %v2388
          %v2661 = vmin.f32 %v2645, %v2389
          %v2662 = vmin.f32 %v2646, %v2390
          %v2663 = vmin.f32 %v2647, %v2391
          %v2664 = vmin.f32 %v2648, %v2392
          %v2665 = vmin.f32 %v2649, %v2393
          %v2666 = vmin.f32 %v2650, %v2394
          %v2667 = vmin.f32 %v2651, %v2395
          %v2668 = vmin.f32 %v2652, %v2396
          %v2669 = vmin.f32 %v2653, %v2397
          %2670 = vrot.lane.b32.xlu0 %v2270, 1
          %v2671 = vpop.permute.xlu0 %2670
          %2672 = vrot.lane.b32.xlu0 %v2271, 1
          %v2673 = vpop.permute.xlu0 %2672
          %2674 = vrot.lane.b32.xlu0 %v2272, 1
          %v2675 = vpop.permute.xlu0 %2674
          %2676 = vrot.lane.b32.xlu0 %v2273, 1
          %v2677 = vpop.permute.xlu0 %2676
          %2678 = vrot.lane.b32.xlu0 %v2274, 1
          %v2679 = vpop.permute.xlu0 %2678
          %2680 = vrot.lane.b32.xlu0 %v2275, 1
          %v2681 = vpop.permute.xlu0 %2680
          %2682 = vrot.lane.b32.xlu0 %v2276, 1
          %v2683 = vpop.permute.xlu0 %2682
          %2684 = vrot.lane.b32.xlu0 %v2277, 1
          %v2685 = vpop.permute.xlu0 %2684
          %2686 = vrot.lane.b32.xlu0 %v2278, 1
          %v2687 = vpop.permute.xlu0 %2686
          %2688 = vrot.lane.b32.xlu0 %v2279, 1
          %v2689 = vpop.permute.xlu0 %2688
          %2690 = vrot.lane.b32.xlu0 %v2280, 1
          %v2691 = vpop.permute.xlu0 %2690
          %2692 = vrot.lane.b32.xlu0 %v2281, 1
          %v2693 = vpop.permute.xlu0 %2692
          %2694 = vrot.lane.b32.xlu0 %v2282, 1
          %v2695 = vpop.permute.xlu0 %2694
          %2696 = vrot.lane.b32.xlu0 %v2283, 1
          %v2697 = vpop.permute.xlu0 %2696
          %2698 = vrot.lane.b32.xlu0 %v2284, 1
          %v2699 = vpop.permute.xlu0 %2698
          %2700 = vrot.lane.b32.xlu0 %v2285, 1
          %v2701 = vpop.permute.xlu0 %2700
          %v2702 = vsel %vm458, %v2270, %v2671
          %v2703 = vsel %vm458, %v2271, %v2673
          %v2704 = vsel %vm458, %v2272, %v2675
          %v2705 = vsel %vm458, %v2273, %v2677
          %v2706 = vsel %vm458, %v2274, %v2679
          %v2707 = vsel %vm458, %v2275, %v2681
          %v2708 = vsel %vm458, %v2276, %v2683
          %v2709 = vsel %vm458, %v2277, %v2685
          %v2710 = vsel %vm458, %v2278, %v2687
          %v2711 = vsel %vm458, %v2279, %v2689
          %v2712 = vsel %vm458, %v2280, %v2691
          %v2713 = vsel %vm458, %v2281, %v2693
          %v2714 = vsel %vm458, %v2282, %v2695
          %v2715 = vsel %vm458, %v2283, %v2697
          %v2716 = vsel %vm458, %v2284, %v2699
          %v2717 = vsel %vm458, %v2285, %v2701
          %v2718 = vmin.f32 %v2702, %v2270
          %v2719 = vmin.f32 %v2703, %v2271
          %v2720 = vmin.f32 %v2704, %v2272
          %v2721 = vmin.f32 %v2705, %v2273
          %v2722 = vmin.f32 %v2706, %v2274
          %v2723 = vmin.f32 %v2707, %v2275
          %v2724 = vmin.f32 %v2708, %v2276
          %v2725 = vmin.f32 %v2709, %v2277
          %v2726 = vmin.f32 %v2710, %v2278
          %v2727 = vmin.f32 %v2711, %v2279
          %v2728 = vmin.f32 %v2712, %v2280
          %v2729 = vmin.f32 %v2713, %v2281
          %v2730 = vmin.f32 %v2714, %v2282
          %v2731 = vmin.f32 %v2715, %v2283
          %v2732 = vmin.f32 %v2716, %v2284
          %v2733 = vmin.f32 %v2717, %v2285
          %2734 = vrot.lane.b32.xlu0 %v2270, 127
          %v2735 = vpop.permute.xlu0 %2734
          %2736 = vrot.lane.b32.xlu0 %v2271, 127
          %v2737 = vpop.permute.xlu0 %2736
          %2738 = vrot.lane.b32.xlu0 %v2272, 127
          %v2739 = vpop.permute.xlu0 %2738
          %2740 = vrot.lane.b32.xlu0 %v2273, 127
          %v2741 = vpop.permute.xlu0 %2740
          %2742 = vrot.lane.b32.xlu0 %v2274, 127
          %v2743 = vpop.permute.xlu0 %2742
          %2744 = vrot.lane.b32.xlu0 %v2275, 127
          %v2745 = vpop.permute.xlu0 %2744
          %2746 = vrot.lane.b32.xlu0 %v2276, 127
          %v2747 = vpop.permute.xlu0 %2746
          %2748 = vrot.lane.b32.xlu0 %v2277, 127
          %v2749 = vpop.permute.xlu0 %2748
          %2750 = vrot.lane.b32.xlu0 %v2278, 127
          %v2751 = vpop.permute.xlu0 %2750
          %2752 = vrot.lane.b32.xlu0 %v2279, 127
          %v2753 = vpop.permute.xlu0 %2752
          %2754 = vrot.lane.b32.xlu0 %v2280, 127
          %v2755 = vpop.permute.xlu0 %2754
          %2756 = vrot.lane.b32.xlu0 %v2281, 127
          %v2757 = vpop.permute.xlu0 %2756
          %2758 = vrot.lane.b32.xlu0 %v2282, 127
          %v2759 = vpop.permute.xlu0 %2758
          %2760 = vrot.lane.b32.xlu0 %v2283, 127
          %v2761 = vpop.permute.xlu0 %2760
          %2762 = vrot.lane.b32.xlu0 %v2284, 127
          %v2763 = vpop.permute.xlu0 %2762
          %2764 = vrot.lane.b32.xlu0 %v2285, 127
          %v2765 = vpop.permute.xlu0 %2764
          %v2766 = vsel %vm524, %v2270, %v2735
          %v2767 = vsel %vm524, %v2271, %v2737
          %v2768 = vsel %vm524, %v2272, %v2739
          %v2769 = vsel %vm524, %v2273, %v2741
          %v2770 = vsel %vm524, %v2274, %v2743
          %v2771 = vsel %vm524, %v2275, %v2745
          %v2772 = vsel %vm524, %v2276, %v2747
          %v2773 = vsel %vm524, %v2277, %v2749
          %v2774 = vsel %vm524, %v2278, %v2751
          %v2775 = vsel %vm524, %v2279, %v2753
          %v2776 = vsel %vm524, %v2280, %v2755
          %v2777 = vsel %vm524, %v2281, %v2757
          %v2778 = vsel %vm524, %v2282, %v2759
          %v2779 = vsel %vm524, %v2283, %v2761
          %v2780 = vsel %vm524, %v2284, %v2763
          %v2781 = vsel %vm524, %v2285, %v2765
          %v2782 = vmin.f32 %v2718, %v2766
          %v2783 = vmin.f32 %v2719, %v2767
          %v2784 = vmin.f32 %v2720, %v2768
          %v2785 = vmin.f32 %v2721, %v2769
          %v2786 = vmin.f32 %v2722, %v2770
          %v2787 = vmin.f32 %v2723, %v2771
          %v2788 = vmin.f32 %v2724, %v2772
          %v2789 = vmin.f32 %v2725, %v2773
          %v2790 = vmin.f32 %v2726, %v2774
          %v2791 = vmin.f32 %v2727, %v2775
          %v2792 = vmin.f32 %v2728, %v2776
          %v2793 = vmin.f32 %v2729, %v2777
          %v2794 = vmin.f32 %v2730, %v2778
          %v2795 = vmin.f32 %v2731, %v2779
          %v2796 = vmin.f32 %v2732, %v2780
          %v2797 = vmin.f32 %v2733, %v2781
          %v2798 = vmin.f32 %v2654, %v2782
          %v2799 = vmin.f32 %v2655, %v2783
          %v2800 = vmin.f32 %v2656, %v2784
          %v2801 = vmin.f32 %v2657, %v2785
          %v2802 = vmin.f32 %v2658, %v2786
          %v2803 = vmin.f32 %v2659, %v2787
          %v2804 = vmin.f32 %v2660, %v2788
          %v2805 = vmin.f32 %v2661, %v2789
          %v2806 = vmin.f32 %v2662, %v2790
          %v2807 = vmin.f32 %v2663, %v2791
          %v2808 = vmin.f32 %v2664, %v2792
          %v2809 = vmin.f32 %v2665, %v2793
          %v2810 = vmin.f32 %v2666, %v2794
          %v2811 = vmin.f32 %v2667, %v2795
          %v2812 = vmin.f32 %v2668, %v2796
          %v2813 = vmin.f32 %v2669, %v2797
          %v2814 = vrot.slane %v2798, 7
          %v2815 = vrot.slane %v2800, 7
          %v2816 = vrot.slane %v2802, 7
          %v2817 = vrot.slane %v2804, 7
          %v2818 = vrot.slane %v2806, 7
          %v2819 = vrot.slane %v2808, 7
          %v2820 = vrot.slane %v2810, 7
          %v2821 = vrot.slane %v2812, 7
          %v2822 = vrot.slane %v2799, 7
          %v2823 = vrot.slane %v2801, 7
          %v2824 = vrot.slane %v2803, 7
          %v2825 = vrot.slane %v2805, 7
          %v2826 = vrot.slane %v2807, 7
          %v2827 = vrot.slane %v2809, 7
          %v2828 = vrot.slane %v2811, 7
          %v2829 = vrot.slane %v2813, 7
          %v2830 = vsel %vm303, %v2814, %v2822
          %v2831 = vsel %vm303, %v2815, %v2823
          %v2832 = vsel %vm303, %v2816, %v2824
          %v2833 = vsel %vm303, %v2817, %v2825
          %v2834 = vsel %vm303, %v2818, %v2826
          %v2835 = vsel %vm303, %v2819, %v2827
          %v2836 = vsel %vm303, %v2820, %v2828
          %v2837 = vsel %vm303, %v2821, %v2829
          %v2838 = vsel %vm303, %v2822, %v2814
          %v2839 = vsel %vm303, %v2823, %v2815
          %v2840 = vsel %vm303, %v2824, %v2816
          %v2841 = vsel %vm303, %v2825, %v2817
          %v2842 = vsel %vm303, %v2826, %v2818
          %v2843 = vsel %vm303, %v2827, %v2819
          %v2844 = vsel %vm303, %v2828, %v2820
          %v2845 = vsel %vm303, %v2829, %v2821
          %v2846 = vsel %vm322, %v2798, %v2838
          %v2847 = vsel %vm323, %v2799, %v2830
          %v2848 = vsel %vm322, %v2800, %v2839
          %v2849 = vsel %vm323, %v2801, %v2831
          %v2850 = vsel %vm322, %v2802, %v2840
          %v2851 = vsel %vm323, %v2803, %v2832
          %v2852 = vsel %vm322, %v2804, %v2841
          %v2853 = vsel %vm323, %v2805, %v2833
          %v2854 = vsel %vm322, %v2806, %v2842
          %v2855 = vsel %vm323, %v2807, %v2834
          %v2856 = vsel %vm322, %v2808, %v2843
          %v2857 = vsel %vm323, %v2809, %v2835
          %v2858 = vsel %vm322, %v2810, %v2844
          %v2859 = vsel %vm323, %v2811, %v2836
          %v2860 = vsel %vm322, %v2812, %v2845
          %v2861 = vsel %vm323, %v2813, %v2837
          %v2862 = vmax.f32 %v2846, %v2798
          %v2863 = vmax.f32 %v2847, %v2799
          %v2864 = vmax.f32 %v2848, %v2800
          %v2865 = vmax.f32 %v2849, %v2801
          %v2866 = vmax.f32 %v2850, %v2802
          %v2867 = vmax.f32 %v2851, %v2803
          %v2868 = vmax.f32 %v2852, %v2804
          %v2869 = vmax.f32 %v2853, %v2805
          %v2870 = vmax.f32 %v2854, %v2806
          %v2871 = vmax.f32 %v2855, %v2807
          %v2872 = vmax.f32 %v2856, %v2808
          %v2873 = vmax.f32 %v2857, %v2809
          %v2874 = vmax.f32 %v2858, %v2810
          %v2875 = vmax.f32 %v2859, %v2811
          %v2876 = vmax.f32 %v2860, %v2812
          %v2877 = vmax.f32 %v2861, %v2813
          %v2878 = vrot.slane %v2798, 1
          %v2879 = vrot.slane %v2800, 1
          %v2880 = vrot.slane %v2802, 1
          %v2881 = vrot.slane %v2804, 1
          %v2882 = vrot.slane %v2806, 1
          %v2883 = vrot.slane %v2808, 1
          %v2884 = vrot.slane %v2810, 1
          %v2885 = vrot.slane %v2812, 1
          %v2886 = vrot.slane %v2799, 1
          %v2887 = vrot.slane %v2801, 1
          %v2888 = vrot.slane %v2803, 1
          %v2889 = vrot.slane %v2805, 1
          %v2890 = vrot.slane %v2807, 1
          %v2891 = vrot.slane %v2809, 1
          %v2892 = vrot.slane %v2811, 1
          %v2893 = vrot.slane %v2813, 1
          %v2894 = vsel %vm372, %v2878, %v2886
          %v2895 = vsel %vm372, %v2879, %v2887
          %v2896 = vsel %vm372, %v2880, %v2888
          %v2897 = vsel %vm372, %v2881, %v2889
          %v2898 = vsel %vm372, %v2882, %v2890
          %v2899 = vsel %vm372, %v2883, %v2891
          %v2900 = vsel %vm372, %v2884, %v2892
          %v2901 = vsel %vm372, %v2885, %v2893
          %v2902 = vsel %vm372, %v2886, %v2878
          %v2903 = vsel %vm372, %v2887, %v2879
          %v2904 = vsel %vm372, %v2888, %v2880
          %v2905 = vsel %vm372, %v2889, %v2881
          %v2906 = vsel %vm372, %v2890, %v2882
          %v2907 = vsel %vm372, %v2891, %v2883
          %v2908 = vsel %vm372, %v2892, %v2884
          %v2909 = vsel %vm372, %v2893, %v2885
          %v2910 = vsel %vm391, %v2798, %v2894
          %v2911 = vsel %vm392, %v2799, %v2902
          %v2912 = vsel %vm391, %v2800, %v2895
          %v2913 = vsel %vm392, %v2801, %v2903
          %v2914 = vsel %vm391, %v2802, %v2896
          %v2915 = vsel %vm392, %v2803, %v2904
          %v2916 = vsel %vm391, %v2804, %v2897
          %v2917 = vsel %vm392, %v2805, %v2905
          %v2918 = vsel %vm391, %v2806, %v2898
          %v2919 = vsel %vm392, %v2807, %v2906
          %v2920 = vsel %vm391, %v2808, %v2899
          %v2921 = vsel %vm392, %v2809, %v2907
          %v2922 = vsel %vm391, %v2810, %v2900
          %v2923 = vsel %vm392, %v2811, %v2908
          %v2924 = vsel %vm391, %v2812, %v2901
          %v2925 = vsel %vm392, %v2813, %v2909
          %v2926 = vmax.f32 %v2862, %v2910
          %v2927 = vmax.f32 %v2863, %v2911
          %v2928 = vmax.f32 %v2864, %v2912
          %v2929 = vmax.f32 %v2865, %v2913
          %v2930 = vmax.f32 %v2866, %v2914
          %v2931 = vmax.f32 %v2867, %v2915
          %v2932 = vmax.f32 %v2868, %v2916
          %v2933 = vmax.f32 %v2869, %v2917
          %v2934 = vmax.f32 %v2870, %v2918
          %v2935 = vmax.f32 %v2871, %v2919
          %v2936 = vmax.f32 %v2872, %v2920
          %v2937 = vmax.f32 %v2873, %v2921
          %v2938 = vmax.f32 %v2874, %v2922
          %v2939 = vmax.f32 %v2875, %v2923
          %v2940 = vmax.f32 %v2876, %v2924
          %v2941 = vmax.f32 %v2877, %v2925
          %2942 = vrot.lane.b32.xlu0 %v2926, 1
          %v2943 = vpop.permute.xlu0 %2942
          %2944 = vrot.lane.b32.xlu0 %v2927, 1
          %v2945 = vpop.permute.xlu0 %2944
          %2946 = vrot.lane.b32.xlu0 %v2928, 1
          %v2947 = vpop.permute.xlu0 %2946
          %2948 = vrot.lane.b32.xlu0 %v2929, 1
          %v2949 = vpop.permute.xlu0 %2948
          %2950 = vrot.lane.b32.xlu0 %v2930, 1
          %v2951 = vpop.permute.xlu0 %2950
          %2952 = vrot.lane.b32.xlu0 %v2931, 1
          %v2953 = vpop.permute.xlu0 %2952
          %2954 = vrot.lane.b32.xlu0 %v2932, 1
          %v2955 = vpop.permute.xlu0 %2954
          %2956 = vrot.lane.b32.xlu0 %v2933, 1
          %v2957 = vpop.permute.xlu0 %2956
          %2958 = vrot.lane.b32.xlu0 %v2934, 1
          %v2959 = vpop.permute.xlu0 %2958
          %2960 = vrot.lane.b32.xlu0 %v2935, 1
          %v2961 = vpop.permute.xlu0 %2960
          %2962 = vrot.lane.b32.xlu0 %v2936, 1
          %v2963 = vpop.permute.xlu0 %2962
          %2964 = vrot.lane.b32.xlu0 %v2937, 1
          %v2965 = vpop.permute.xlu0 %2964
          %2966 = vrot.lane.b32.xlu0 %v2938, 1
          %v2967 = vpop.permute.xlu0 %2966
          %2968 = vrot.lane.b32.xlu0 %v2939, 1
          %v2969 = vpop.permute.xlu0 %2968
          %2970 = vrot.lane.b32.xlu0 %v2940, 1
          %v2971 = vpop.permute.xlu0 %2970
          %2972 = vrot.lane.b32.xlu0 %v2941, 1
          %v2973 = vpop.permute.xlu0 %2972
          %v2974 = vsel %vm458, %v2926, %v2943
          %v2975 = vsel %vm458, %v2927, %v2945
          %v2976 = vsel %vm458, %v2928, %v2947
          %v2977 = vsel %vm458, %v2929, %v2949
          %v2978 = vsel %vm458, %v2930, %v2951
          %v2979 = vsel %vm458, %v2931, %v2953
          %v2980 = vsel %vm458, %v2932, %v2955
          %v2981 = vsel %vm458, %v2933, %v2957
          %v2982 = vsel %vm458, %v2934, %v2959
          %v2983 = vsel %vm458, %v2935, %v2961
          %v2984 = vsel %vm458, %v2936, %v2963
          %v2985 = vsel %vm458, %v2937, %v2965
          %v2986 = vsel %vm458, %v2938, %v2967
          %v2987 = vsel %vm458, %v2939, %v2969
          %v2988 = vsel %vm458, %v2940, %v2971
          %v2989 = vsel %vm458, %v2941, %v2973
          %v2990 = vmax.f32 %v2974, %v2926
          %v2991 = vmax.f32 %v2975, %v2927
          %v2992 = vmax.f32 %v2976, %v2928
          %v2993 = vmax.f32 %v2977, %v2929
          %v2994 = vmax.f32 %v2978, %v2930
          %v2995 = vmax.f32 %v2979, %v2931
          %v2996 = vmax.f32 %v2980, %v2932
          %v2997 = vmax.f32 %v2981, %v2933
          %v2998 = vmax.f32 %v2982, %v2934
          %v2999 = vmax.f32 %v2983, %v2935
          %v3000 = vmax.f32 %v2984, %v2936
          %v3001 = vmax.f32 %v2985, %v2937
          %v3002 = vmax.f32 %v2986, %v2938
          %v3003 = vmax.f32 %v2987, %v2939
          %v3004 = vmax.f32 %v2988, %v2940
          %v3005 = vmax.f32 %v2989, %v2941
          %3006 = vrot.lane.b32.xlu0 %v2926, 127
          %v3007 = vpop.permute.xlu0 %3006
          %3008 = vrot.lane.b32.xlu0 %v2927, 127
          %v3009 = vpop.permute.xlu0 %3008
          %3010 = vrot.lane.b32.xlu0 %v2928, 127
          %v3011 = vpop.permute.xlu0 %3010
          %3012 = vrot.lane.b32.xlu0 %v2929, 127
          %v3013 = vpop.permute.xlu0 %3012
          %3014 = vrot.lane.b32.xlu0 %v2930, 127
          %v3015 = vpop.permute.xlu0 %3014
          %3016 = vrot.lane.b32.xlu0 %v2931, 127
          %v3017 = vpop.permute.xlu0 %3016
          %3018 = vrot.lane.b32.xlu0 %v2932, 127
          %v3019 = vpop.permute.xlu0 %3018
          %3020 = vrot.lane.b32.xlu0 %v2933, 127
          %v3021 = vpop.permute.xlu0 %3020
          %3022 = vrot.lane.b32.xlu0 %v2934, 127
          %v3023 = vpop.permute.xlu0 %3022
          %3024 = vrot.lane.b32.xlu0 %v2935, 127
          %v3025 = vpop.permute.xlu0 %3024
          %3026 = vrot.lane.b32.xlu0 %v2936, 127
          %v3027 = vpop.permute.xlu0 %3026
          %3028 = vrot.lane.b32.xlu0 %v2937, 127
          %v3029 = vpop.permute.xlu0 %3028
          %3030 = vrot.lane.b32.xlu0 %v2938, 127
          %v3031 = vpop.permute.xlu0 %3030
          %3032 = vrot.lane.b32.xlu0 %v2939, 127
          %v3033 = vpop.permute.xlu0 %3032
          %3034 = vrot.lane.b32.xlu0 %v2940, 127
          %v3035 = vpop.permute.xlu0 %3034
          %3036 = vrot.lane.b32.xlu0 %v2941, 127
          %v3037 = vpop.permute.xlu0 %3036
          %v3038 = vsel %vm524, %v2926, %v3007
          %v3039 = vsel %vm524, %v2927, %v3009
          %v3040 = vsel %vm524, %v2928, %v3011
          %v3041 = vsel %vm524, %v2929, %v3013
          %v3042 = vsel %vm524, %v2930, %v3015
          %v3043 = vsel %vm524, %v2931, %v3017
          %v3044 = vsel %vm524, %v2932, %v3019
          %v3045 = vsel %vm524, %v2933, %v3021
          %v3046 = vsel %vm524, %v2934, %v3023
          %v3047 = vsel %vm524, %v2935, %v3025
          %v3048 = vsel %vm524, %v2936, %v3027
          %v3049 = vsel %vm524, %v2937, %v3029
          %v3050 = vsel %vm524, %v2938, %v3031
          %v3051 = vsel %vm524, %v2939, %v3033
          %v3052 = vsel %vm524, %v2940, %v3035
          %v3053 = vsel %vm524, %v2941, %v3037
          %v3054 = vmax.f32 %v2990, %v3038
          %v3055 = vmax.f32 %v2991, %v3039
          %v3056 = vmax.f32 %v2992, %v3040
          %v3057 = vmax.f32 %v2993, %v3041
          %v3058 = vmax.f32 %v2994, %v3042
          %v3059 = vmax.f32 %v2995, %v3043
          %v3060 = vmax.f32 %v2996, %v3044
          %v3061 = vmax.f32 %v2997, %v3045
          %v3062 = vmax.f32 %v2998, %v3046
          %v3063 = vmax.f32 %v2999, %v3047
          %v3064 = vmax.f32 %v3000, %v3048
          %v3065 = vmax.f32 %v3001, %v3049
          %v3066 = vmax.f32 %v3002, %v3050
          %v3067 = vmax.f32 %v3003, %v3051
          %v3068 = vmax.f32 %v3004, %v3052
          %v3069 = vmax.f32 %v3005, %v3053
          %v3070 = vsub.f32 1.0, %v2622
          %v3071 = vsub.f32 1.0, %v2623
          %v3072 = vsub.f32 1.0, %v2624
          %v3073 = vsub.f32 1.0, %v2625
          %v3074 = vsub.f32 1.0, %v2626
          %v3075 = vsub.f32 1.0, %v2627
          %v3076 = vsub.f32 1.0, %v2628
          %v3077 = vsub.f32 1.0, %v2629
          %v3078 = vsub.f32 1.0, %v2630
          %v3079 = vsub.f32 1.0, %v2631
          %v3080 = vsub.f32 1.0, %v2632
          %v3081 = vsub.f32 1.0, %v2633
          %v3082 = vsub.f32 1.0, %v2634
          %v3083 = vsub.f32 1.0, %v2635
          %v3084 = vsub.f32 1.0, %v2636
          %v3085 = vsub.f32 1.0, %v2637
          %v3086 = vsub.f32 %v2270, %v3054
          %v3087 = vsub.f32 %v2271, %v3055
          %v3088 = vsub.f32 %v2272, %v3056
          %v3089 = vsub.f32 %v2273, %v3057
          %v3090 = vsub.f32 %v2274, %v3058
          %v3091 = vsub.f32 %v2275, %v3059
          %v3092 = vsub.f32 %v2276, %v3060
          %v3093 = vsub.f32 %v2277, %v3061
          %v3094 = vsub.f32 %v2278, %v3062
          %v3095 = vsub.f32 %v2279, %v3063
          %v3096 = vsub.f32 %v2280, %v3064
          %v3097 = vsub.f32 %v2281, %v3065
          %v3098 = vsub.f32 %v2282, %v3066
          %v3099 = vsub.f32 %v2283, %v3067
          %v3100 = vsub.f32 %v2284, %v3068
          %v3101 = vsub.f32 %v2285, %v3069
          %v3102 = vmax.f32 %v3086, 0.0
          %v3103 = vmax.f32 %v3087, 0.0
          %v3104 = vmax.f32 %v3088, 0.0
          %v3105 = vmax.f32 %v3089, 0.0
          %v3106 = vmax.f32 %v3090, 0.0
          %v3107 = vmax.f32 %v3091, 0.0
          %v3108 = vmax.f32 %v3092, 0.0
          %v3109 = vmax.f32 %v3093, 0.0
          %v3110 = vmax.f32 %v3094, 0.0
          %v3111 = vmax.f32 %v3095, 0.0
          %v3112 = vmax.f32 %v3096, 0.0
          %v3113 = vmax.f32 %v3097, 0.0
          %v3114 = vmax.f32 %v3098, 0.0
          %v3115 = vmax.f32 %v3099, 0.0
          %v3116 = vmax.f32 %v3100, 0.0
          %v3117 = vmax.f32 %v3101, 0.0
          %v3118 = vmul.f32 %v3070, %v3102
          %v3119 = vmul.f32 %v3071, %v3103
          %v3120 = vmul.f32 %v3072, %v3104
          %v3121 = vmul.f32 %v3073, %v3105
          %v3122 = vmul.f32 %v3074, %v3106
          %v3123 = vmul.f32 %v3075, %v3107
          %v3124 = vmul.f32 %v3076, %v3108
          %v3125 = vmul.f32 %v3077, %v3109
          %v3126 = vmul.f32 %v3078, %v3110
          %v3127 = vmul.f32 %v3079, %v3111
          %v3128 = vmul.f32 %v3080, %v3112
          %v3129 = vmul.f32 %v3081, %v3113
          %v3130 = vmul.f32 %v3082, %v3114
          %v3131 = vmul.f32 %v3083, %v3115
          %v3132 = vmul.f32 %v3084, %v3116
          %v3133 = vmul.f32 %v3085, %v3117
          %v3134 = vmax.f32 %v3118, 0.0
          %v3135 = vmax.f32 %v3119, 0.0
          %v3136 = vmax.f32 %v3120, 0.0
          %v3137 = vmax.f32 %v3121, 0.0
          %v3138 = vmax.f32 %v3122, 0.0
          %v3139 = vmax.f32 %v3123, 0.0
          %v3140 = vmax.f32 %v3124, 0.0
          %v3141 = vmax.f32 %v3125, 0.0
          %v3142 = vmax.f32 %v3126, 0.0
          %v3143 = vmax.f32 %v3127, 0.0
          %v3144 = vmax.f32 %v3128, 0.0
          %v3145 = vmax.f32 %v3129, 0.0
          %v3146 = vmax.f32 %v3130, 0.0
          %v3147 = vmax.f32 %v3131, 0.0
          %v3148 = vmax.f32 %v3132, 0.0
          %v3149 = vmax.f32 %v3133, 0.0
          %v3150 = vadd.f32 %v2622, %v3134
          %v3151 = vadd.f32 %v2623, %v3135
          %v3152 = vadd.f32 %v2624, %v3136
          %v3153 = vadd.f32 %v2625, %v3137
          %v3154 = vadd.f32 %v2626, %v3138
          %v3155 = vadd.f32 %v2627, %v3139
          %v3156 = vadd.f32 %v2628, %v3140
          %v3157 = vadd.f32 %v2629, %v3141
          %v3158 = vadd.f32 %v2630, %v3142
          %v3159 = vadd.f32 %v2631, %v3143
          %v3160 = vadd.f32 %v2632, %v3144
          %v3161 = vadd.f32 %v2633, %v3145
          %v3162 = vadd.f32 %v2634, %v3146
          %v3163 = vadd.f32 %v2635, %v3147
          %v3164 = vadd.f32 %v2636, %v3148
          %v3165 = vadd.f32 %v2637, %v3149
          %s3166 = sadd.s32 %s950, 1
          %v3167 = vand.u32 2147483647, %v2798
          %v3168 = vand.u32 2147483647, %v2799
          %v3169 = vand.u32 2147483647, %v2800
          %v3170 = vand.u32 2147483647, %v2801
          %v3171 = vand.u32 2147483647, %v2802
          %v3172 = vand.u32 2147483647, %v2803
          %v3173 = vand.u32 2147483647, %v2804
          %v3174 = vand.u32 2147483647, %v2805
          %v3175 = vand.u32 2147483647, %v2806
          %v3176 = vand.u32 2147483647, %v2807
          %v3177 = vand.u32 2147483647, %v2808
          %v3178 = vand.u32 2147483647, %v2809
          %v3179 = vand.u32 2147483647, %v2810
          %v3180 = vand.u32 2147483647, %v2811
          %v3181 = vand.u32 2147483647, %v2812
          %v3182 = vand.u32 2147483647, %v2813
          %v3183 = vmul.f32 %v3167, %v253
          %v3184 = vmul.f32 %v3168, %v254
          %v3185 = vmul.f32 %v3169, %v253
          %v3186 = vmul.f32 %v3170, %v254
          %v3187 = vmul.f32 %v3171, %v253
          %v3188 = vmul.f32 %v3172, %v254
          %v3189 = vmul.f32 %v3173, %v253
          %v3190 = vmul.f32 %v3174, %v254
          %v3191 = vmul.f32 %v3175, %v253
          %v3192 = vmul.f32 %v3176, %v254
          %v3193 = vmul.f32 %v3177, %v253
          %v3194 = vmul.f32 %v3178, %v254
          %v3195 = vmul.f32 %v3179, %v253
          %v3196 = vmul.f32 %v3180, %v254
          %v3197 = vmul.f32 %v3181, %v253
          %v3198 = vmul.f32 %v3182, %v254
          %v3199 = vadd.f32 %v3183, %v3184
          %v3200 = vadd.f32 %v3199, %v3185
          %v3201 = vadd.f32 %v3200, %v3186
          %v3202 = vadd.f32 %v3201, %v3187
          %v3203 = vadd.f32 %v3202, %v3188
          %v3204 = vadd.f32 %v3203, %v3189
          %v3205 = vadd.f32 %v3204, %v3190
          %v3206 = vadd.f32 %v3205, %v3191
          %v3207 = vadd.f32 %v3206, %v3192
          %v3208 = vadd.f32 %v3207, %v3193
          %v3209 = vadd.f32 %v3208, %v3194
          %v3210 = vadd.f32 %v3209, %v3195
          %v3211 = vadd.f32 %v3210, %v3196
          %v3212 = vadd.f32 %v3211, %v3197
          %v3213 = vadd.f32 %v3212, %v3198
          %3214 = vadd.xlane.f32.xlu0 %v3213
          %v3215 = vpop.xlane.xlu0 %3214
          %v3216 = vrot.slane %v3215, 4
          %v3217 = vadd.f32 %v3215, %v3216
          %v3218 = vrot.slane %v3217, 2
          %v3219 = vadd.f32 %v3217, %v3218
          %v3220 = vrot.slane %v3219, 1
          %v3221 = vadd.f32 %v3219, %v3220
          %s3222 = vtos %v3221
        $region41: #{tpu_custom_call.1} parent=27 // loop_footer
          _
        $region42: #{tpu_custom_call.1} parent=27 // loop_footer_branch
          %917 = sbr.rel target = $region38
        $region43: #{tpu_custom_call.1} parent=27 // loop_exit
          _
        %v3223 = vrot.slane %v934, 7
        %v3224 = vrot.slane %v936, 7
        %v3225 = vrot.slane %v938, 7
        %v3226 = vrot.slane %v940, 7
        %v3227 = vrot.slane %v942, 7
        %v3228 = vrot.slane %v944, 7
        %v3229 = vrot.slane %v946, 7
        %v3230 = vrot.slane %v948, 7
        %v3231 = vrot.slane %v935, 7
        %v3232 = vrot.slane %v937, 7
        %v3233 = vrot.slane %v939, 7
        %v3234 = vrot.slane %v941, 7
        %v3235 = vrot.slane %v943, 7
        %v3236 = vrot.slane %v945, 7
        %v3237 = vrot.slane %v947, 7
        %v3238 = vrot.slane %v949, 7
        %v3239 = vsel %vm303, %v3223, %v3231
        %v3240 = vsel %vm303, %v3224, %v3232
        %v3241 = vsel %vm303, %v3225, %v3233
        %v3242 = vsel %vm303, %v3226, %v3234
        %v3243 = vsel %vm303, %v3227, %v3235
        %v3244 = vsel %vm303, %v3228, %v3236
        %v3245 = vsel %vm303, %v3229, %v3237
        %v3246 = vsel %vm303, %v3230, %v3238
        %v3247 = vsel %vm303, %v3231, %v3223
        %v3248 = vsel %vm303, %v3232, %v3224
        %v3249 = vsel %vm303, %v3233, %v3225
        %v3250 = vsel %vm303, %v3234, %v3226
        %v3251 = vsel %vm303, %v3235, %v3227
        %v3252 = vsel %vm303, %v3236, %v3228
        %v3253 = vsel %vm303, %v3237, %v3229
        %v3254 = vsel %vm303, %v3238, %v3230
        %v3255 = vsel %vm322, %v934, %v3247
        %v3256 = vsel %vm323, %v935, %v3239
        %v3257 = vsel %vm322, %v936, %v3248
        %v3258 = vsel %vm323, %v937, %v3240
        %v3259 = vsel %vm322, %v938, %v3249
        %v3260 = vsel %vm323, %v939, %v3241
        %v3261 = vsel %vm322, %v940, %v3250
        %v3262 = vsel %vm323, %v941, %v3242
        %v3263 = vsel %vm322, %v942, %v3251
        %v3264 = vsel %vm323, %v943, %v3243
        %v3265 = vsel %vm322, %v944, %v3252
        %v3266 = vsel %vm323, %v945, %v3244
        %v3267 = vsel %vm322, %v946, %v3253
        %v3268 = vsel %vm323, %v947, %v3245
        %v3269 = vsel %vm322, %v948, %v3254
        %v3270 = vsel %vm323, %v949, %v3246
        %v3271 = vmax.f32 %v3255, %v934
        %v3272 = vmax.f32 %v3256, %v935
        %v3273 = vmax.f32 %v3257, %v936
        %v3274 = vmax.f32 %v3258, %v937
        %v3275 = vmax.f32 %v3259, %v938
        %v3276 = vmax.f32 %v3260, %v939
        %v3277 = vmax.f32 %v3261, %v940
        %v3278 = vmax.f32 %v3262, %v941
        %v3279 = vmax.f32 %v3263, %v942
        %v3280 = vmax.f32 %v3264, %v943
        %v3281 = vmax.f32 %v3265, %v944
        %v3282 = vmax.f32 %v3266, %v945
        %v3283 = vmax.f32 %v3267, %v946
        %v3284 = vmax.f32 %v3268, %v947
        %v3285 = vmax.f32 %v3269, %v948
        %v3286 = vmax.f32 %v3270, %v949
        %v3287 = vrot.slane %v934, 1
        %v3288 = vrot.slane %v936, 1
        %v3289 = vrot.slane %v938, 1
        %v3290 = vrot.slane %v940, 1
        %v3291 = vrot.slane %v942, 1
        %v3292 = vrot.slane %v944, 1
        %v3293 = vrot.slane %v946, 1
        %v3294 = vrot.slane %v948, 1
        %v3295 = vrot.slane %v935, 1
        %v3296 = vrot.slane %v937, 1
        %v3297 = vrot.slane %v939, 1
        %v3298 = vrot.slane %v941, 1
        %v3299 = vrot.slane %v943, 1
        %v3300 = vrot.slane %v945, 1
        %v3301 = vrot.slane %v947, 1
        %v3302 = vrot.slane %v949, 1
        %v3303 = vsel %vm372, %v3287, %v3295
        %v3304 = vsel %vm372, %v3288, %v3296
        %v3305 = vsel %vm372, %v3289, %v3297
        %v3306 = vsel %vm372, %v3290, %v3298
        %v3307 = vsel %vm372, %v3291, %v3299
        %v3308 = vsel %vm372, %v3292, %v3300
        %v3309 = vsel %vm372, %v3293, %v3301
        %v3310 = vsel %vm372, %v3294, %v3302
        %v3311 = vsel %vm372, %v3295, %v3287
        %v3312 = vsel %vm372, %v3296, %v3288
        %v3313 = vsel %vm372, %v3297, %v3289
        %v3314 = vsel %vm372, %v3298, %v3290
        %v3315 = vsel %vm372, %v3299, %v3291
        %v3316 = vsel %vm372, %v3300, %v3292
        %v3317 = vsel %vm372, %v3301, %v3293
        %v3318 = vsel %vm372, %v3302, %v3294
        %v3319 = vsel %vm391, %v934, %v3303
        %v3320 = vsel %vm392, %v935, %v3311
        %v3321 = vsel %vm391, %v936, %v3304
        %v3322 = vsel %vm392, %v937, %v3312
        %v3323 = vsel %vm391, %v938, %v3305
        %v3324 = vsel %vm392, %v939, %v3313
        %v3325 = vsel %vm391, %v940, %v3306
        %v3326 = vsel %vm392, %v941, %v3314
        %v3327 = vsel %vm391, %v942, %v3307
        %v3328 = vsel %vm392, %v943, %v3315
        %v3329 = vsel %vm391, %v944, %v3308
        %v3330 = vsel %vm392, %v945, %v3316
        %v3331 = vsel %vm391, %v946, %v3309
        %v3332 = vsel %vm392, %v947, %v3317
        %v3333 = vsel %vm391, %v948, %v3310
        %v3334 = vsel %vm392, %v949, %v3318
        %v3335 = vmax.f32 %v3271, %v3319
        %v3336 = vmax.f32 %v3272, %v3320
        %v3337 = vmax.f32 %v3273, %v3321
        %v3338 = vmax.f32 %v3274, %v3322
        %v3339 = vmax.f32 %v3275, %v3323
        %v3340 = vmax.f32 %v3276, %v3324
        %v3341 = vmax.f32 %v3277, %v3325
        %v3342 = vmax.f32 %v3278, %v3326
        %v3343 = vmax.f32 %v3279, %v3327
        %v3344 = vmax.f32 %v3280, %v3328
        %v3345 = vmax.f32 %v3281, %v3329
        %v3346 = vmax.f32 %v3282, %v3330
        %v3347 = vmax.f32 %v3283, %v3331
        %v3348 = vmax.f32 %v3284, %v3332
        %v3349 = vmax.f32 %v3285, %v3333
        %v3350 = vmax.f32 %v3286, %v3334
        %3351 = vrot.lane.b32.xlu0 %v3335, 1
        %v3352 = vpop.permute.xlu0 %3351
        %3353 = vrot.lane.b32.xlu0 %v3336, 1
        %v3354 = vpop.permute.xlu0 %3353
        %3355 = vrot.lane.b32.xlu0 %v3337, 1
        %v3356 = vpop.permute.xlu0 %3355
        %3357 = vrot.lane.b32.xlu0 %v3338, 1
        %v3358 = vpop.permute.xlu0 %3357
        %3359 = vrot.lane.b32.xlu0 %v3339, 1
        %v3360 = vpop.permute.xlu0 %3359
        %3361 = vrot.lane.b32.xlu0 %v3340, 1
        %v3362 = vpop.permute.xlu0 %3361
        %3363 = vrot.lane.b32.xlu0 %v3341, 1
        %v3364 = vpop.permute.xlu0 %3363
        %3365 = vrot.lane.b32.xlu0 %v3342, 1
        %v3366 = vpop.permute.xlu0 %3365
        %3367 = vrot.lane.b32.xlu0 %v3343, 1
        %v3368 = vpop.permute.xlu0 %3367
        %3369 = vrot.lane.b32.xlu0 %v3344, 1
        %v3370 = vpop.permute.xlu0 %3369
        %3371 = vrot.lane.b32.xlu0 %v3345, 1
        %v3372 = vpop.permute.xlu0 %3371
        %3373 = vrot.lane.b32.xlu0 %v3346, 1
        %v3374 = vpop.permute.xlu0 %3373
        %3375 = vrot.lane.b32.xlu0 %v3347, 1
        %v3376 = vpop.permute.xlu0 %3375
        %3377 = vrot.lane.b32.xlu0 %v3348, 1
        %v3378 = vpop.permute.xlu0 %3377
        %3379 = vrot.lane.b32.xlu0 %v3349, 1
        %v3380 = vpop.permute.xlu0 %3379
        %3381 = vrot.lane.b32.xlu0 %v3350, 1
        %v3382 = vpop.permute.xlu0 %3381
        %v3383 = vsel %vm458, %v3335, %v3352
        %v3384 = vsel %vm458, %v3336, %v3354
        %v3385 = vsel %vm458, %v3337, %v3356
        %v3386 = vsel %vm458, %v3338, %v3358
        %v3387 = vsel %vm458, %v3339, %v3360
        %v3388 = vsel %vm458, %v3340, %v3362
        %v3389 = vsel %vm458, %v3341, %v3364
        %v3390 = vsel %vm458, %v3342, %v3366
        %v3391 = vsel %vm458, %v3343, %v3368
        %v3392 = vsel %vm458, %v3344, %v3370
        %v3393 = vsel %vm458, %v3345, %v3372
        %v3394 = vsel %vm458, %v3346, %v3374
        %v3395 = vsel %vm458, %v3347, %v3376
        %v3396 = vsel %vm458, %v3348, %v3378
        %v3397 = vsel %vm458, %v3349, %v3380
        %v3398 = vsel %vm458, %v3350, %v3382
        %v3399 = vmax.f32 %v3383, %v3335
        %v3400 = vmax.f32 %v3384, %v3336
        %v3401 = vmax.f32 %v3385, %v3337
        %v3402 = vmax.f32 %v3386, %v3338
        %v3403 = vmax.f32 %v3387, %v3339
        %v3404 = vmax.f32 %v3388, %v3340
        %v3405 = vmax.f32 %v3389, %v3341
        %v3406 = vmax.f32 %v3390, %v3342
        %v3407 = vmax.f32 %v3391, %v3343
        %v3408 = vmax.f32 %v3392, %v3344
        %v3409 = vmax.f32 %v3393, %v3345
        %v3410 = vmax.f32 %v3394, %v3346
        %v3411 = vmax.f32 %v3395, %v3347
        %v3412 = vmax.f32 %v3396, %v3348
        %v3413 = vmax.f32 %v3397, %v3349
        %v3414 = vmax.f32 %v3398, %v3350
        %3415 = vrot.lane.b32.xlu0 %v3335, 127
        %v3416 = vpop.permute.xlu0 %3415
        %3417 = vrot.lane.b32.xlu0 %v3336, 127
        %v3418 = vpop.permute.xlu0 %3417
        %3419 = vrot.lane.b32.xlu0 %v3337, 127
        %v3420 = vpop.permute.xlu0 %3419
        %3421 = vrot.lane.b32.xlu0 %v3338, 127
        %v3422 = vpop.permute.xlu0 %3421
        %3423 = vrot.lane.b32.xlu0 %v3339, 127
        %v3424 = vpop.permute.xlu0 %3423
        %3425 = vrot.lane.b32.xlu0 %v3340, 127
        %v3426 = vpop.permute.xlu0 %3425
        %3427 = vrot.lane.b32.xlu0 %v3341, 127
        %v3428 = vpop.permute.xlu0 %3427
        %3429 = vrot.lane.b32.xlu0 %v3342, 127
        %v3430 = vpop.permute.xlu0 %3429
        %3431 = vrot.lane.b32.xlu0 %v3343, 127
        %v3432 = vpop.permute.xlu0 %3431
        %3433 = vrot.lane.b32.xlu0 %v3344, 127
        %v3434 = vpop.permute.xlu0 %3433
        %3435 = vrot.lane.b32.xlu0 %v3345, 127
        %v3436 = vpop.permute.xlu0 %3435
        %3437 = vrot.lane.b32.xlu0 %v3346, 127
        %v3438 = vpop.permute.xlu0 %3437
        %3439 = vrot.lane.b32.xlu0 %v3347, 127
        %v3440 = vpop.permute.xlu0 %3439
        %3441 = vrot.lane.b32.xlu0 %v3348, 127
        %v3442 = vpop.permute.xlu0 %3441
        %3443 = vrot.lane.b32.xlu0 %v3349, 127
        %v3444 = vpop.permute.xlu0 %3443
        %3445 = vrot.lane.b32.xlu0 %v3350, 127
        %v3446 = vpop.permute.xlu0 %3445
        %v3447 = vsel %vm524, %v3335, %v3416
        %v3448 = vsel %vm524, %v3336, %v3418
        %v3449 = vsel %vm524, %v3337, %v3420
        %v3450 = vsel %vm524, %v3338, %v3422
        %v3451 = vsel %vm524, %v3339, %v3424
        %v3452 = vsel %vm524, %v3340, %v3426
        %v3453 = vsel %vm524, %v3341, %v3428
        %v3454 = vsel %vm524, %v3342, %v3430
        %v3455 = vsel %vm524, %v3343, %v3432
        %v3456 = vsel %vm524, %v3344, %v3434
        %v3457 = vsel %vm524, %v3345, %v3436
        %v3458 = vsel %vm524, %v3346, %v3438
        %v3459 = vsel %vm524, %v3347, %v3440
        %v3460 = vsel %vm524, %v3348, %v3442
        %v3461 = vsel %vm524, %v3349, %v3444
        %v3462 = vsel %vm524, %v3350, %v3446
        %v3463 = vmax.f32 %v3399, %v3447
        %v3464 = vmax.f32 %v3400, %v3448
        %v3465 = vmax.f32 %v3401, %v3449
        %v3466 = vmax.f32 %v3402, %v3450
        %v3467 = vmax.f32 %v3403, %v3451
        %v3468 = vmax.f32 %v3404, %v3452
        %v3469 = vmax.f32 %v3405, %v3453
        %v3470 = vmax.f32 %v3406, %v3454
        %v3471 = vmax.f32 %v3407, %v3455
        %v3472 = vmax.f32 %v3408, %v3456
        %v3473 = vmax.f32 %v3409, %v3457
        %v3474 = vmax.f32 %v3410, %v3458
        %v3475 = vmax.f32 %v3411, %v3459
        %v3476 = vmax.f32 %v3412, %v3460
        %v3477 = vmax.f32 %v3413, %v3461
        %v3478 = vmax.f32 %v3414, %v3462
        %v3479 = vrot.slane %v3463, 7
        %v3480 = vrot.slane %v3465, 7
        %v3481 = vrot.slane %v3467, 7
        %v3482 = vrot.slane %v3469, 7
        %v3483 = vrot.slane %v3471, 7
        %v3484 = vrot.slane %v3473, 7
        %v3485 = vrot.slane %v3475, 7
        %v3486 = vrot.slane %v3477, 7
        %v3487 = vrot.slane %v3464, 7
        %v3488 = vrot.slane %v3466, 7
        %v3489 = vrot.slane %v3468, 7
        %v3490 = vrot.slane %v3470, 7
        %v3491 = vrot.slane %v3472, 7
        %v3492 = vrot.slane %v3474, 7
        %v3493 = vrot.slane %v3476, 7
        %v3494 = vrot.slane %v3478, 7
        %v3495 = vsel %vm303, %v3479, %v3487
        %v3496 = vsel %vm303, %v3480, %v3488
        %v3497 = vsel %vm303, %v3481, %v3489
        %v3498 = vsel %vm303, %v3482, %v3490
        %v3499 = vsel %vm303, %v3483, %v3491
        %v3500 = vsel %vm303, %v3484, %v3492
        %v3501 = vsel %vm303, %v3485, %v3493
        %v3502 = vsel %vm303, %v3486, %v3494
        %v3503 = vsel %vm303, %v3487, %v3479
        %v3504 = vsel %vm303, %v3488, %v3480
        %v3505 = vsel %vm303, %v3489, %v3481
        %v3506 = vsel %vm303, %v3490, %v3482
        %v3507 = vsel %vm303, %v3491, %v3483
        %v3508 = vsel %vm303, %v3492, %v3484
        %v3509 = vsel %vm303, %v3493, %v3485
        %v3510 = vsel %vm303, %v3494, %v3486
        %v3511 = vsel %vm322, %v3463, %v3503
        %v3512 = vsel %vm323, %v3464, %v3495
        %v3513 = vsel %vm322, %v3465, %v3504
        %v3514 = vsel %vm323, %v3466, %v3496
        %v3515 = vsel %vm322, %v3467, %v3505
        %v3516 = vsel %vm323, %v3468, %v3497
        %v3517 = vsel %vm322, %v3469, %v3506
        %v3518 = vsel %vm323, %v3470, %v3498
        %v3519 = vsel %vm322, %v3471, %v3507
        %v3520 = vsel %vm323, %v3472, %v3499
        %v3521 = vsel %vm322, %v3473, %v3508
        %v3522 = vsel %vm323, %v3474, %v3500
        %v3523 = vsel %vm322, %v3475, %v3509
        %v3524 = vsel %vm323, %v3476, %v3501
        %v3525 = vsel %vm322, %v3477, %v3510
        %v3526 = vsel %vm323, %v3478, %v3502
        %v3527 = vmin.f32 %v3511, %v3463
        %v3528 = vmin.f32 %v3512, %v3464
        %v3529 = vmin.f32 %v3513, %v3465
        %v3530 = vmin.f32 %v3514, %v3466
        %v3531 = vmin.f32 %v3515, %v3467
        %v3532 = vmin.f32 %v3516, %v3468
        %v3533 = vmin.f32 %v3517, %v3469
        %v3534 = vmin.f32 %v3518, %v3470
        %v3535 = vmin.f32 %v3519, %v3471
        %v3536 = vmin.f32 %v3520, %v3472
        %v3537 = vmin.f32 %v3521, %v3473
        %v3538 = vmin.f32 %v3522, %v3474
        %v3539 = vmin.f32 %v3523, %v3475
        %v3540 = vmin.f32 %v3524, %v3476
        %v3541 = vmin.f32 %v3525, %v3477
        %v3542 = vmin.f32 %v3526, %v3478
        %v3543 = vrot.slane %v3463, 1
        %v3544 = vrot.slane %v3465, 1
        %v3545 = vrot.slane %v3467, 1
        %v3546 = vrot.slane %v3469, 1
        %v3547 = vrot.slane %v3471, 1
        %v3548 = vrot.slane %v3473, 1
        %v3549 = vrot.slane %v3475, 1
        %v3550 = vrot.slane %v3477, 1
        %v3551 = vrot.slane %v3464, 1
        %v3552 = vrot.slane %v3466, 1
        %v3553 = vrot.slane %v3468, 1
        %v3554 = vrot.slane %v3470, 1
        %v3555 = vrot.slane %v3472, 1
        %v3556 = vrot.slane %v3474, 1
        %v3557 = vrot.slane %v3476, 1
        %v3558 = vrot.slane %v3478, 1
        %v3559 = vsel %vm372, %v3543, %v3551
        %v3560 = vsel %vm372, %v3544, %v3552
        %v3561 = vsel %vm372, %v3545, %v3553
        %v3562 = vsel %vm372, %v3546, %v3554
        %v3563 = vsel %vm372, %v3547, %v3555
        %v3564 = vsel %vm372, %v3548, %v3556
        %v3565 = vsel %vm372, %v3549, %v3557
        %v3566 = vsel %vm372, %v3550, %v3558
        %v3567 = vsel %vm372, %v3551, %v3543
        %v3568 = vsel %vm372, %v3552, %v3544
        %v3569 = vsel %vm372, %v3553, %v3545
        %v3570 = vsel %vm372, %v3554, %v3546
        %v3571 = vsel %vm372, %v3555, %v3547
        %v3572 = vsel %vm372, %v3556, %v3548
        %v3573 = vsel %vm372, %v3557, %v3549
        %v3574 = vsel %vm372, %v3558, %v3550
        %v3575 = vsel %vm391, %v3463, %v3559
        %v3576 = vsel %vm392, %v3464, %v3567
        %v3577 = vsel %vm391, %v3465, %v3560
        %v3578 = vsel %vm392, %v3466, %v3568
        %v3579 = vsel %vm391, %v3467, %v3561
        %v3580 = vsel %vm392, %v3468, %v3569
        %v3581 = vsel %vm391, %v3469, %v3562
        %v3582 = vsel %vm392, %v3470, %v3570
        %v3583 = vsel %vm391, %v3471, %v3563
        %v3584 = vsel %vm392, %v3472, %v3571
        %v3585 = vsel %vm391, %v3473, %v3564
        %v3586 = vsel %vm392, %v3474, %v3572
        %v3587 = vsel %vm391, %v3475, %v3565
        %v3588 = vsel %vm392, %v3476, %v3573
        %v3589 = vsel %vm391, %v3477, %v3566
        %v3590 = vsel %vm392, %v3478, %v3574
        %v3591 = vmin.f32 %v3527, %v3575
        %v3592 = vmin.f32 %v3528, %v3576
        %v3593 = vmin.f32 %v3529, %v3577
        %v3594 = vmin.f32 %v3530, %v3578
        %v3595 = vmin.f32 %v3531, %v3579
        %v3596 = vmin.f32 %v3532, %v3580
        %v3597 = vmin.f32 %v3533, %v3581
        %v3598 = vmin.f32 %v3534, %v3582
        %v3599 = vmin.f32 %v3535, %v3583
        %v3600 = vmin.f32 %v3536, %v3584
        %v3601 = vmin.f32 %v3537, %v3585
        %v3602 = vmin.f32 %v3538, %v3586
        %v3603 = vmin.f32 %v3539, %v3587
        %v3604 = vmin.f32 %v3540, %v3588
        %v3605 = vmin.f32 %v3541, %v3589
        %v3606 = vmin.f32 %v3542, %v3590
        %3607 = vrot.lane.b32.xlu0 %v3463, 1
        %v3608 = vpop.permute.xlu0 %3607
        %3609 = vrot.lane.b32.xlu0 %v3464, 1
        %v3610 = vpop.permute.xlu0 %3609
        %3611 = vrot.lane.b32.xlu0 %v3465, 1
        %v3612 = vpop.permute.xlu0 %3611
        %3613 = vrot.lane.b32.xlu0 %v3466, 1
        %v3614 = vpop.permute.xlu0 %3613
        %3615 = vrot.lane.b32.xlu0 %v3467, 1
        %v3616 = vpop.permute.xlu0 %3615
        %3617 = vrot.lane.b32.xlu0 %v3468, 1
        %v3618 = vpop.permute.xlu0 %3617
        %3619 = vrot.lane.b32.xlu0 %v3469, 1
        %v3620 = vpop.permute.xlu0 %3619
        %3621 = vrot.lane.b32.xlu0 %v3470, 1
        %v3622 = vpop.permute.xlu0 %3621
        %3623 = vrot.lane.b32.xlu0 %v3471, 1
        %v3624 = vpop.permute.xlu0 %3623
        %3625 = vrot.lane.b32.xlu0 %v3472, 1
        %v3626 = vpop.permute.xlu0 %3625
        %3627 = vrot.lane.b32.xlu0 %v3473, 1
        %v3628 = vpop.permute.xlu0 %3627
        %3629 = vrot.lane.b32.xlu0 %v3474, 1
        %v3630 = vpop.permute.xlu0 %3629
        %3631 = vrot.lane.b32.xlu0 %v3475, 1
        %v3632 = vpop.permute.xlu0 %3631
        %3633 = vrot.lane.b32.xlu0 %v3476, 1
        %v3634 = vpop.permute.xlu0 %3633
        %3635 = vrot.lane.b32.xlu0 %v3477, 1
        %v3636 = vpop.permute.xlu0 %3635
        %3637 = vrot.lane.b32.xlu0 %v3478, 1
        %v3638 = vpop.permute.xlu0 %3637
        %v3639 = vsel %vm458, %v3463, %v3608
        %v3640 = vsel %vm458, %v3464, %v3610
        %v3641 = vsel %vm458, %v3465, %v3612
        %v3642 = vsel %vm458, %v3466, %v3614
        %v3643 = vsel %vm458, %v3467, %v3616
        %v3644 = vsel %vm458, %v3468, %v3618
        %v3645 = vsel %vm458, %v3469, %v3620
        %v3646 = vsel %vm458, %v3470, %v3622
        %v3647 = vsel %vm458, %v3471, %v3624
        %v3648 = vsel %vm458, %v3472, %v3626
        %v3649 = vsel %vm458, %v3473, %v3628
        %v3650 = vsel %vm458, %v3474, %v3630
        %v3651 = vsel %vm458, %v3475, %v3632
        %v3652 = vsel %vm458, %v3476, %v3634
        %v3653 = vsel %vm458, %v3477, %v3636
        %v3654 = vsel %vm458, %v3478, %v3638
        %v3655 = vmin.f32 %v3639, %v3463
        %v3656 = vmin.f32 %v3640, %v3464
        %v3657 = vmin.f32 %v3641, %v3465
        %v3658 = vmin.f32 %v3642, %v3466
        %v3659 = vmin.f32 %v3643, %v3467
        %v3660 = vmin.f32 %v3644, %v3468
        %v3661 = vmin.f32 %v3645, %v3469
        %v3662 = vmin.f32 %v3646, %v3470
        %v3663 = vmin.f32 %v3647, %v3471
        %v3664 = vmin.f32 %v3648, %v3472
        %v3665 = vmin.f32 %v3649, %v3473
        %v3666 = vmin.f32 %v3650, %v3474
        %v3667 = vmin.f32 %v3651, %v3475
        %v3668 = vmin.f32 %v3652, %v3476
        %v3669 = vmin.f32 %v3653, %v3477
        %v3670 = vmin.f32 %v3654, %v3478
        %3671 = vrot.lane.b32.xlu0 %v3463, 127
        %v3672 = vpop.permute.xlu0 %3671
        %3673 = vrot.lane.b32.xlu0 %v3464, 127
        %v3674 = vpop.permute.xlu0 %3673
        %3675 = vrot.lane.b32.xlu0 %v3465, 127
        %v3676 = vpop.permute.xlu0 %3675
        %3677 = vrot.lane.b32.xlu0 %v3466, 127
        %v3678 = vpop.permute.xlu0 %3677
        %3679 = vrot.lane.b32.xlu0 %v3467, 127
        %v3680 = vpop.permute.xlu0 %3679
        %3681 = vrot.lane.b32.xlu0 %v3468, 127
        %v3682 = vpop.permute.xlu0 %3681
        %3683 = vrot.lane.b32.xlu0 %v3469, 127
        %v3684 = vpop.permute.xlu0 %3683
        %3685 = vrot.lane.b32.xlu0 %v3470, 127
        %v3686 = vpop.permute.xlu0 %3685
        %3687 = vrot.lane.b32.xlu0 %v3471, 127
        %v3688 = vpop.permute.xlu0 %3687
        %3689 = vrot.lane.b32.xlu0 %v3472, 127
        %v3690 = vpop.permute.xlu0 %3689
        %3691 = vrot.lane.b32.xlu0 %v3473, 127
        %v3692 = vpop.permute.xlu0 %3691
        %3693 = vrot.lane.b32.xlu0 %v3474, 127
        %v3694 = vpop.permute.xlu0 %3693
        %3695 = vrot.lane.b32.xlu0 %v3475, 127
        %v3696 = vpop.permute.xlu0 %3695
        %3697 = vrot.lane.b32.xlu0 %v3476, 127
        %v3698 = vpop.permute.xlu0 %3697
        %3699 = vrot.lane.b32.xlu0 %v3477, 127
        %v3700 = vpop.permute.xlu0 %3699
        %3701 = vrot.lane.b32.xlu0 %v3478, 127
        %v3702 = vpop.permute.xlu0 %3701
        %v3703 = vsel %vm524, %v3463, %v3672
        %v3704 = vsel %vm524, %v3464, %v3674
        %v3705 = vsel %vm524, %v3465, %v3676
        %v3706 = vsel %vm524, %v3466, %v3678
        %v3707 = vsel %vm524, %v3467, %v3680
        %v3708 = vsel %vm524, %v3468, %v3682
        %v3709 = vsel %vm524, %v3469, %v3684
        %v3710 = vsel %vm524, %v3470, %v3686
        %v3711 = vsel %vm524, %v3471, %v3688
        %v3712 = vsel %vm524, %v3472, %v3690
        %v3713 = vsel %vm524, %v3473, %v3692
        %v3714 = vsel %vm524, %v3474, %v3694
        %v3715 = vsel %vm524, %v3475, %v3696
        %v3716 = vsel %vm524, %v3476, %v3698
        %v3717 = vsel %vm524, %v3477, %v3700
        %v3718 = vsel %vm524, %v3478, %v3702
        %v3719 = vmin.f32 %v3655, %v3703
        %v3720 = vmin.f32 %v3656, %v3704
        %v3721 = vmin.f32 %v3657, %v3705
        %v3722 = vmin.f32 %v3658, %v3706
        %v3723 = vmin.f32 %v3659, %v3707
        %v3724 = vmin.f32 %v3660, %v3708
        %v3725 = vmin.f32 %v3661, %v3709
        %v3726 = vmin.f32 %v3662, %v3710
        %v3727 = vmin.f32 %v3663, %v3711
        %v3728 = vmin.f32 %v3664, %v3712
        %v3729 = vmin.f32 %v3665, %v3713
        %v3730 = vmin.f32 %v3666, %v3714
        %v3731 = vmin.f32 %v3667, %v3715
        %v3732 = vmin.f32 %v3668, %v3716
        %v3733 = vmin.f32 %v3669, %v3717
        %v3734 = vmin.f32 %v3670, %v3718
        %v3735 = vmin.f32 %v3591, %v3719
        %v3736 = vmin.f32 %v3592, %v3720
        %v3737 = vmin.f32 %v3593, %v3721
        %v3738 = vmin.f32 %v3594, %v3722
        %v3739 = vmin.f32 %v3595, %v3723
        %v3740 = vmin.f32 %v3596, %v3724
        %v3741 = vmin.f32 %v3597, %v3725
        %v3742 = vmin.f32 %v3598, %v3726
        %v3743 = vmin.f32 %v3599, %v3727
        %v3744 = vmin.f32 %v3600, %v3728
        %v3745 = vmin.f32 %v3601, %v3729
        %v3746 = vmin.f32 %v3602, %v3730
        %v3747 = vmin.f32 %v3603, %v3731
        %v3748 = vmin.f32 %v3604, %v3732
        %v3749 = vmin.f32 %v3605, %v3733
        %v3750 = vmin.f32 %v3606, %v3734
        %v3751 = vmul.f32 %v3735, %v253
        %v3752 = vmul.f32 %v3736, %v254
        %v3753 = vmul.f32 %v3737, %v253
        %v3754 = vmul.f32 %v3738, %v254
        %v3755 = vmul.f32 %v3739, %v253
        %v3756 = vmul.f32 %v3740, %v254
        %v3757 = vmul.f32 %v3741, %v253
        %v3758 = vmul.f32 %v3742, %v254
        %v3759 = vmul.f32 %v3743, %v253
        %v3760 = vmul.f32 %v3744, %v254
        %v3761 = vmul.f32 %v3745, %v253
        %v3762 = vmul.f32 %v3746, %v254
        %v3763 = vmul.f32 %v3747, %v253
        %v3764 = vmul.f32 %v3748, %v254
        %v3765 = vmul.f32 %v3749, %v253
        %v3766 = vmul.f32 %v3750, %v254
        %v3767 = vmul.f32 %v3751, %v261
        %v3768 = vmul.f32 %v3752, %v262
        %v3769 = vmul.f32 %v3753, %v269
        %v3770 = vmul.f32 %v3754, %v270
        %v3771 = vmul.f32 %v3755, %v277
        %v3772 = vmul.f32 %v3756, %v278
        %v3773 = vmul.f32 %v3757, %v285
        %v3774 = vmul.f32 %v3758, %v286
        %3775 = vadd.xlane.f32.xlu0 %v3767
        %v3776 = vpop.xlane.xlu0 %3775
        %3777 = vadd.xlane.f32.xlu0 %v3768
        %v3778 = vpop.xlane.xlu0 %3777
        %3779 = vadd.xlane.f32.xlu0 %v3769
        %v3780 = vpop.xlane.xlu0 %3779
        %3781 = vadd.xlane.f32.xlu0 %v3770
        %v3782 = vpop.xlane.xlu0 %3781
        %3783 = vadd.xlane.f32.xlu0 %v3771
        %v3784 = vpop.xlane.xlu0 %3783
        %3785 = vadd.xlane.f32.xlu0 %v3772
        %v3786 = vpop.xlane.xlu0 %3785
        %3787 = vadd.xlane.f32.xlu0 %v3773
        %v3788 = vpop.xlane.xlu0 %3787
        %3789 = vadd.xlane.f32.xlu0 %v3774
        %v3790 = vpop.xlane.xlu0 %3789
        %v3799 = vlaneseq
        %v3800 = vshrl.u32 %v3799, 7
        %v3801 = vsub.s32 %v239, %v3800
        %v3802 = vrot.slane %v3776, %v3801
        %v3803 = vadd.s32 %v239, 4294967288
        %v3804 = vlaneseq
        %v3805 = vshrl.u32 %v3804, 7
        %v3806 = vsub.s32 %v3803, %v3805
        %v3807 = vrot.slane %v3778, %v3806
        %vm3808 = vcmask 130112
        %v3809 = vsel %vm3808, %v3807, %v3802
        %v3810 = vlaneseq
        %v3811 = vshrl.u32 %v3810, 7
        %v3812 = vsub.s32 %v239, %v3811
        %v3813 = vrot.slane %v3780, %v3812
        %v3814 = vlaneseq
        %v3815 = vshrl.u32 %v3814, 7
        %v3816 = vsub.s32 %v3803, %v3815
        %v3817 = vrot.slane %v3782, %v3816
        %v3818 = vsel %vm3808, %v3817, %v3813
        %v3819 = vlaneseq
        %v3820 = vshrl.u32 %v3819, 7
        %v3821 = vsub.s32 %v239, %v3820
        %v3822 = vrot.slane %v3784, %v3821
        %v3823 = vlaneseq
        %v3824 = vshrl.u32 %v3823, 7
        %v3825 = vsub.s32 %v3803, %v3824
        %v3826 = vrot.slane %v3786, %v3825
        %v3827 = vsel %vm3808, %v3826, %v3822
        %v3828 = vlaneseq
        %v3829 = vshrl.u32 %v3828, 7
        %v3830 = vsub.s32 %v239, %v3829
        %v3831 = vrot.slane %v3788, %v3830
        %v3832 = vlaneseq
        %v3833 = vshrl.u32 %v3832, 7
        %v3834 = vsub.s32 %v3803, %v3833
        %v3835 = vrot.slane %v3790, %v3834
        %v3836 = vsel %vm3808, %v3835, %v3831
        %vm3837 = vcmask 1041409
        %v3838 = vsel %vm3837, %v3818, %v3809
        %vm3839 = vcmask 1042434
        %v3840 = vsel %vm3839, %v3827, %v3838
        %vm3841 = vcmask 1043459
        %v3842 = vsel %vm3841, %v3836, %v3840
        %vm3844 = vcmask 125952
        %v3845 = vsel %vm3844, %v3842, 0.0
        %3846 = vadd.xlane.f32.xlu0 %v3845
        %v3847 = vpop.xlane.xlu0 %3846
        %v3848 = vadd.f32 %v3847, 1e-08
        %3849 = vadd.xlane.f32.xlu0 %v3751
        %v3850 = vpop.xlane.xlu0 %3849
        %3851 = vadd.xlane.f32.xlu0 %v3752
        %v3852 = vpop.xlane.xlu0 %3851
        %3853 = vadd.xlane.f32.xlu0 %v3753
        %v3854 = vpop.xlane.xlu0 %3853
        %3855 = vadd.xlane.f32.xlu0 %v3754
        %v3856 = vpop.xlane.xlu0 %3855
        %3857 = vadd.xlane.f32.xlu0 %v3755
        %v3858 = vpop.xlane.xlu0 %3857
        %3859 = vadd.xlane.f32.xlu0 %v3756
        %v3860 = vpop.xlane.xlu0 %3859
        %3861 = vadd.xlane.f32.xlu0 %v3757
        %v3862 = vpop.xlane.xlu0 %3861
        %3863 = vadd.xlane.f32.xlu0 %v3758
        %v3864 = vpop.xlane.xlu0 %3863
        %v3873 = vlaneseq
        %v3874 = vshrl.u32 %v3873, 7
        %v3875 = vsub.s32 %v239, %v3874
        %v3876 = vrot.slane %v3850, %v3875
        %v3877 = vlaneseq
        %v3878 = vshrl.u32 %v3877, 7
        %v3879 = vsub.s32 %v3803, %v3878
        %v3880 = vrot.slane %v3852, %v3879
        %v3881 = vsel %vm3808, %v3880, %v3876
        %v3882 = vlaneseq
        %v3883 = vshrl.u32 %v3882, 7
        %v3884 = vsub.s32 %v239, %v3883
        %v3885 = vrot.slane %v3854, %v3884
        %v3886 = vlaneseq
        %v3887 = vshrl.u32 %v3886, 7
        %v3888 = vsub.s32 %v3803, %v3887
        %v3889 = vrot.slane %v3856, %v3888
        %v3890 = vsel %vm3808, %v3889, %v3885
        %v3891 = vlaneseq
        %v3892 = vshrl.u32 %v3891, 7
        %v3893 = vsub.s32 %v239, %v3892
        %v3894 = vrot.slane %v3858, %v3893
        %v3895 = vlaneseq
        %v3896 = vshrl.u32 %v3895, 7
        %v3897 = vsub.s32 %v3803, %v3896
        %v3898 = vrot.slane %v3860, %v3897
        %v3899 = vsel %vm3808, %v3898, %v3894
        %v3900 = vlaneseq
        %v3901 = vshrl.u32 %v3900, 7
        %v3902 = vsub.s32 %v239, %v3901
        %v3903 = vrot.slane %v3862, %v3902
        %v3904 = vlaneseq
        %v3905 = vshrl.u32 %v3904, 7
        %v3906 = vsub.s32 %v3803, %v3905
        %v3907 = vrot.slane %v3864, %v3906
        %v3908 = vsel %vm3808, %v3907, %v3903
        %v3909 = vsel %vm3837, %v3890, %v3881
        %v3910 = vsel %vm3839, %v3899, %v3909
        %v3911 = vsel %vm3841, %v3908, %v3910
        %v3913 = vsel %vm3844, %v3911, 0.0
        %3914 = vadd.xlane.f32.xlu0 %v3913
        %v3915 = vpop.xlane.xlu0 %3914
        %v3916 = vadd.f32 %v3915, 1e-08
        %v3917 = vrcp.pop %v3916
        %v3918 = vmul.f32 %v3848, %v3917
        %v3919 = vmul.f32 %v3759, %v225
        %v3920 = vmul.f32 %v3760, %v226
        %v3921 = vmul.f32 %v3761, %v227
        %v3922 = vmul.f32 %v3762, %v228
        %v3923 = vmul.f32 %v3763, %v229
        %v3924 = vmul.f32 %v3764, %v230
        %v3925 = vmul.f32 %v3765, %v231
        %v3926 = vmul.f32 %v3766, %v232
        %3927 = vadd.xlane.f32.xlu0 %v3919
        %v3928 = vpop.xlane.xlu0 %3927
        %3929 = vadd.xlane.f32.xlu0 %v3920
        %v3930 = vpop.xlane.xlu0 %3929
        %3931 = vadd.xlane.f32.xlu0 %v3921
        %v3932 = vpop.xlane.xlu0 %3931
        %3933 = vadd.xlane.f32.xlu0 %v3922
        %v3934 = vpop.xlane.xlu0 %3933
        %3935 = vadd.xlane.f32.xlu0 %v3923
        %v3936 = vpop.xlane.xlu0 %3935
        %3937 = vadd.xlane.f32.xlu0 %v3924
        %v3938 = vpop.xlane.xlu0 %3937
        %3939 = vadd.xlane.f32.xlu0 %v3925
        %v3940 = vpop.xlane.xlu0 %3939
        %3941 = vadd.xlane.f32.xlu0 %v3926
        %v3942 = vpop.xlane.xlu0 %3941
        %v3951 = vlaneseq
        %v3952 = vshrl.u32 %v3951, 7
        %v3953 = vsub.s32 %v239, %v3952
        %v3954 = vrot.slane %v3928, %v3953
        %v3955 = vlaneseq
        %v3956 = vshrl.u32 %v3955, 7
        %v3957 = vsub.s32 %v3803, %v3956
        %v3958 = vrot.slane %v3930, %v3957
        %v3959 = vsel %vm3808, %v3958, %v3954
        %v3960 = vlaneseq
        %v3961 = vshrl.u32 %v3960, 7
        %v3962 = vsub.s32 %v239, %v3961
        %v3963 = vrot.slane %v3932, %v3962
        %v3964 = vlaneseq
        %v3965 = vshrl.u32 %v3964, 7
        %v3966 = vsub.s32 %v3803, %v3965
        %v3967 = vrot.slane %v3934, %v3966
        %v3968 = vsel %vm3808, %v3967, %v3963
        %v3969 = vlaneseq
        %v3970 = vshrl.u32 %v3969, 7
        %v3971 = vsub.s32 %v239, %v3970
        %v3972 = vrot.slane %v3936, %v3971
        %v3973 = vlaneseq
        %v3974 = vshrl.u32 %v3973, 7
        %v3975 = vsub.s32 %v3803, %v3974
        %v3976 = vrot.slane %v3938, %v3975
        %v3977 = vsel %vm3808, %v3976, %v3972
        %v3978 = vlaneseq
        %v3979 = vshrl.u32 %v3978, 7
        %v3980 = vsub.s32 %v239, %v3979
        %v3981 = vrot.slane %v3940, %v3980
        %v3982 = vlaneseq
        %v3983 = vshrl.u32 %v3982, 7
        %v3984 = vsub.s32 %v3803, %v3983
        %v3985 = vrot.slane %v3942, %v3984
        %v3986 = vsel %vm3808, %v3985, %v3981
        %v3987 = vsel %vm3837, %v3968, %v3959
        %v3988 = vsel %vm3839, %v3977, %v3987
        %v3989 = vsel %vm3841, %v3986, %v3988
        %v3991 = vsel %vm3844, %v3989, 0.0
        %3992 = vadd.xlane.f32.xlu0 %v3991
        %v3993 = vpop.xlane.xlu0 %3992
        %v3994 = vadd.f32 %v3993, 1e-08
        %3995 = vadd.xlane.f32.xlu0 %v3759
        %v3996 = vpop.xlane.xlu0 %3995
        %3997 = vadd.xlane.f32.xlu0 %v3760
        %v3998 = vpop.xlane.xlu0 %3997
        %3999 = vadd.xlane.f32.xlu0 %v3761
        %v4000 = vpop.xlane.xlu0 %3999
        %4001 = vadd.xlane.f32.xlu0 %v3762
        %v4002 = vpop.xlane.xlu0 %4001
        %4003 = vadd.xlane.f32.xlu0 %v3763
        %v4004 = vpop.xlane.xlu0 %4003
        %4005 = vadd.xlane.f32.xlu0 %v3764
        %v4006 = vpop.xlane.xlu0 %4005
        %4007 = vadd.xlane.f32.xlu0 %v3765
        %v4008 = vpop.xlane.xlu0 %4007
        %4009 = vadd.xlane.f32.xlu0 %v3766
        %v4010 = vpop.xlane.xlu0 %4009
        %v4019 = vlaneseq
        %v4020 = vshrl.u32 %v4019, 7
        %v4021 = vsub.s32 %v239, %v4020
        %v4022 = vrot.slane %v3996, %v4021
        %v4023 = vlaneseq
        %v4024 = vshrl.u32 %v4023, 7
        %v4025 = vsub.s32 %v3803, %v4024
        %v4026 = vrot.slane %v3998, %v4025
        %v4027 = vsel %vm3808, %v4026, %v4022
        %v4028 = vlaneseq
        %v4029 = vshrl.u32 %v4028, 7
        %v4030 = vsub.s32 %v239, %v4029
        %v4031 = vrot.slane %v4000, %v4030
        %v4032 = vlaneseq
        %v4033 = vshrl.u32 %v4032, 7
        %v4034 = vsub.s32 %v3803, %v4033
        %v4035 = vrot.slane %v4002, %v4034
        %v4036 = vsel %vm3808, %v4035, %v4031
        %v4037 = vlaneseq
        %v4038 = vshrl.u32 %v4037, 7
        %v4039 = vsub.s32 %v239, %v4038
        %v4040 = vrot.slane %v4004, %v4039
        %v4041 = vlaneseq
        %v4042 = vshrl.u32 %v4041, 7
        %v4043 = vsub.s32 %v3803, %v4042
        %v4044 = vrot.slane %v4006, %v4043
        %v4045 = vsel %vm3808, %v4044, %v4040
        %v4046 = vlaneseq
        %v4047 = vshrl.u32 %v4046, 7
        %v4048 = vsub.s32 %v239, %v4047
        %v4049 = vrot.slane %v4008, %v4048
        %v4050 = vlaneseq
        %v4051 = vshrl.u32 %v4050, 7
        %v4052 = vsub.s32 %v3803, %v4051
        %v4053 = vrot.slane %v4010, %v4052
        %v4054 = vsel %vm3808, %v4053, %v4049
        %v4055 = vsel %vm3837, %v4036, %v4027
        %v4056 = vsel %vm3839, %v4045, %v4055
        %v4057 = vsel %vm3841, %v4054, %v4056
        %v4059 = vsel %vm3844, %v4057, 0.0
        %4060 = vadd.xlane.f32.xlu0 %v4059
        %v4061 = vpop.xlane.xlu0 %4060
        %v4062 = vadd.f32 %v4061, 1e-08
        %v4063 = vrcp.pop %v4062
        %v4064 = vmul.f32 %v3994, %v4063
        %v4065 = vmul.f32 %v3918, 2.0
        %v4066 = vmul.f32 %v4065, %v4064
        %v4067 = vadd.f32 %v3918, %v4064
        %v4068 = vrcp.pop %v4067
        %v4069 = vmul.f32 %v4066, %v4068
        %vm4070 = vcmask 1043456
        %v4071 = vsel %vm4070, %v4069, 0.0
        %vm4072 = vcmask 7168
        %4073 = vst.msk [vmem:[%s223] sm:$0xff] %vm4072, %v4071
        %s4074 = sadd.s32 %s23, %s24
        %p4075 = scmp.lt.s32.totalorder %s4074, 1
        %s4076 = scalar_select %p4075, %s4074, 1
        %s4077 = smul.addr %s4076, 8
        %s4078 = scalar_lea.vmem %s2, %s4077
        // Predicated region
        $region44: #{tpu_custom_call.1} parent=27 // pred_check
          %p4079 = pneg %p105
        $region45: #{tpu_custom_call.1} parent=27 // pred_check_branch
          %4081 = sbr.rel (%p4079) target = $region47
        $region46: #{tpu_custom_call.1} parent=27 // pred_region
          %s4082 = sadd.s32 %s23, %s24
        $region47: #{tpu_custom_call.1} parent=27 // pred_fallthru
          _
      $region28: #{tpu_custom_call.1} parent=5 // pred_fallthru
        _
      %p4083 = scmp.le.s32.totalorder 2, %s14
      // Predicated region
      $region48: #{tpu_custom_call.1} parent=5 // pred_check
        %p4084 = pneg %p4083
      $region49: #{tpu_custom_call.1} parent=5 // pred_check_branch
        %4086 = sbr.rel (%p4084) target = $region51
      $region50: #{tpu_custom_call.1} parent=5 // pred_region
        %s4087 = ssub.s32 %s14, 2
        // Predicated region
        $region52: #{tpu_custom_call.1} parent=50 // pred_check
          %p4088 = pneg %p111
        $region53: #{tpu_custom_call.1} parent=50 // pred_check_branch
          %4090 = sbr.rel (%p4088) target = $region55
        $region54: #{tpu_custom_call.1} parent=50 // pred_region
          %s4091 = sadd.s32 %s25, %s26
          %p4092 = scmp.lt.s32.totalorder %s4091, 1
          %s4093 = scalar_select %p4092, %s4091, 1
          %s4094 = smul.addr %s4093, 8
          %s4095 = scalar_lea.vmem %s2, %s4094
        $region55: #{tpu_custom_call.1} parent=50 // pred_fallthru
          _
      $region51: #{tpu_custom_call.1} parent=5 // pred_fallthru
        _
    $region6: #{tpu_custom_call.1} parent=1 // loop_footer
      %s18 = sadd.s32 1, %s14
    $region7: #{tpu_custom_call.1} parent=1 // loop_footer_branch
      %13 = sbr.rel target = $region3
    $region8: #{tpu_custom_call.1} parent=1 // loop_exit
      _
    %4096 = vsyncpa [#allocation3], 1
    %s4097 = scalar_lea.sflag [#allocation3], 1
    %4098 = vsyncpa %s4097, 1
    %4099 = vsyncpa [#allocation5], 1
    %s4100 = scalar_lea.sflag [#allocation5], 1
    %4101 = vsyncpa %s4100, 1

</llo_original>
